<compile_context>
chip_gen: v7x
topology: tpu7x:2x2x1
jax: 0.10.0
libtpu: 0.0.40
codegen_flags: <defaults>
</compile_context>

<pallas_src>
import functools

import jax
import jax.numpy as jnp
from jax.experimental import pallas as pl
from jax.experimental.pallas import tpu as pltpu


def _conv_stats_kernel(x_ref, w_ref, y_ref, sum_ref, sq_ref, acc_ref, *,
                       kH, kW, stride, H_out, W_out):
    # x_ref : (1, H_pad, W_pad, C_in)  un-duplicated, zero-padded NHWC input tile
    # w_ref : (kH*kW, C_in, Cp)        conv weights, channels zero-padded to Cp (lane-dense)
    # y_ref : (1, P, Cp)               pre-BN conv output, P = H_out*W_out
    # sum_ref/sq_ref : (1, 1, Cp)      per-grid-step partial BN statistics
    # acc_ref: VMEM scratch (P, Cp) f32 accumulator
    x = jnp.maximum(x_ref[0], 0.0)          # ReLU on the original activations (f32 VPU)
    P = H_out * W_out
    first = True
    for kh in range(kH):                    # static unrolled: kH*kW small MXU matmuls
        for kw in range(kW):
            xs = x[kh:kh + stride * H_out:stride,
                   kw:kw + stride * W_out:stride, :]      # (H_out, W_out, C_in) shifted view
            xs = xs.reshape(P, xs.shape[-1])              # collapse leading dims (layout-friendly)
            contrib = jnp.dot(xs, w_ref[kh * kW + kw],
                              preferred_element_type=jnp.float32)
            if first:
                acc_ref[...] = contrib
                first = False
            else:
                acc_ref[...] += contrib
    acc = acc_ref[...]
    y_ref[0] = acc
    # fused BN batch-stat partials (one per grid step -> no 'arbitrary' reduction axis)
    sum_ref[0] = jnp.sum(acc, axis=0, keepdims=True)
    sq_ref[0] = jnp.sum(acc * acc, axis=0, keepdims=True)


def _bn_apply_kernel(y_ref, scale_ref, shift_ref, o_ref):
    # Elementwise per-channel affine normalization; all blocks are 128-lane dense.
    o_ref[...] = y_ref[...] * scale_ref[...] + shift_ref[...]


def relu_conv_bn(x_nchw, w_conv, gamma, beta, *, stride, padding, eps=1e-5,
                 compute_dtype=jnp.float32):
    N, C_in, H, W = x_nchw.shape
    C_out, _, kH, kW = w_conv.shape
    H_out = (H + 2 * padding - kH) // stride + 1
    W_out = (W + 2 * padding - kW) // stride + 1
    P = H_out * W_out
    Cp = max(128, ((C_out + 127) // 128) * 128)   # lane-dense channel padding

    # --- glue: NHWC + zero pad only (no im2col matrix in HBM) ---
    x = jnp.transpose(x_nchw, (0, 2, 3, 1)).astype(compute_dtype)
    x = jnp.pad(x, ((0, 0), (padding, padding), (padding, padding), (0, 0)))
    H_pad, W_pad = H + 2 * padding, W + 2 * padding

    # weights (C_out, C_in, kH, kW) -> (kH*kW, C_in, Cp), zero-padded channels
    w = jnp.transpose(w_conv, (2, 3, 1, 0)).reshape(kH * kW, C_in, C_out)
    w = jnp.pad(w, ((0, 0), (0, 0), (0, Cp - C_out))).astype(compute_dtype)

    kernel = functools.partial(_conv_stats_kernel, kH=kH, kW=kW, stride=stride,
                               H_out=H_out, W_out=W_out)

    # --- Pallas kernel 1: fused ReLU + conv (implicit im2col) + BN partial stats ---
    y, sums, sqs = pl.pallas_call(
        kernel,
        out_shape=(
            jax.ShapeDtypeStruct((N, P, Cp), jnp.float32),
            jax.ShapeDtypeStruct((N, 1, Cp), jnp.float32),
            jax.ShapeDtypeStruct((N, 1, Cp), jnp.float32),
        ),
        grid=(N,),
        in_specs=[
            pl.BlockSpec((1, H_pad, W_pad, C_in), lambda n: (n, 0, 0, 0)),
            pl.BlockSpec((kH * kW, C_in, Cp), lambda n: (0, 0, 0)),   # constant-index: resident
        ],
        out_specs=(
            pl.BlockSpec((1, P, Cp), lambda n: (n, 0, 0)),
            pl.BlockSpec((1, 1, Cp), lambda n: (n, 0, 0)),
            pl.BlockSpec((1, 1, Cp), lambda n: (n, 0, 0)),
        ),
        scratch_shapes=[pltpu.VMEM((P, Cp), jnp.float32)],
        compiler_params=pltpu.CompilerParams(dimension_semantics=("parallel",)),
    )(x, w)

    # --- tiny per-channel scalar glue: biased batch variance, fold gamma/beta ---
    cnt = float(N * P)
    mean = jnp.sum(sums, axis=0) / cnt                       # (1, Cp)
    var = jnp.maximum(jnp.sum(sqs, axis=0) / cnt - mean * mean, 0.0)
    gamma_p = jnp.pad(gamma.astype(jnp.float32), (0, Cp - C_out)).reshape(1, Cp)
    beta_p = jnp.pad(beta.astype(jnp.float32), (0, Cp - C_out)).reshape(1, Cp)
    scale = gamma_p * jax.lax.rsqrt(var + eps)
    shift = beta_p - mean * scale
    scale = scale.reshape(1, 1, Cp)
    shift = shift.reshape(1, 1, Cp)

    # --- Pallas kernel 2: apply normalization elementwise (lane-dense blocks) ---
    out = pl.pallas_call(
        _bn_apply_kernel,
        out_shape=jax.ShapeDtypeStruct((N, P, Cp), jnp.float32),
        grid=(N,),
        in_specs=[
            pl.BlockSpec((1, P, Cp), lambda n: (n, 0, 0)),
            pl.BlockSpec((1, 1, Cp), lambda n: (0, 0, 0)),
            pl.BlockSpec((1, 1, Cp), lambda n: (0, 0, 0)),
        ],
        out_specs=pl.BlockSpec((1, P, Cp), lambda n: (n, 0, 0)),
        compiler_params=pltpu.CompilerParams(dimension_semantics=("parallel",)),
    )(y, scale, shift)

    out = out[:, :, :C_out].reshape(N, H_out, W_out, C_out)
    return jnp.transpose(out, (0, 3, 1, 2))  # back to NCHW like PyTorch


def _reference(x, w_conv, gamma, beta, *, stride, padding, eps=1e-5):
    # Pure-JAX reference (ReLU -> conv NCHW -> training-mode BatchNorm2d).
    r = jnp.maximum(x.astype(jnp.float32), 0.0)
    y = jax.lax.conv_general_dilated(
        r, w_conv.astype(jnp.float32),
        window_strides=(stride, stride),
        padding=((padding, padding), (padding, padding)),
        dimension_numbers=("NCHW", "OIHW", "NCHW"),
    )
    mean = jnp.mean(y, axis=(0, 2, 3), keepdims=True)
    var = jnp.mean((y - mean) ** 2, axis=(0, 2, 3), keepdims=True)
    yhat = (y - mean) * jax.lax.rsqrt(var + eps)
    return yhat * gamma.reshape(1, -1, 1, 1) + beta.reshape(1, -1, 1, 1)


if __name__ == "__main__":
    key = jax.random.PRNGKey(0)
    kx, kw = jax.random.split(key)

    N, C_in, H, W = 2, 4, 16, 16
    C_out, kernel_size, stride, padding = 8, 3, 1, 1

    x = jax.random.normal(kx, (N, C_in, H, W), dtype=jnp.float32)
    w_conv = 0.1 * jax.random.normal(kw, (C_out, C_in, kernel_size, kernel_size),
                                     dtype=jnp.float32)
    gamma = jnp.ones((C_out,), jnp.float32)   # BatchNorm2d(affine=True) init
    beta = jnp.zeros((C_out,), jnp.float32)

    out = relu_conv_bn(x, w_conv, gamma, beta, stride=stride, padding=padding)
    out = jax.block_until_ready(out)

    ref = _reference(x, w_conv, gamma, beta, stride=stride, padding=padding)
    assert out.shape == (N, C_out, H, W)
    assert jnp.allclose(out, ref, rtol=1e-4, atol=1e-4), "mismatch vs reference"

    print("KERNEL_OK")
</pallas_src>

<mosaic_0001>
module attributes {stable_mosaic.version = 11 : i64} {
  func.func @_conv_stats_kernel(%arg0: i32, %arg1: memref<1x18x18x4xf32, #tpu.memory_space<vmem>>, %arg2: memref<9x4x128xf32, #tpu.memory_space<vmem>>, %arg3: memref<1x256x128xf32, #tpu.memory_space<vmem>>, %arg4: memref<1x1x128xf32, #tpu.memory_space<vmem>>, %arg5: memref<1x1x128xf32, #tpu.memory_space<vmem>>, %arg6: memref<256x128xf32, #tpu.memory_space<vmem>>) attributes {dimension_semantics = [#tpu.dimension_semantics<parallel>], iteration_bounds = array<i64: 2>, scalar_prefetch = 0 : i64, scratch_operands = 1 : i64, tpu.core_type = #tpu.core_type<tc>, window_params = [{transform_indices = @transform_0, window_bounds = array<i64: 1, 18, 18, 4>}, {pipeline_mode = #tpu.pipeline_mode<synchronous>, transform_indices = @transform_1, window_bounds = array<i64: 9, 4, 128>}, {transform_indices = @transform_2, window_bounds = array<i64: 1, 256, 128>}, {transform_indices = @transform_3, window_bounds = array<i64: 1, 1, 128>}, {transform_indices = @transform_4, window_bounds = array<i64: 1, 1, 128>}]} {
    %c0 = arith.constant 0 : index
    %c0_0 = arith.constant 0 : index
    %c0_1 = arith.constant 0 : index
    %c0_2 = arith.constant 0 : index
    %0 = vector.load %arg1[%c0, %c0_0, %c0_1, %c0_2] : memref<1x18x18x4xf32, #tpu.memory_space<vmem>>, vector<1x18x18x4xf32>
    %1 = vector.shape_cast %0 : vector<1x18x18x4xf32> to vector<18x18x4xf32>
    %cst = arith.constant 0.000000e+00 : f32
    %2 = vector.broadcast %cst : f32 to vector<18x18x4xf32>
    %3 = arith.maximumf %1, %2 : vector<18x18x4xf32>
    %4 = vector.extract_strided_slice %3 {offsets = [0, 0, 0], sizes = [16, 16, 4], strides = [1, 1, 1]} : vector<18x18x4xf32> to vector<16x16x4xf32>
    %5 = vector.shape_cast %4 : vector<16x16x4xf32> to vector<256x4xf32>
    %c0_3 = arith.constant 0 : index
    %c0_4 = arith.constant 0 : index
    %c0_5 = arith.constant 0 : index
    %6 = vector.load %arg2[%c0_3, %c0_4, %c0_5] : memref<9x4x128xf32, #tpu.memory_space<vmem>>, vector<1x4x128xf32>
    %7 = vector.shape_cast %6 : vector<1x4x128xf32> to vector<4x128xf32>
    %cst_6 = arith.constant dense<0.000000e+00> : vector<256x128xf32>
    %8 = tpu.matmul %5, %7, %cst_6 {dimension_numbers = #tpu.dot_dimension_numbers<[1], [0], [0], [1], [0, 0, 1, 1], [], []>} : vector<256x4xf32>, vector<4x128xf32>, vector<256x128xf32> -> vector<256x128xf32>
    %c0_7 = arith.constant 0 : index
    %c0_8 = arith.constant 0 : index
    %9 = vector.load %arg6[%c0_7, %c0_8] : memref<256x128xf32, #tpu.memory_space<vmem>>, vector<256x128xf32>
    tpu.vector_store %arg6[%c0_7, %c0_8], %8 {strides = array<i32>} : memref<256x128xf32, #tpu.memory_space<vmem>>, vector<256x128xf32>,
    %10 = vector.extract_strided_slice %3 {offsets = [0, 1, 0], sizes = [16, 16, 4], strides = [1, 1, 1]} : vector<18x18x4xf32> to vector<16x16x4xf32>
    %11 = vector.shape_cast %10 : vector<16x16x4xf32> to vector<256x4xf32>
    %c1 = arith.constant 1 : index
    %c0_9 = arith.constant 0 : index
    %c0_10 = arith.constant 0 : index
    %12 = vector.load %arg2[%c1, %c0_9, %c0_10] : memref<9x4x128xf32, #tpu.memory_space<vmem>>, vector<1x4x128xf32>
    %13 = vector.shape_cast %12 : vector<1x4x128xf32> to vector<4x128xf32>
    %cst_11 = arith.constant dense<0.000000e+00> : vector<256x128xf32>
    %14 = tpu.matmul %11, %13, %cst_11 {dimension_numbers = #tpu.dot_dimension_numbers<[1], [0], [0], [1], [0, 0, 1, 1], [], []>} : vector<256x4xf32>, vector<4x128xf32>, vector<256x128xf32> -> vector<256x128xf32>
    %c0_12 = arith.constant 0 : index
    %c0_13 = arith.constant 0 : index
    %15 = vector.load %arg6[%c0_12, %c0_13] : memref<256x128xf32, #tpu.memory_space<vmem>>, vector<256x128xf32>
    %16 = arith.addf %15, %14 : vector<256x128xf32>
    %c0_14 = arith.constant 0 : index
    %c0_15 = arith.constant 0 : index
    %17 = vector.load %arg6[%c0_14, %c0_15] : memref<256x128xf32, #tpu.memory_space<vmem>>, vector<256x128xf32>
    tpu.vector_store %arg6[%c0_14, %c0_15], %16 {strides = array<i32>} : memref<256x128xf32, #tpu.memory_space<vmem>>, vector<256x128xf32>,
    %18 = vector.extract_strided_slice %3 {offsets = [0, 2, 0], sizes = [16, 16, 4], strides = [1, 1, 1]} : vector<18x18x4xf32> to vector<16x16x4xf32>
    %19 = vector.shape_cast %18 : vector<16x16x4xf32> to vector<256x4xf32>
    %c2 = arith.constant 2 : index
    %c0_16 = arith.constant 0 : index
    %c0_17 = arith.constant 0 : index
    %20 = vector.load %arg2[%c2, %c0_16, %c0_17] : memref<9x4x128xf32, #tpu.memory_space<vmem>>, vector<1x4x128xf32>
    %21 = vector.shape_cast %20 : vector<1x4x128xf32> to vector<4x128xf32>
    %cst_18 = arith.constant dense<0.000000e+00> : vector<256x128xf32>
    %22 = tpu.matmul %19, %21, %cst_18 {dimension_numbers = #tpu.dot_dimension_numbers<[1], [0], [0], [1], [0, 0, 1, 1], [], []>} : vector<256x4xf32>, vector<4x128xf32>, vector<256x128xf32> -> vector<256x128xf32>
    %c0_19 = arith.constant 0 : index
    %c0_20 = arith.constant 0 : index
    %23 = vector.load %arg6[%c0_19, %c0_20] : memref<256x128xf32, #tpu.memory_space<vmem>>, vector<256x128xf32>
    %24 = arith.addf %23, %22 : vector<256x128xf32>
    %c0_21 = arith.constant 0 : index
    %c0_22 = arith.constant 0 : index
    %25 = vector.load %arg6[%c0_21, %c0_22] : memref<256x128xf32, #tpu.memory_space<vmem>>, vector<256x128xf32>
    tpu.vector_store %arg6[%c0_21, %c0_22], %24 {strides = array<i32>} : memref<256x128xf32, #tpu.memory_space<vmem>>, vector<256x128xf32>,
    %26 = vector.extract_strided_slice %3 {offsets = [1, 0, 0], sizes = [16, 16, 4], strides = [1, 1, 1]} : vector<18x18x4xf32> to vector<16x16x4xf32>
    %27 = vector.shape_cast %26 : vector<16x16x4xf32> to vector<256x4xf32>
    %c3 = arith.constant 3 : index
    %c0_23 = arith.constant 0 : index
    %c0_24 = arith.constant 0 : index
    %28 = vector.load %arg2[%c3, %c0_23, %c0_24] : memref<9x4x128xf32, #tpu.memory_space<vmem>>, vector<1x4x128xf32>
    %29 = vector.shape_cast %28 : vector<1x4x128xf32> to vector<4x128xf32>
    %cst_25 = arith.constant dense<0.000000e+00> : vector<256x128xf32>
    %30 = tpu.matmul %27, %29, %cst_25 {dimension_numbers = #tpu.dot_dimension_numbers<[1], [0], [0], [1], [0, 0, 1, 1], [], []>} : vector<256x4xf32>, vector<4x128xf32>, vector<256x128xf32> -> vector<256x128xf32>
    %c0_26 = arith.constant 0 : index
    %c0_27 = arith.constant 0 : index
    %31 = vector.load %arg6[%c0_26, %c0_27] : memref<256x128xf32, #tpu.memory_space<vmem>>, vector<256x128xf32>
    %32 = arith.addf %31, %30 : vector<256x128xf32>
    %c0_28 = arith.constant 0 : index
    %c0_29 = arith.constant 0 : index
    %33 = vector.load %arg6[%c0_28, %c0_29] : memref<256x128xf32, #tpu.memory_space<vmem>>, vector<256x128xf32>
    tpu.vector_store %arg6[%c0_28, %c0_29], %32 {strides = array<i32>} : memref<256x128xf32, #tpu.memory_space<vmem>>, vector<256x128xf32>,
    %34 = vector.extract_strided_slice %3 {offsets = [1, 1, 0], sizes = [16, 16, 4], strides = [1, 1, 1]} : vector<18x18x4xf32> to vector<16x16x4xf32>
    %35 = vector.shape_cast %34 : vector<16x16x4xf32> to vector<256x4xf32>
    %c4 = arith.constant 4 : index
    %c0_30 = arith.constant 0 : index
    %c0_31 = arith.constant 0 : index
    %36 = vector.load %arg2[%c4, %c0_30, %c0_31] : memref<9x4x128xf32, #tpu.memory_space<vmem>>, vector<1x4x128xf32>
    %37 = vector.shape_cast %36 : vector<1x4x128xf32> to vector<4x128xf32>
    %cst_32 = arith.constant dense<0.000000e+00> : vector<256x128xf32>
    %38 = tpu.matmul %35, %37, %cst_32 {dimension_numbers = #tpu.dot_dimension_numbers<[1], [0], [0], [1], [0, 0, 1, 1], [], []>} : vector<256x4xf32>, vector<4x128xf32>, vector<256x128xf32> -> vector<256x128xf32>
    %c0_33 = arith.constant 0 : index
    %c0_34 = arith.constant 0 : index
    %39 = vector.load %arg6[%c0_33, %c0_34] : memref<256x128xf32, #tpu.memory_space<vmem>>, vector<256x128xf32>
    %40 = arith.addf %39, %38 : vector<256x128xf32>
    %c0_35 = arith.constant 0 : index
    %c0_36 = arith.constant 0 : index
    %41 = vector.load %arg6[%c0_35, %c0_36] : memref<256x128xf32, #tpu.memory_space<vmem>>, vector<256x128xf32>
    tpu.vector_store %arg6[%c0_35, %c0_36], %40 {strides = array<i32>} : memref<256x128xf32, #tpu.memory_space<vmem>>, vector<256x128xf32>,
    %42 = vector.extract_strided_slice %3 {offsets = [1, 2, 0], sizes = [16, 16, 4], strides = [1, 1, 1]} : vector<18x18x4xf32> to vector<16x16x4xf32>
    %43 = vector.shape_cast %42 : vector<16x16x4xf32> to vector<256x4xf32>
    %c5 = arith.constant 5 : index
    %c0_37 = arith.constant 0 : index
    %c0_38 = arith.constant 0 : index
    %44 = vector.load %arg2[%c5, %c0_37, %c0_38] : memref<9x4x128xf32, #tpu.memory_space<vmem>>, vector<1x4x128xf32>
    %45 = vector.shape_cast %44 : vector<1x4x128xf32> to vector<4x128xf32>
    %cst_39 = arith.constant dense<0.000000e+00> : vector<256x128xf32>
    %46 = tpu.matmul %43, %45, %cst_39 {dimension_numbers = #tpu.dot_dimension_numbers<[1], [0], [0], [1], [0, 0, 1, 1], [], []>} : vector<256x4xf32>, vector<4x128xf32>, vector<256x128xf32> -> vector<256x128xf32>
    %c0_40 = arith.constant 0 : index
    %c0_41 = arith.constant 0 : index
    %47 = vector.load %arg6[%c0_40, %c0_41] : memref<256x128xf32, #tpu.memory_space<vmem>>, vector<256x128xf32>
    %48 = arith.addf %47, %46 : vector<256x128xf32>
    %c0_42 = arith.constant 0 : index
    %c0_43 = arith.constant 0 : index
    %49 = vector.load %arg6[%c0_42, %c0_43] : memref<256x128xf32, #tpu.memory_space<vmem>>, vector<256x128xf32>
    tpu.vector_store %arg6[%c0_42, %c0_43], %48 {strides = array<i32>} : memref<256x128xf32, #tpu.memory_space<vmem>>, vector<256x128xf32>,
    %50 = vector.extract_strided_slice %3 {offsets = [2, 0, 0], sizes = [16, 16, 4], strides = [1, 1, 1]} : vector<18x18x4xf32> to vector<16x16x4xf32>
    %51 = vector.shape_cast %50 : vector<16x16x4xf32> to vector<256x4xf32>
    %c6 = arith.constant 6 : index
    %c0_44 = arith.constant 0 : index
    %c0_45 = arith.constant 0 : index
    %52 = vector.load %arg2[%c6, %c0_44, %c0_45] : memref<9x4x128xf32, #tpu.memory_space<vmem>>, vector<1x4x128xf32>
    %53 = vector.shape_cast %52 : vector<1x4x128xf32> to vector<4x128xf32>
    %cst_46 = arith.constant dense<0.000000e+00> : vector<256x128xf32>
    %54 = tpu.matmul %51, %53, %cst_46 {dimension_numbers = #tpu.dot_dimension_numbers<[1], [0], [0], [1], [0, 0, 1, 1], [], []>} : vector<256x4xf32>, vector<4x128xf32>, vector<256x128xf32> -> vector<256x128xf32>
    %c0_47 = arith.constant 0 : index
    %c0_48 = arith.constant 0 : index
    %55 = vector.load %arg6[%c0_47, %c0_48] : memref<256x128xf32, #tpu.memory_space<vmem>>, vector<256x128xf32>
    %56 = arith.addf %55, %54 : vector<256x128xf32>
    %c0_49 = arith.constant 0 : index
    %c0_50 = arith.constant 0 : index
    %57 = vector.load %arg6[%c0_49, %c0_50] : memref<256x128xf32, #tpu.memory_space<vmem>>, vector<256x128xf32>
    tpu.vector_store %arg6[%c0_49, %c0_50], %56 {strides = array<i32>} : memref<256x128xf32, #tpu.memory_space<vmem>>, vector<256x128xf32>,
    %58 = vector.extract_strided_slice %3 {offsets = [2, 1, 0], sizes = [16, 16, 4], strides = [1, 1, 1]} : vector<18x18x4xf32> to vector<16x16x4xf32>
    %59 = vector.shape_cast %58 : vector<16x16x4xf32> to vector<256x4xf32>
    %c7 = arith.constant 7 : index
    %c0_51 = arith.constant 0 : index
    %c0_52 = arith.constant 0 : index
    %60 = vector.load %arg2[%c7, %c0_51, %c0_52] : memref<9x4x128xf32, #tpu.memory_space<vmem>>, vector<1x4x128xf32>
    %61 = vector.shape_cast %60 : vector<1x4x128xf32> to vector<4x128xf32>
    %cst_53 = arith.constant dense<0.000000e+00> : vector<256x128xf32>
    %62 = tpu.matmul %59, %61, %cst_53 {dimension_numbers = #tpu.dot_dimension_numbers<[1], [0], [0], [1], [0, 0, 1, 1], [], []>} : vector<256x4xf32>, vector<4x128xf32>, vector<256x128xf32> -> vector<256x128xf32>
    %c0_54 = arith.constant 0 : index
    %c0_55 = arith.constant 0 : index
    %63 = vector.load %arg6[%c0_54, %c0_55] : memref<256x128xf32, #tpu.memory_space<vmem>>, vector<256x128xf32>
    %64 = arith.addf %63, %62 : vector<256x128xf32>
    %c0_56 = arith.constant 0 : index
    %c0_57 = arith.constant 0 : index
    %65 = vector.load %arg6[%c0_56, %c0_57] : memref<256x128xf32, #tpu.memory_space<vmem>>, vector<256x128xf32>
    tpu.vector_store %arg6[%c0_56, %c0_57], %64 {strides = array<i32>} : memref<256x128xf32, #tpu.memory_space<vmem>>, vector<256x128xf32>,
    %66 = vector.extract_strided_slice %3 {offsets = [2, 2, 0], sizes = [16, 16, 4], strides = [1, 1, 1]} : vector<18x18x4xf32> to vector<16x16x4xf32>
    %67 = vector.shape_cast %66 : vector<16x16x4xf32> to vector<256x4xf32>
    %c8 = arith.constant 8 : index
    %c0_58 = arith.constant 0 : index
    %c0_59 = arith.constant 0 : index
    %68 = vector.load %arg2[%c8, %c0_58, %c0_59] : memref<9x4x128xf32, #tpu.memory_space<vmem>>, vector<1x4x128xf32>
    %69 = vector.shape_cast %68 : vector<1x4x128xf32> to vector<4x128xf32>
    %cst_60 = arith.constant dense<0.000000e+00> : vector<256x128xf32>
    %70 = tpu.matmul %67, %69, %cst_60 {dimension_numbers = #tpu.dot_dimension_numbers<[1], [0], [0], [1], [0, 0, 1, 1], [], []>} : vector<256x4xf32>, vector<4x128xf32>, vector<256x128xf32> -> vector<256x128xf32>
    %c0_61 = arith.constant 0 : index
    %c0_62 = arith.constant 0 : index
    %71 = vector.load %arg6[%c0_61, %c0_62] : memref<256x128xf32, #tpu.memory_space<vmem>>, vector<256x128xf32>
    %72 = arith.addf %71, %70 : vector<256x128xf32>
    %c0_63 = arith.constant 0 : index
    %c0_64 = arith.constant 0 : index
    %73 = vector.load %arg6[%c0_63, %c0_64] : memref<256x128xf32, #tpu.memory_space<vmem>>, vector<256x128xf32>
    tpu.vector_store %arg6[%c0_63, %c0_64], %72 {strides = array<i32>} : memref<256x128xf32, #tpu.memory_space<vmem>>, vector<256x128xf32>,
    %c0_65 = arith.constant 0 : index
    %c0_66 = arith.constant 0 : index
    %74 = vector.load %arg6[%c0_65, %c0_66] : memref<256x128xf32, #tpu.memory_space<vmem>>, vector<256x128xf32>
    %c0_67 = arith.constant 0 : index
    %c0_68 = arith.constant 0 : index
    %c0_69 = arith.constant 0 : index
    %75 = vector.load %arg3[%c0_67, %c0_68, %c0_69] : memref<1x256x128xf32, #tpu.memory_space<vmem>>, vector<1x256x128xf32>
    %76 = vector.shape_cast %75 : vector<1x256x128xf32> to vector<256x128xf32>
    %77 = vector.shape_cast %74 : vector<256x128xf32> to vector<1x256x128xf32>
    tpu.vector_store %arg3[%c0_67, %c0_68, %c0_69], %77 {strides = array<i32>} : memref<1x256x128xf32, #tpu.memory_space<vmem>>, vector<1x256x128xf32>,
    %cst_70 = arith.constant dense<0.000000e+00> : vector<128xf32>
    %78 = vector.multi_reduction <add>, %74, %cst_70 [0] : vector<256x128xf32> to vector<128xf32>
    %79 = vector.shape_cast %78 : vector<128xf32> to vector<1x128xf32>
    %c0_71 = arith.constant 0 : index
    %c0_72 = arith.constant 0 : index
    %c0_73 = arith.constant 0 : index
    %80 = vector.load %arg4[%c0_71, %c0_72, %c0_73] : memref<1x1x128xf32, #tpu.memory_space<vmem>>, vector<1x1x128xf32>
    %81 = vector.shape_cast %80 : vector<1x1x128xf32> to vector<1x128xf32>
    %82 = vector.shape_cast %79 : vector<1x128xf32> to vector<1x1x128xf32>
    tpu.vector_store %arg4[%c0_71, %c0_72, %c0_73], %82 {strides = array<i32>} : memref<1x1x128xf32, #tpu.memory_space<vmem>>, vector<1x1x128xf32>,
    %83 = arith.mulf %74, %74 : vector<256x128xf32>
    %cst_74 = arith.constant dense<0.000000e+00> : vector<128xf32>
    %84 = vector.multi_reduction <add>, %83, %cst_74 [0] : vector<256x128xf32> to vector<128xf32>
    %85 = vector.shape_cast %84 : vector<128xf32> to vector<1x128xf32>
    %c0_75 = arith.constant 0 : index
    %c0_76 = arith.constant 0 : index
    %c0_77 = arith.constant 0 : index
    %86 = vector.load %arg5[%c0_75, %c0_76, %c0_77] : memref<1x1x128xf32, #tpu.memory_space<vmem>>, vector<1x1x128xf32>
    %87 = vector.shape_cast %86 : vector<1x1x128xf32> to vector<1x128xf32>
    %88 = vector.shape_cast %85 : vector<1x128xf32> to vector<1x1x128xf32>
    tpu.vector_store %arg5[%c0_75, %c0_76, %c0_77], %88 {strides = array<i32>} : memref<1x1x128xf32, #tpu.memory_space<vmem>>, vector<1x1x128xf32>,
    return
  }
  func.func @transform_0(%arg0: i32) -> (i32, i32, i32, i32) {
    %c0_i32 = arith.constant 0 : i32
    %c0_i32_0 = arith.constant 0 : i32
    %c0_i32_1 = arith.constant 0 : i32
    %c0_i32_2 = arith.constant 0 : i32
    return %arg0, %c0_i32, %c0_i32_0, %c0_i32_1 : i32, i32, i32, i32
  }
  func.func @transform_1(%arg0: i32) -> (i32, i32, i32) {
    %c0_i32 = arith.constant 0 : i32
    %c0_i32_0 = arith.constant 0 : i32
    %c0_i32_1 = arith.constant 0 : i32
    %c0_i32_2 = arith.constant 0 : i32
    return %c0_i32, %c0_i32_0, %c0_i32_1 : i32, i32, i32
  }
  func.func @transform_2(%arg0: i32) -> (i32, i32, i32) {
    %c0_i32 = arith.constant 0 : i32
    %c0_i32_0 = arith.constant 0 : i32
    %c0_i32_1 = arith.constant 0 : i32
    return %arg0, %c0_i32, %c0_i32_0 : i32, i32, i32
  }
  func.func @transform_3(%arg0: i32) -> (i32, i32, i32) {
    %c0_i32 = arith.constant 0 : i32
    %c0_i32_0 = arith.constant 0 : i32
    %c0_i32_1 = arith.constant 0 : i32
    return %arg0, %c0_i32, %c0_i32_0 : i32, i32, i32
  }
  func.func @transform_4(%arg0: i32) -> (i32, i32, i32) {
    %c0_i32 = arith.constant 0 : i32
    %c0_i32_0 = arith.constant 0 : i32
    %c0_i32_1 = arith.constant 0 : i32
    return %arg0, %c0_i32, %c0_i32_0 : i32, i32, i32
  }
}

</mosaic_0001>

<llo_original>
// kernel: tpu_custom_call.1
$region0: #{tpu_custom_call.1}
  #allocation0 [shape = 'u32[]', space=smem, size = 0x4, offset = 0x4, fixed_abs, tag = 'smem constant byte address 0x4 - core index']
  #allocation1 [shape = 'u32[144,128]{1,0:T(1,128)}', space=vmem, size = 0x12000, scoped, tag = 'internal scratch']
  #allocation2 [shape = 'f32[256,128]{1,0:T(8,128)}', space=vmem, size = 0x20000, scoped, tag = 'scratch operand']
  %s0 = inlined_call_operand.vmem [shape: f32[2,18,18,4], index: 0, kind: input, shape index: {}]
  %s1 = inlined_call_operand.vmem [shape: f32[9,4,128], index: 1, kind: input, shape index: {}]
  %s2 = inlined_call_operand.hbm [shape: f32[2,256,128], index: 2, kind: output, shape index: {0}]
  %s3 = inlined_call_operand.hbm [shape: f32[2,1,128], index: 3, kind: output, shape index: {1}]
  %s4 = inlined_call_operand.hbm [shape: f32[2,1,128], index: 4, kind: output, shape index: {2}]
  %5 = xla_tuple %s2, %s3, %s4
  %s6 = sld [smem:[#allocation0]]
  $region57: #{tpu_custom_call.1} parent=0
    _
  %s8 = ssub.s32 1, %s6
  %s9 = scalar_select 0, %s8, %s6
  $region1: #{tpu_custom_call.1} parent=0
    #allocation3 [shape = 'u8[262144]{0}', space=vmem, size = 0x40000, scoped, tag = 'output window, operand 0']
    #allocation4 [shape = 's32[2]{0}', space=sflag, size = 0x8, scoped, tag = 'scoped memory for tpu_custom_call.1']
    #allocation5 [shape = 'u8[1024]{0}', space=vmem, size = 0x400, scoped, tag = 'output window, operand 1']
    #allocation6 [shape = 's32[2]{0}', space=sflag, size = 0x8, scoped, tag = 'scoped memory for tpu_custom_call.1']
    #allocation7 [shape = 'u8[1024]{0}', space=vmem, size = 0x400, scoped, tag = 'output window, operand 2']
    %10 = vsyncpa [#allocation4], 0
    %s11 = scalar_lea.sflag [#allocation4], 1
    %12 = vsyncpa %s11, 0
    %13 = vsyncpa [#allocation6], 0
    %s14 = scalar_lea.sflag [#allocation6], 1
    %15 = vsyncpa %s14, 0
    loop: start=0, step=1, limit=4
    $region2: #{tpu_custom_call.1} parent=1 // loop_pre_header
      _
    $region3: #{tpu_custom_call.1} parent=1 // loop_header
      %s17 = sphi 0, %s21
      %p18 = scmp.ge.s32.totalorder %s17, 4
      %s27 = sphi 0, %s29
      %s30 = sphi 0, %s27
      %s31 = sphi 0, %s30
      %s47 = sphi 0, %s31
      %s51 = sphi 0, %s51
      %s53 = sphi 0, %s51
      %s54 = sphi 0, %s53
      %s68 = sphi 0, %s54
      %s74 = sphi 0, %s76
      %s77 = sphi 0, %s74
      %s78 = sphi 0, %s77
      %s94 = sphi 0, %s78
      %s100 = sphi 0, %s102
      %s103 = sphi 0, %s100
      %s104 = sphi 0, %s103
      %s120 = sphi 0, %s104
      %s126 = sphi 0, %s128
      %s129 = sphi 0, %s126
      %s130 = sphi 0, %s129
      %s146 = sphi 0, %s130
    $region4: #{tpu_custom_call.1} parent=1 // loop_header_branch
      %20 = sbr.rel (%p18) target = $region8
    $region5: #{tpu_custom_call.1} parent=1 // loop_body
      %s22 = ssub.s32 %s17, 1
      %s23 = ssub.s32 %s17, 2
      %s24 = sadd.s32 %s17, 1
      %s25 = ssub.s32 %s17, %s24
      %p26 = scmp.eq.s32.totalorder %s25, 0
      %s28 = sadd.s32 %s27, 1
      %s29 = scalar_select %p26, %s27, %s28
      %p32 = pneg %p26
      %p33 = scmp.eq.s32.totalorder %s17, 1
      %p34 = por %p32, %p33
      %p35 = scmp.ne.s32.totalorder %s27, %s30
      %p36 = scmp.eq.s32.totalorder %s17, 0
      %p37 = por %p35, %p36
      %p38 = scmp.ne.s32.totalorder %s27, %s30
      %p39 = scmp.eq.s32.totalorder %s22, 1
      %p40 = por %p38, %p39
      %p41 = scmp.ne.s32.totalorder %s30, %s31
      %p42 = scmp.eq.s32.totalorder %s22, 0
      %p43 = por %p41, %p42
      %p44 = scmp.ne.s32.totalorder %s30, %s31
      %p45 = scmp.eq.s32.totalorder %s23, 1
      %p46 = por %p44, %p45
      %p48 = scmp.ne.s32.totalorder %s31, %s47
      %p49 = scmp.eq.s32.totalorder %s23, 0
      %p50 = por %p48, %p49
      %s52 = sadd.s32 %s51, 1
      %p55 = scmp.eq.s32.totalorder %s17, 1
      %p56 = scmp.ne.s32.totalorder %s51, %s53
      %p57 = scmp.eq.s32.totalorder %s17, 0
      %p58 = por %p56, %p57
      %p59 = scmp.ne.s32.totalorder %s51, %s53
      %p60 = scmp.eq.s32.totalorder %s22, 1
      %p61 = por %p59, %p60
      %p62 = scmp.ne.s32.totalorder %s53, %s54
      %p63 = scmp.eq.s32.totalorder %s22, 0
      %p64 = por %p62, %p63
      %p65 = scmp.ne.s32.totalorder %s53, %s54
      %p66 = scmp.eq.s32.totalorder %s23, 1
      %p67 = por %p65, %p66
      %p69 = scmp.ne.s32.totalorder %s54, %s68
      %p70 = scmp.eq.s32.totalorder %s23, 0
      %p71 = por %p69, %p70
      %s72 = ssub.s32 %s17, %s24
      %p73 = scmp.eq.s32.totalorder %s72, 0
      %s75 = sadd.s32 %s74, 1
      %s76 = scalar_select %p73, %s74, %s75
      %p79 = pneg %p73
      %p80 = scmp.eq.s32.totalorder %s17, 1
      %p81 = por %p79, %p80
      %p82 = scmp.ne.s32.totalorder %s74, %s77
      %p83 = scmp.eq.s32.totalorder %s17, 0
      %p84 = por %p82, %p83
      %p85 = scmp.ne.s32.totalorder %s74, %s77
      %p86 = scmp.eq.s32.totalorder %s22, 1
      %p87 = por %p85, %p86
      %p88 = scmp.ne.s32.totalorder %s77, %s78
      %p89 = scmp.eq.s32.totalorder %s22, 0
      %p90 = por %p88, %p89
      %p91 = scmp.ne.s32.totalorder %s77, %s78
      %p92 = scmp.eq.s32.totalorder %s23, 1
      %p93 = por %p91, %p92
      %p95 = scmp.ne.s32.totalorder %s78, %s94
      %p96 = scmp.eq.s32.totalorder %s23, 0
      %p97 = por %p95, %p96
      %s98 = ssub.s32 %s17, %s24
      %p99 = scmp.eq.s32.totalorder %s98, 0
      %s101 = sadd.s32 %s100, 1
      %s102 = scalar_select %p99, %s100, %s101
      %p105 = pneg %p99
      %p106 = scmp.eq.s32.totalorder %s17, 1
      %p107 = por %p105, %p106
      %p108 = scmp.ne.s32.totalorder %s100, %s103
      %p109 = scmp.eq.s32.totalorder %s17, 0
      %p110 = por %p108, %p109
      %p111 = scmp.ne.s32.totalorder %s100, %s103
      %p112 = scmp.eq.s32.totalorder %s22, 1
      %p113 = por %p111, %p112
      %p114 = scmp.ne.s32.totalorder %s103, %s104
      %p115 = scmp.eq.s32.totalorder %s22, 0
      %p116 = por %p114, %p115
      %p117 = scmp.ne.s32.totalorder %s103, %s104
      %p118 = scmp.eq.s32.totalorder %s23, 1
      %p119 = por %p117, %p118
      %p121 = scmp.ne.s32.totalorder %s104, %s120
      %p122 = scmp.eq.s32.totalorder %s23, 0
      %p123 = por %p121, %p122
      %s124 = ssub.s32 %s17, %s24
      %p125 = scmp.eq.s32.totalorder %s124, 0
      %s127 = sadd.s32 %s126, 1
      %s128 = scalar_select %p125, %s126, %s127
      %p131 = pneg %p125
      %p132 = scmp.eq.s32.totalorder %s17, 1
      %p133 = por %p131, %p132
      %p134 = scmp.ne.s32.totalorder %s126, %s129
      %p135 = scmp.eq.s32.totalorder %s17, 0
      %p136 = por %p134, %p135
      %p137 = scmp.ne.s32.totalorder %s126, %s129
      %p138 = scmp.eq.s32.totalorder %s22, 1
      %p139 = por %p137, %p138
      %p140 = scmp.ne.s32.totalorder %s129, %s130
      %p141 = scmp.eq.s32.totalorder %s22, 0
      %p142 = por %p140, %p141
      %p143 = scmp.ne.s32.totalorder %s129, %s130
      %p144 = scmp.eq.s32.totalorder %s23, 1
      %p145 = por %p143, %p144
      %p147 = scmp.ne.s32.totalorder %s130, %s146
      %p148 = scmp.eq.s32.totalorder %s23, 0
      %p149 = por %p147, %p148
      %p150 = scmp.le.s32.totalorder 1, %s17
      %p151 = scmp.lt.s32.totalorder %s17, 3
      %p152 = pnand %p150, %p151
      %p153 = pneg %p152
      // Predicated region
      $region9: #{tpu_custom_call.1} parent=5 // pred_check
        _
      $region10: #{tpu_custom_call.1} parent=5 // pred_check_branch
        %155 = sbr.rel (%p152) target = $region12
      $region11: #{tpu_custom_call.1} parent=5 // pred_region
        %s156 = ssub.s32 %s17, 1
        // Predicated region
        $region13: #{tpu_custom_call.1} parent=11 // pred_check
          %p157 = pneg %p64
        $region14: #{tpu_custom_call.1} parent=11 // pred_check_branch
          %159 = sbr.rel (%p157) target = $region16
        $region15: #{tpu_custom_call.1} parent=11 // pred_region
          _
        $region16: #{tpu_custom_call.1} parent=11 // pred_fallthru
          _
      $region12: #{tpu_custom_call.1} parent=5 // pred_fallthru
        _
      %p160 = scmp.lt.s32.totalorder %s17, 2
      // Predicated region
      $region17: #{tpu_custom_call.1} parent=5 // pred_check
        %p161 = pneg %p160
      $region18: #{tpu_custom_call.1} parent=5 // pred_check_branch
        %163 = sbr.rel (%p161) target = $region20
      $region19: #{tpu_custom_call.1} parent=5 // pred_region
        // Predicated region
        $region21: #{tpu_custom_call.1} parent=19 // pred_check
          %p164 = pneg %p37
        $region22: #{tpu_custom_call.1} parent=19 // pred_check_branch
          %166 = sbr.rel (%p164) target = $region24
        $region23: #{tpu_custom_call.1} parent=19 // pred_region
          %p167 = scmp.lt.s32.totalorder %s17, 1
          %s168 = scalar_select %p167, %s17, 1
          %s169 = smul.addr %s168, 54
          %s170 = smul.addr %s169, 8
          %s171 = scalar_lea.vmem %s0, %s170
        $region24: #{tpu_custom_call.1} parent=19 // pred_fallthru
          _
      $region20: #{tpu_custom_call.1} parent=5 // pred_fallthru
        _
      %p172 = scmp.le.s32.totalorder 1, %s17
      %p173 = scmp.lt.s32.totalorder %s17, 3
      %p174 = pnand %p172, %p173
      %p175 = pneg %p174
      // Predicated region
      $region25: #{tpu_custom_call.1} parent=5 // pred_check
        _
      $region26: #{tpu_custom_call.1} parent=5 // pred_check_branch
        %177 = sbr.rel (%p174) target = $region28
      $region27: #{tpu_custom_call.1} parent=5 // pred_region
        %s178 = ssub.s32 %s17, 1
        %p179 = scmp.lt.s32.totalorder %s22, 1
        %s180 = scalar_select %p179, %s22, 1
        %s181 = smul.addr %s180, 54
        %s182 = smul.addr %s181, 8
        %s183 = scalar_lea.vmem %s0, %s182
        %p184 = pneg %p43
        %p185 = pneg %p40
        %p186 = pneg %p64
        %p187 = pneg %p61
        %p188 = pneg %p90
        %p189 = pneg %p87
        %s190 = sand.u32 %s77, 1
        %s191 = scalar_lea.sflag [#allocation4], %s190
        %s192 = sand.u32 %s77, 1
        %s193 = smul.addr %s192, 256
        %s194 = scalar_lea.vmem [#allocation3], %s193
        %p195 = pneg %p116
        %p196 = pneg %p113
        %s197 = sand.u32 %s22, 1
        %s198 = scalar_lea.sflag [#allocation6], %s197
        %s199 = sand.u32 %s103, 1
        %s200 = scalar_lea.vmem [#allocation5], %s199
        %p201 = pneg %p142
        %p202 = pneg %p139
        %s203 = sand.u32 %s22, 1
        %s204 = scalar_lea.sflag [#allocation6], %s203
        %s205 = sand.u32 %s129, 1
        %s206 = scalar_lea.vmem [#allocation7], %s205
        %p207 = scmp.lt.s32.totalorder %s22, 1
        %s208 = scalar_select %p207, %s22, 1
        %s209 = smul.addr %s208, 54
        %s210 = smul.addr %s209, 8
        %s211 = scalar_lea.vmem %s0, %s210
        %v212 = vld [vmem:[%s211] sm:$0xff]
        %v213 = vld [vmem:[%s211 + $0x8] sm:$0xff]
        %v214 = vld [vmem:[%s211 + $0x10] sm:$0x3]
        %v215 = vld [vmem:[%s211 + $0x18] sm:$0xff]
        %v216 = vld [vmem:[%s211 + $0x20] sm:$0xff]
        %v217 = vld [vmem:[%s211 + $0x28] sm:$0x3]
        %v218 = vld [vmem:[%s211 + $0x30] sm:$0xff]
        %v219 = vld [vmem:[%s211 + $0x38] sm:$0xff]
        %v220 = vld [vmem:[%s211 + $0x40] sm:$0x3]
        %v221 = vld [vmem:[%s211 + $0x48] sm:$0xff]
        %v222 = vld [vmem:[%s211 + $0x50] sm:$0xff]
        %v223 = vld [vmem:[%s211 + $0x58] sm:$0x3]
        %v224 = vld [vmem:[%s211 + $0x60] sm:$0xff]
        %v225 = vld [vmem:[%s211 + $0x68] sm:$0xff]
        %v226 = vld [vmem:[%s211 + $0x70] sm:$0x3]
        %v227 = vld [vmem:[%s211 + $0x78] sm:$0xff]
        %v228 = vld [vmem:[%s211 + $0x80] sm:$0xff]
        %v229 = vld [vmem:[%s211 + $0x88] sm:$0x3]
        %v230 = vld [vmem:[%s211 + $0x90] sm:$0xff]
        %v231 = vld [vmem:[%s211 + $0x98] sm:$0xff]
        %v232 = vld [vmem:[%s211 + $0xa0] sm:$0x3]
        %v233 = vld [vmem:[%s211 + $0xa8] sm:$0xff]
        %v234 = vld [vmem:[%s211 + $0xb0] sm:$0xff]
        %v235 = vld [vmem:[%s211 + $0xb8] sm:$0x3]
        %v236 = vld [vmem:[%s211 + $0xc0] sm:$0xff]
        %v237 = vld [vmem:[%s211 + $0xc8] sm:$0xff]
        %v238 = vld [vmem:[%s211 + $0xd0] sm:$0x3]
        %v239 = vld [vmem:[%s211 + $0xd8] sm:$0xff]
        %v240 = vld [vmem:[%s211 + $0xe0] sm:$0xff]
        %v241 = vld [vmem:[%s211 + $0xe8] sm:$0x3]
        %v242 = vld [vmem:[%s211 + $0xf0] sm:$0xff]
        %v243 = vld [vmem:[%s211 + $0xf8] sm:$0xff]
        %v244 = vld [vmem:[%s211 + $0x100] sm:$0x3]
        %v245 = vld [vmem:[%s211 + $0x108] sm:$0xff]
        %v246 = vld [vmem:[%s211 + $0x110] sm:$0xff]
        %v247 = vld [vmem:[%s211 + $0x118] sm:$0x3]
        %v248 = vld [vmem:[%s211 + $0x120] sm:$0xff]
        %v249 = vld [vmem:[%s211 + $0x128] sm:$0xff]
        %v250 = vld [vmem:[%s211 + $0x130] sm:$0x3]
        %v251 = vld [vmem:[%s211 + $0x138] sm:$0xff]
        %v252 = vld [vmem:[%s211 + $0x140] sm:$0xff]
        %v253 = vld [vmem:[%s211 + $0x148] sm:$0x3]
        %v254 = vld [vmem:[%s211 + $0x150] sm:$0xff]
        %v255 = vld [vmem:[%s211 + $0x158] sm:$0xff]
        %v256 = vld [vmem:[%s211 + $0x160] sm:$0x3]
        %v257 = vld [vmem:[%s211 + $0x168] sm:$0xff]
        %v258 = vld [vmem:[%s211 + $0x170] sm:$0xff]
        %v259 = vld [vmem:[%s211 + $0x178] sm:$0x3]
        %v260 = vld [vmem:[%s211 + $0x180] sm:$0xff]
        %v261 = vld [vmem:[%s211 + $0x188] sm:$0xff]
        %v262 = vld [vmem:[%s211 + $0x190] sm:$0x3]
        %v263 = vld [vmem:[%s211 + $0x198] sm:$0xff]
        %v264 = vld [vmem:[%s211 + $0x1a0] sm:$0xff]
        %v265 = vld [vmem:[%s211 + $0x1a8] sm:$0x3]
        %v266 = vmax.f32 %v212, 0.0
        %v267 = vmax.f32 %v213, 0.0
        %v268 = vmax.f32 %v214, 0.0
        %v269 = vmax.f32 %v215, 0.0
        %v270 = vmax.f32 %v216, 0.0
        %v271 = vmax.f32 %v217, 0.0
        %v272 = vmax.f32 %v218, 0.0
        %v273 = vmax.f32 %v219, 0.0
        %v274 = vmax.f32 %v220, 0.0
        %v275 = vmax.f32 %v221, 0.0
        %v276 = vmax.f32 %v222, 0.0
        %v277 = vmax.f32 %v223, 0.0
        %v278 = vmax.f32 %v224, 0.0
        %v279 = vmax.f32 %v225, 0.0
        %v280 = vmax.f32 %v226, 0.0
        %v281 = vmax.f32 %v227, 0.0
        %v282 = vmax.f32 %v228, 0.0
        %v283 = vmax.f32 %v229, 0.0
        %v284 = vmax.f32 %v230, 0.0
        %v285 = vmax.f32 %v231, 0.0
        %v286 = vmax.f32 %v232, 0.0
        %v287 = vmax.f32 %v233, 0.0
        %v288 = vmax.f32 %v234, 0.0
        %v289 = vmax.f32 %v235, 0.0
        %v290 = vmax.f32 %v236, 0.0
        %v291 = vmax.f32 %v237, 0.0
        %v292 = vmax.f32 %v238, 0.0
        %v293 = vmax.f32 %v239, 0.0
        %v294 = vmax.f32 %v240, 0.0
        %v295 = vmax.f32 %v241, 0.0
        %v296 = vmax.f32 %v242, 0.0
        %v297 = vmax.f32 %v243, 0.0
        %v298 = vmax.f32 %v244, 0.0
        %v299 = vmax.f32 %v245, 0.0
        %v300 = vmax.f32 %v246, 0.0
        %v301 = vmax.f32 %v247, 0.0
        %v302 = vmax.f32 %v248, 0.0
        %v303 = vmax.f32 %v249, 0.0
        %v304 = vmax.f32 %v250, 0.0
        %v305 = vmax.f32 %v251, 0.0
        %v306 = vmax.f32 %v252, 0.0
        %v307 = vmax.f32 %v253, 0.0
        %v308 = vmax.f32 %v254, 0.0
        %v309 = vmax.f32 %v255, 0.0
        %v310 = vmax.f32 %v256, 0.0
        %v311 = vmax.f32 %v257, 0.0
        %v312 = vmax.f32 %v258, 0.0
        %v313 = vmax.f32 %v259, 0.0
        %v314 = vmax.f32 %v260, 0.0
        %v315 = vmax.f32 %v261, 0.0
        %v316 = vmax.f32 %v262, 0.0
        %v317 = vmax.f32 %v263, 0.0
        %v318 = vmax.f32 %v264, 0.0
        %v319 = vmax.f32 %v265, 0.0
        %v320 = vld [vmem:[%s1] sm:$0xf]
        %vm321 = vcmask 31744
        %v323 = vsel %vm321, %v266, 0
        %v326 = vsel %vm321, %v267, 0
        %v329 = vsel %vm321, %v269, 0
        %v332 = vsel %vm321, %v270, 0
        %v335 = vsel %vm321, %v272, 0
        %v338 = vsel %vm321, %v273, 0
        %v341 = vsel %vm321, %v275, 0
        %v344 = vsel %vm321, %v276, 0
        %v347 = vsel %vm321, %v278, 0
        %v350 = vsel %vm321, %v279, 0
        %v353 = vsel %vm321, %v281, 0
        %v356 = vsel %vm321, %v282, 0
        %v359 = vsel %vm321, %v284, 0
        %v362 = vsel %vm321, %v285, 0
        %v365 = vsel %vm321, %v287, 0
        %v368 = vsel %vm321, %v288, 0
        %v371 = vsel %vm321, %v290, 0
        %v374 = vsel %vm321, %v291, 0
        %v377 = vsel %vm321, %v293, 0
        %v380 = vsel %vm321, %v294, 0
        %v383 = vsel %vm321, %v296, 0
        %v386 = vsel %vm321, %v297, 0
        %v389 = vsel %vm321, %v299, 0
        %v392 = vsel %vm321, %v300, 0
        %v395 = vsel %vm321, %v302, 0
        %v398 = vsel %vm321, %v303, 0
        %v401 = vsel %vm321, %v305, 0
        %v404 = vsel %vm321, %v306, 0
        %v407 = vsel %vm321, %v308, 0
        %v410 = vsel %vm321, %v309, 0
        %v413 = vsel %vm321, %v311, 0
        %v416 = vsel %vm321, %v312, 0
        %vm418 = vcmask 1043456
        %v420 = vsel %vm418, %v320, 0
        %422 = vmatprep.subr.mxu0 0.0
        %423 = vmatpush1.msra.mxu0 %v420
        %424 = vmatprep.subr.mxu0 0.0
        %425 = vmatpush1.msra.mxu0 0.0
        %426 = vmatprep.subr.mxu0 0.0
        %427 = vmatpush1.msra.mxu0 0.0
        %428 = vmatprep.subr.mxu0 0.0
        %429 = vmatpush1.msra.mxu0 0.0
        %430 = vmatprep.subr.mxu0 0.0
        %431 = vmatpush1.msra.mxu0 0.0
        %432 = vmatprep.subr.mxu0 0.0
        %433 = vmatpush1.msra.mxu0 0.0
        %434 = vmatprep.subr.mxu0 0.0
        %435 = vmatpush1.msra.mxu0 0.0
        %436 = vmatprep.subr.mxu0 0.0
        %437 = vmatpush1.msra.mxu0 0.0
        %438 = vmatprep.subr.mxu0 0.0
        %439 = vmatpush1.msra.mxu0 0.0
        %440 = vmatprep.subr.mxu0 0.0
        %441 = vmatpush1.msra.mxu0 0.0
        %442 = vmatprep.subr.mxu0 0.0
        %443 = vmatpush1.msra.mxu0 0.0
        %444 = vmatprep.subr.mxu0 0.0
        %445 = vmatpush1.msra.mxu0 0.0
        %446 = vmatprep.subr.mxu0 0.0
        %447 = vmatpush1.msra.mxu0 0.0
        %448 = vmatprep.subr.mxu0 0.0
        %449 = vmatpush1.msra.mxu0 0.0
        %450 = vmatprep.subr.mxu0 0.0
        %451 = vmatpush1.msra.mxu0 0.0
        %452 = vmatprep.subr.mxu0 0.0
        %453 = vmatpush1.msra.mxu0 0.0
        %454 = vmatprep.subr.mxu0 0.0
        %455 = vmatpush1.msra.mxu0 0.0
        %456 = vmatprep.subr.mxu0 0.0
        %457 = vmatpush1.msra.mxu0 0.0
        %458 = vmatprep.subr.mxu0 0.0
        %459 = vmatpush1.msra.mxu0 0.0
        %460 = vmatprep.subr.mxu0 0.0
        %461 = vmatpush1.msra.mxu0 0.0
        %462 = vmatprep.subr.mxu0 0.0
        %463 = vmatpush1.msra.mxu0 0.0
        %464 = vmatprep.subr.mxu0 0.0
        %465 = vmatpush1.msra.mxu0 0.0
        %466 = vmatprep.subr.mxu0 0.0
        %467 = vmatpush1.msra.mxu0 0.0
        %468 = vmatprep.subr.mxu0 0.0
        %469 = vmatpush1.msra.mxu0 0.0
        %470 = vmatprep.subr.mxu0 0.0
        %471 = vmatpush1.msra.mxu0 0.0
        %472 = vmatprep.subr.mxu0 0.0
        %473 = vmatpush1.msra.mxu0 0.0
        %474 = vmatprep.subr.mxu0 0.0
        %475 = vmatpush1.msra.mxu0 0.0
        %476 = vmatprep.subr.mxu0 0.0
        %477 = vmatpush1.msra.mxu0 0.0
        %478 = vmatprep.subr.mxu0 0.0
        %479 = vmatpush1.msra.mxu0 0.0
        %480 = vmatprep.subr.mxu0 0.0
        %481 = vmatpush1.msra.mxu0 0.0
        %482 = vmatprep.subr.mxu0 0.0
        %483 = vmatpush1.msra.mxu0 0.0
        %484 = vmatprep.subr.mxu0 0.0
        %485 = vmatpush1.msra.mxu0 0.0
        %486 = vmatprep.mubr.f32.mxu0 0.0
        %487 = vmatmul.mubr.f32.gmra.mrb[0].mxu0 %v323
        %v488 = vpop.f32.mrb[0].mxu0
        %v489 = vadd.f32 0.0, %v488
        %v490 = vpop.f32.mrb[0].mxu0
        %491 = vmatprep.mubr.f32.mxu0 0.0
        %492 = vmatmul.mubr.f32.gmra.mrb[0].mxu0 %v326
        %v493 = vpop.f32.mrb[0].mxu0
        %v494 = vadd.f32 0.0, %v493
        %v495 = vpop.f32.mrb[0].mxu0
        %496 = vmatprep.mubr.f32.mxu0 0.0
        %497 = vmatmul.mubr.f32.gmra.mrb[0].mxu0 %v329
        %v498 = vpop.f32.mrb[0].mxu0
        %v499 = vadd.f32 0.0, %v498
        %v500 = vpop.f32.mrb[0].mxu0
        %501 = vmatprep.mubr.f32.mxu0 0.0
        %502 = vmatmul.mubr.f32.gmra.mrb[0].mxu0 %v332
        %v503 = vpop.f32.mrb[0].mxu0
        %v504 = vadd.f32 0.0, %v503
        %v505 = vpop.f32.mrb[0].mxu0
        %506 = vmatprep.mubr.f32.mxu0 0.0
        %507 = vmatmul.mubr.f32.gmra.mrb[0].mxu0 %v335
        %v508 = vpop.f32.mrb[0].mxu0
        %v509 = vadd.f32 0.0, %v508
        %v510 = vpop.f32.mrb[0].mxu0
        %511 = vmatprep.mubr.f32.mxu0 0.0
        %512 = vmatmul.mubr.f32.gmra.mrb[0].mxu0 %v338
        %v513 = vpop.f32.mrb[0].mxu0
        %v514 = vadd.f32 0.0, %v513
        %v515 = vpop.f32.mrb[0].mxu0
        %516 = vmatprep.mubr.f32.mxu0 0.0
        %517 = vmatmul.mubr.f32.gmra.mrb[0].mxu0 %v341
        %v518 = vpop.f32.mrb[0].mxu0
        %v519 = vadd.f32 0.0, %v518
        %v520 = vpop.f32.mrb[0].mxu0
        %521 = vmatprep.mubr.f32.mxu0 0.0
        %522 = vmatmul.mubr.f32.gmra.mrb[0].mxu0 %v344
        %v523 = vpop.f32.mrb[0].mxu0
        %v524 = vadd.f32 0.0, %v523
        %v525 = vpop.f32.mrb[0].mxu0
        %526 = vmatprep.mubr.f32.mxu0 0.0
        %527 = vmatmul.mubr.f32.gmra.mrb[0].mxu0 %v347
        %v528 = vpop.f32.mrb[0].mxu0
        %v529 = vadd.f32 0.0, %v528
        %v530 = vpop.f32.mrb[0].mxu0
        %531 = vmatprep.mubr.f32.mxu0 0.0
        %532 = vmatmul.mubr.f32.gmra.mrb[0].mxu0 %v350
        %v533 = vpop.f32.mrb[0].mxu0
        %v534 = vadd.f32 0.0, %v533
        %v535 = vpop.f32.mrb[0].mxu0
        %536 = vmatprep.mubr.f32.mxu0 0.0
        %537 = vmatmul.mubr.f32.gmra.mrb[0].mxu0 %v353
        %v538 = vpop.f32.mrb[0].mxu0
        %v539 = vadd.f32 0.0, %v538
        %v540 = vpop.f32.mrb[0].mxu0
        %541 = vmatprep.mubr.f32.mxu0 0.0
        %542 = vmatmul.mubr.f32.gmra.mrb[0].mxu0 %v356
        %v543 = vpop.f32.mrb[0].mxu0
        %v544 = vadd.f32 0.0, %v543
        %v545 = vpop.f32.mrb[0].mxu0
        %546 = vmatprep.mubr.f32.mxu0 0.0
        %547 = vmatmul.mubr.f32.gmra.mrb[0].mxu0 %v359
        %v548 = vpop.f32.mrb[0].mxu0
        %v549 = vadd.f32 0.0, %v548
        %v550 = vpop.f32.mrb[0].mxu0
        %551 = vmatprep.mubr.f32.mxu0 0.0
        %552 = vmatmul.mubr.f32.gmra.mrb[0].mxu0 %v362
        %v553 = vpop.f32.mrb[0].mxu0
        %v554 = vadd.f32 0.0, %v553
        %v555 = vpop.f32.mrb[0].mxu0
        %556 = vmatprep.mubr.f32.mxu0 0.0
        %557 = vmatmul.mubr.f32.gmra.mrb[0].mxu0 %v365
        %v558 = vpop.f32.mrb[0].mxu0
        %v559 = vadd.f32 0.0, %v558
        %v560 = vpop.f32.mrb[0].mxu0
        %561 = vmatprep.mubr.f32.mxu0 0.0
        %562 = vmatmul.mubr.f32.gmra.mrb[0].mxu0 %v368
        %v563 = vpop.f32.mrb[0].mxu0
        %v564 = vadd.f32 0.0, %v563
        %v565 = vpop.f32.mrb[0].mxu0
        %566 = vmatprep.mubr.f32.mxu0 0.0
        %567 = vmatmul.mubr.f32.gmra.mrb[0].mxu0 %v371
        %v568 = vpop.f32.mrb[0].mxu0
        %v569 = vadd.f32 0.0, %v568
        %v570 = vpop.f32.mrb[0].mxu0
        %571 = vmatprep.mubr.f32.mxu0 0.0
        %572 = vmatmul.mubr.f32.gmra.mrb[0].mxu0 %v374
        %v573 = vpop.f32.mrb[0].mxu0
        %v574 = vadd.f32 0.0, %v573
        %v575 = vpop.f32.mrb[0].mxu0
        %576 = vmatprep.mubr.f32.mxu0 0.0
        %577 = vmatmul.mubr.f32.gmra.mrb[0].mxu0 %v377
        %v578 = vpop.f32.mrb[0].mxu0
        %v579 = vadd.f32 0.0, %v578
        %v580 = vpop.f32.mrb[0].mxu0
        %581 = vmatprep.mubr.f32.mxu0 0.0
        %582 = vmatmul.mubr.f32.gmra.mrb[0].mxu0 %v380
        %v583 = vpop.f32.mrb[0].mxu0
        %v584 = vadd.f32 0.0, %v583
        %v585 = vpop.f32.mrb[0].mxu0
        %586 = vmatprep.mubr.f32.mxu0 0.0
        %587 = vmatmul.mubr.f32.gmra.mrb[0].mxu0 %v383
        %v588 = vpop.f32.mrb[0].mxu0
        %v589 = vadd.f32 0.0, %v588
        %v590 = vpop.f32.mrb[0].mxu0
        %591 = vmatprep.mubr.f32.mxu0 0.0
        %592 = vmatmul.mubr.f32.gmra.mrb[0].mxu0 %v386
        %v593 = vpop.f32.mrb[0].mxu0
        %v594 = vadd.f32 0.0, %v593
        %v595 = vpop.f32.mrb[0].mxu0
        %596 = vmatprep.mubr.f32.mxu0 0.0
        %597 = vmatmul.mubr.f32.gmra.mrb[0].mxu0 %v389
        %v598 = vpop.f32.mrb[0].mxu0
        %v599 = vadd.f32 0.0, %v598
        %v600 = vpop.f32.mrb[0].mxu0
        %601 = vmatprep.mubr.f32.mxu0 0.0
        %602 = vmatmul.mubr.f32.gmra.mrb[0].mxu0 %v392
        %v603 = vpop.f32.mrb[0].mxu0
        %v604 = vadd.f32 0.0, %v603
        %v605 = vpop.f32.mrb[0].mxu0
        %606 = vmatprep.mubr.f32.mxu0 0.0
        %607 = vmatmul.mubr.f32.gmra.mrb[0].mxu0 %v395
        %v608 = vpop.f32.mrb[0].mxu0
        %v609 = vadd.f32 0.0, %v608
        %v610 = vpop.f32.mrb[0].mxu0
        %611 = vmatprep.mubr.f32.mxu0 0.0
        %612 = vmatmul.mubr.f32.gmra.mrb[0].mxu0 %v398
        %v613 = vpop.f32.mrb[0].mxu0
        %v614 = vadd.f32 0.0, %v613
        %v615 = vpop.f32.mrb[0].mxu0
        %616 = vmatprep.mubr.f32.mxu0 0.0
        %617 = vmatmul.mubr.f32.gmra.mrb[0].mxu0 %v401
        %v618 = vpop.f32.mrb[0].mxu0
        %v619 = vadd.f32 0.0, %v618
        %v620 = vpop.f32.mrb[0].mxu0
        %621 = vmatprep.mubr.f32.mxu0 0.0
        %622 = vmatmul.mubr.f32.gmra.mrb[0].mxu0 %v404
        %v623 = vpop.f32.mrb[0].mxu0
        %v624 = vadd.f32 0.0, %v623
        %v625 = vpop.f32.mrb[0].mxu0
        %626 = vmatprep.mubr.f32.mxu0 0.0
        %627 = vmatmul.mubr.f32.gmra.mrb[0].mxu0 %v407
        %v628 = vpop.f32.mrb[0].mxu0
        %v629 = vadd.f32 0.0, %v628
        %v630 = vpop.f32.mrb[0].mxu0
        %631 = vmatprep.mubr.f32.mxu0 0.0
        %632 = vmatmul.mubr.f32.gmra.mrb[0].mxu0 %v410
        %v633 = vpop.f32.mrb[0].mxu0
        %v634 = vadd.f32 0.0, %v633
        %v635 = vpop.f32.mrb[0].mxu0
        %636 = vmatprep.mubr.f32.mxu0 0.0
        %637 = vmatmul.mubr.f32.gmra.mrb[0].mxu0 %v413
        %v638 = vpop.f32.mrb[0].mxu0
        %v639 = vadd.f32 0.0, %v638
        %v640 = vpop.f32.mrb[0].mxu0
        %641 = vmatprep.mubr.f32.mxu0 0.0
        %642 = vmatmul.mubr.f32.gmra.mrb[0].mxu0 %v416
        %v643 = vpop.f32.mrb[0].mxu0
        %v644 = vadd.f32 0.0, %v643
        %v645 = vpop.f32.mrb[0].mxu0
        %646 = vdwg.mxu0
        %647 = vst [vmem:[#allocation2] sm:$0xff] %v489
        %648 = vst [vmem:[#allocation2 + $0x8] sm:$0xff] %v494
        %649 = vst [vmem:[#allocation2 + $0x10] sm:$0xff] %v499
        %650 = vst [vmem:[#allocation2 + $0x18] sm:$0xff] %v504
        %651 = vst [vmem:[#allocation2 + $0x20] sm:$0xff] %v509
        %652 = vst [vmem:[#allocation2 + $0x28] sm:$0xff] %v514
        %653 = vst [vmem:[#allocation2 + $0x30] sm:$0xff] %v519
        %654 = vst [vmem:[#allocation2 + $0x38] sm:$0xff] %v524
        %655 = vst [vmem:[#allocation2 + $0x40] sm:$0xff] %v529
        %656 = vst [vmem:[#allocation2 + $0x48] sm:$0xff] %v534
        %657 = vst [vmem:[#allocation2 + $0x50] sm:$0xff] %v539
        %658 = vst [vmem:[#allocation2 + $0x58] sm:$0xff] %v544
        %659 = vst [vmem:[#allocation2 + $0x60] sm:$0xff] %v549
        %660 = vst [vmem:[#allocation2 + $0x68] sm:$0xff] %v554
        %661 = vst [vmem:[#allocation2 + $0x70] sm:$0xff] %v559
        %662 = vst [vmem:[#allocation2 + $0x78] sm:$0xff] %v564
        %663 = vst [vmem:[#allocation2 + $0x80] sm:$0xff] %v569
        %664 = vst [vmem:[#allocation2 + $0x88] sm:$0xff] %v574
        %665 = vst [vmem:[#allocation2 + $0x90] sm:$0xff] %v579
        %666 = vst [vmem:[#allocation2 + $0x98] sm:$0xff] %v584
        %667 = vst [vmem:[#allocation2 + $0xa0] sm:$0xff] %v589
        %668 = vst [vmem:[#allocation2 + $0xa8] sm:$0xff] %v594
        %669 = vst [vmem:[#allocation2 + $0xb0] sm:$0xff] %v599
        %670 = vst [vmem:[#allocation2 + $0xb8] sm:$0xff] %v604
        %671 = vst [vmem:[#allocation2 + $0xc0] sm:$0xff] %v609
        %672 = vst [vmem:[#allocation2 + $0xc8] sm:$0xff] %v614
        %673 = vst [vmem:[#allocation2 + $0xd0] sm:$0xff] %v619
        %674 = vst [vmem:[#allocation2 + $0xd8] sm:$0xff] %v624
        %675 = vst [vmem:[#allocation2 + $0xe0] sm:$0xff] %v629
        %676 = vst [vmem:[#allocation2 + $0xe8] sm:$0xff] %v634
        %677 = vst [vmem:[#allocation2 + $0xf0] sm:$0xff] %v639
        %678 = vst [vmem:[#allocation2 + $0xf8] sm:$0xff] %v644
        %vm695 = vcmask 1046528
        %v696 = vrot.slane %v266, 1
        %v697 = vrot.slane %v267, 1
        %v698 = vsel %vm695, %v696, %v697
        %v699 = vrot.slane %v268, 1
        %v700 = vsel %vm695, %v697, %v699
        %v701 = vrot.slane %v269, 1
        %v702 = vrot.slane %v270, 1
        %v703 = vsel %vm695, %v701, %v702
        %v704 = vrot.slane %v271, 1
        %v705 = vsel %vm695, %v702, %v704
        %v706 = vrot.slane %v272, 1
        %v707 = vrot.slane %v273, 1
        %v708 = vsel %vm695, %v706, %v707
        %v709 = vrot.slane %v274, 1
        %v710 = vsel %vm695, %v707, %v709
        %v711 = vrot.slane %v275, 1
        %v712 = vrot.slane %v276, 1
        %v713 = vsel %vm695, %v711, %v712
        %v714 = vrot.slane %v277, 1
        %v715 = vsel %vm695, %v712, %v714
        %v716 = vrot.slane %v278, 1
        %v717 = vrot.slane %v279, 1
        %v718 = vsel %vm695, %v716, %v717
        %v719 = vrot.slane %v280, 1
        %v720 = vsel %vm695, %v717, %v719
        %v721 = vrot.slane %v281, 1
        %v722 = vrot.slane %v282, 1
        %v723 = vsel %vm695, %v721, %v722
        %v724 = vrot.slane %v283, 1
        %v725 = vsel %vm695, %v722, %v724
        %v726 = vrot.slane %v284, 1
        %v727 = vrot.slane %v285, 1
        %v728 = vsel %vm695, %v726, %v727
        %v729 = vrot.slane %v286, 1
        %v730 = vsel %vm695, %v727, %v729
        %v731 = vrot.slane %v287, 1
        %v732 = vrot.slane %v288, 1
        %v733 = vsel %vm695, %v731, %v732
        %v734 = vrot.slane %v289, 1
        %v735 = vsel %vm695, %v732, %v734
        %v736 = vrot.slane %v290, 1
        %v737 = vrot.slane %v291, 1
        %v738 = vsel %vm695, %v736, %v737
        %v739 = vrot.slane %v292, 1
        %v740 = vsel %vm695, %v737, %v739
        %v741 = vrot.slane %v293, 1
        %v742 = vrot.slane %v294, 1
        %v743 = vsel %vm695, %v741, %v742
        %v744 = vrot.slane %v295, 1
        %v745 = vsel %vm695, %v742, %v744
        %v746 = vrot.slane %v296, 1
        %v747 = vrot.slane %v297, 1
        %v748 = vsel %vm695, %v746, %v747
        %v749 = vrot.slane %v298, 1
        %v750 = vsel %vm695, %v747, %v749
        %v751 = vrot.slane %v299, 1
        %v752 = vrot.slane %v300, 1
        %v753 = vsel %vm695, %v751, %v752
        %v754 = vrot.slane %v301, 1
        %v755 = vsel %vm695, %v752, %v754
        %v756 = vrot.slane %v302, 1
        %v757 = vrot.slane %v303, 1
        %v758 = vsel %vm695, %v756, %v757
        %v759 = vrot.slane %v304, 1
        %v760 = vsel %vm695, %v757, %v759
        %v761 = vrot.slane %v305, 1
        %v762 = vrot.slane %v306, 1
        %v763 = vsel %vm695, %v761, %v762
        %v764 = vrot.slane %v307, 1
        %v765 = vsel %vm695, %v762, %v764
        %v766 = vrot.slane %v308, 1
        %v767 = vrot.slane %v309, 1
        %v768 = vsel %vm695, %v766, %v767
        %v769 = vrot.slane %v310, 1
        %v770 = vsel %vm695, %v767, %v769
        %v771 = vrot.slane %v311, 1
        %v772 = vrot.slane %v312, 1
        %v773 = vsel %vm695, %v771, %v772
        %v774 = vrot.slane %v313, 1
        %v775 = vsel %vm695, %v772, %v774
        %s776 = scalar_lea.vmem %s1, 4
        %v777 = vld [vmem:[%s776] sm:$0xf]
        %v778 = vsel %vm321, %v698, 0
        %v780 = vsel %vm321, %v700, 0
        %v782 = vsel %vm321, %v703, 0
        %v784 = vsel %vm321, %v705, 0
        %v786 = vsel %vm321, %v708, 0
        %v788 = vsel %vm321, %v710, 0
        %v790 = vsel %vm321, %v713, 0
        %v792 = vsel %vm321, %v715, 0
        %v794 = vsel %vm321, %v718, 0
        %v796 = vsel %vm321, %v720, 0
        %v798 = vsel %vm321, %v723, 0
        %v800 = vsel %vm321, %v725, 0
        %v802 = vsel %vm321, %v728, 0
        %v804 = vsel %vm321, %v730, 0
        %v806 = vsel %vm321, %v733, 0
        %v808 = vsel %vm321, %v735, 0
        %v810 = vsel %vm321, %v738, 0
        %v812 = vsel %vm321, %v740, 0
        %v814 = vsel %vm321, %v743, 0
        %v816 = vsel %vm321, %v745, 0
        %v818 = vsel %vm321, %v748, 0
        %v820 = vsel %vm321, %v750, 0
        %v822 = vsel %vm321, %v753, 0
        %v824 = vsel %vm321, %v755, 0
        %v826 = vsel %vm321, %v758, 0
        %v828 = vsel %vm321, %v760, 0
        %v830 = vsel %vm321, %v763, 0
        %v832 = vsel %vm321, %v765, 0
        %v834 = vsel %vm321, %v768, 0
        %v836 = vsel %vm321, %v770, 0
        %v838 = vsel %vm321, %v773, 0
        %v840 = vsel %vm321, %v775, 0
        %v843 = vsel %vm418, %v777, 0
        %845 = vmatprep.subr.mxu0 0.0
        %846 = vmatpush1.msra.mxu0 %v843
        %847 = vmatprep.subr.mxu0 0.0
        %848 = vmatpush1.msra.mxu0 0.0
        %849 = vmatprep.subr.mxu0 0.0
        %850 = vmatpush1.msra.mxu0 0.0
        %851 = vmatprep.subr.mxu0 0.0
        %852 = vmatpush1.msra.mxu0 0.0
        %853 = vmatprep.subr.mxu0 0.0
        %854 = vmatpush1.msra.mxu0 0.0
        %855 = vmatprep.subr.mxu0 0.0
        %856 = vmatpush1.msra.mxu0 0.0
        %857 = vmatprep.subr.mxu0 0.0
        %858 = vmatpush1.msra.mxu0 0.0
        %859 = vmatprep.subr.mxu0 0.0
        %860 = vmatpush1.msra.mxu0 0.0
        %861 = vmatprep.subr.mxu0 0.0
        %862 = vmatpush1.msra.mxu0 0.0
        %863 = vmatprep.subr.mxu0 0.0
        %864 = vmatpush1.msra.mxu0 0.0
        %865 = vmatprep.subr.mxu0 0.0
        %866 = vmatpush1.msra.mxu0 0.0
        %867 = vmatprep.subr.mxu0 0.0
        %868 = vmatpush1.msra.mxu0 0.0
        %869 = vmatprep.subr.mxu0 0.0
        %870 = vmatpush1.msra.mxu0 0.0
        %871 = vmatprep.subr.mxu0 0.0
        %872 = vmatpush1.msra.mxu0 0.0
        %873 = vmatprep.subr.mxu0 0.0
        %874 = vmatpush1.msra.mxu0 0.0
        %875 = vmatprep.subr.mxu0 0.0
        %876 = vmatpush1.msra.mxu0 0.0
        %877 = vmatprep.subr.mxu0 0.0
        %878 = vmatpush1.msra.mxu0 0.0
        %879 = vmatprep.subr.mxu0 0.0
        %880 = vmatpush1.msra.mxu0 0.0
        %881 = vmatprep.subr.mxu0 0.0
        %882 = vmatpush1.msra.mxu0 0.0
        %883 = vmatprep.subr.mxu0 0.0
        %884 = vmatpush1.msra.mxu0 0.0
        %885 = vmatprep.subr.mxu0 0.0
        %886 = vmatpush1.msra.mxu0 0.0
        %887 = vmatprep.subr.mxu0 0.0
        %888 = vmatpush1.msra.mxu0 0.0
        %889 = vmatprep.subr.mxu0 0.0
        %890 = vmatpush1.msra.mxu0 0.0
        %891 = vmatprep.subr.mxu0 0.0
        %892 = vmatpush1.msra.mxu0 0.0
        %893 = vmatprep.subr.mxu0 0.0
        %894 = vmatpush1.msra.mxu0 0.0
        %895 = vmatprep.subr.mxu0 0.0
        %896 = vmatpush1.msra.mxu0 0.0
        %897 = vmatprep.subr.mxu0 0.0
        %898 = vmatpush1.msra.mxu0 0.0
        %899 = vmatprep.subr.mxu0 0.0
        %900 = vmatpush1.msra.mxu0 0.0
        %901 = vmatprep.subr.mxu0 0.0
        %902 = vmatpush1.msra.mxu0 0.0
        %903 = vmatprep.subr.mxu0 0.0
        %904 = vmatpush1.msra.mxu0 0.0
        %905 = vmatprep.subr.mxu0 0.0
        %906 = vmatpush1.msra.mxu0 0.0
        %907 = vmatprep.subr.mxu0 0.0
        %908 = vmatpush1.msra.mxu0 0.0
        %909 = vmatprep.mubr.f32.mxu0 0.0
        %910 = vmatmul.mubr.f32.gmra.mrb[0].mxu0 %v778
        %v911 = vpop.f32.mrb[0].mxu0
        %v912 = vadd.f32 0.0, %v911
        %v913 = vpop.f32.mrb[0].mxu0
        %914 = vmatprep.mubr.f32.mxu0 0.0
        %915 = vmatmul.mubr.f32.gmra.mrb[0].mxu0 %v780
        %v916 = vpop.f32.mrb[0].mxu0
        %v917 = vadd.f32 0.0, %v916
        %v918 = vpop.f32.mrb[0].mxu0
        %919 = vmatprep.mubr.f32.mxu0 0.0
        %920 = vmatmul.mubr.f32.gmra.mrb[0].mxu0 %v782
        %v921 = vpop.f32.mrb[0].mxu0
        %v922 = vadd.f32 0.0, %v921
        %v923 = vpop.f32.mrb[0].mxu0
        %924 = vmatprep.mubr.f32.mxu0 0.0
        %925 = vmatmul.mubr.f32.gmra.mrb[0].mxu0 %v784
        %v926 = vpop.f32.mrb[0].mxu0
        %v927 = vadd.f32 0.0, %v926
        %v928 = vpop.f32.mrb[0].mxu0
        %929 = vmatprep.mubr.f32.mxu0 0.0
        %930 = vmatmul.mubr.f32.gmra.mrb[0].mxu0 %v786
        %v931 = vpop.f32.mrb[0].mxu0
        %v932 = vadd.f32 0.0, %v931
        %v933 = vpop.f32.mrb[0].mxu0
        %934 = vmatprep.mubr.f32.mxu0 0.0
        %935 = vmatmul.mubr.f32.gmra.mrb[0].mxu0 %v788
        %v936 = vpop.f32.mrb[0].mxu0
        %v937 = vadd.f32 0.0, %v936
        %v938 = vpop.f32.mrb[0].mxu0
        %939 = vmatprep.mubr.f32.mxu0 0.0
        %940 = vmatmul.mubr.f32.gmra.mrb[0].mxu0 %v790
        %v941 = vpop.f32.mrb[0].mxu0
        %v942 = vadd.f32 0.0, %v941
        %v943 = vpop.f32.mrb[0].mxu0
        %944 = vmatprep.mubr.f32.mxu0 0.0
        %945 = vmatmul.mubr.f32.gmra.mrb[0].mxu0 %v792
        %v946 = vpop.f32.mrb[0].mxu0
        %v947 = vadd.f32 0.0, %v946
        %v948 = vpop.f32.mrb[0].mxu0
        %949 = vmatprep.mubr.f32.mxu0 0.0
        %950 = vmatmul.mubr.f32.gmra.mrb[0].mxu0 %v794
        %v951 = vpop.f32.mrb[0].mxu0
        %v952 = vadd.f32 0.0, %v951
        %v953 = vpop.f32.mrb[0].mxu0
        %954 = vmatprep.mubr.f32.mxu0 0.0
        %955 = vmatmul.mubr.f32.gmra.mrb[0].mxu0 %v796
        %v956 = vpop.f32.mrb[0].mxu0
        %v957 = vadd.f32 0.0, %v956
        %v958 = vpop.f32.mrb[0].mxu0
        %959 = vmatprep.mubr.f32.mxu0 0.0
        %960 = vmatmul.mubr.f32.gmra.mrb[0].mxu0 %v798
        %v961 = vpop.f32.mrb[0].mxu0
        %v962 = vadd.f32 0.0, %v961
        %v963 = vpop.f32.mrb[0].mxu0
        %964 = vmatprep.mubr.f32.mxu0 0.0
        %965 = vmatmul.mubr.f32.gmra.mrb[0].mxu0 %v800
        %v966 = vpop.f32.mrb[0].mxu0
        %v967 = vadd.f32 0.0, %v966
        %v968 = vpop.f32.mrb[0].mxu0
        %969 = vmatprep.mubr.f32.mxu0 0.0
        %970 = vmatmul.mubr.f32.gmra.mrb[0].mxu0 %v802
        %v971 = vpop.f32.mrb[0].mxu0
        %v972 = vadd.f32 0.0, %v971
        %v973 = vpop.f32.mrb[0].mxu0
        %974 = vmatprep.mubr.f32.mxu0 0.0
        %975 = vmatmul.mubr.f32.gmra.mrb[0].mxu0 %v804
        %v976 = vpop.f32.mrb[0].mxu0
        %v977 = vadd.f32 0.0, %v976
        %v978 = vpop.f32.mrb[0].mxu0
        %979 = vmatprep.mubr.f32.mxu0 0.0
        %980 = vmatmul.mubr.f32.gmra.mrb[0].mxu0 %v806
        %v981 = vpop.f32.mrb[0].mxu0
        %v982 = vadd.f32 0.0, %v981
        %v983 = vpop.f32.mrb[0].mxu0
        %984 = vmatprep.mubr.f32.mxu0 0.0
        %985 = vmatmul.mubr.f32.gmra.mrb[0].mxu0 %v808
        %v986 = vpop.f32.mrb[0].mxu0
        %v987 = vadd.f32 0.0, %v986
        %v988 = vpop.f32.mrb[0].mxu0
        %989 = vmatprep.mubr.f32.mxu0 0.0
        %990 = vmatmul.mubr.f32.gmra.mrb[0].mxu0 %v810
        %v991 = vpop.f32.mrb[0].mxu0
        %v992 = vadd.f32 0.0, %v991
        %v993 = vpop.f32.mrb[0].mxu0
        %994 = vmatprep.mubr.f32.mxu0 0.0
        %995 = vmatmul.mubr.f32.gmra.mrb[0].mxu0 %v812
        %v996 = vpop.f32.mrb[0].mxu0
        %v997 = vadd.f32 0.0, %v996
        %v998 = vpop.f32.mrb[0].mxu0
        %999 = vmatprep.mubr.f32.mxu0 0.0
        %1000 = vmatmul.mubr.f32.gmra.mrb[0].mxu0 %v814
        %v1001 = vpop.f32.mrb[0].mxu0
        %v1002 = vadd.f32 0.0, %v1001
        %v1003 = vpop.f32.mrb[0].mxu0
        %1004 = vmatprep.mubr.f32.mxu0 0.0
        %1005 = vmatmul.mubr.f32.gmra.mrb[0].mxu0 %v816
        %v1006 = vpop.f32.mrb[0].mxu0
        %v1007 = vadd.f32 0.0, %v1006
        %v1008 = vpop.f32.mrb[0].mxu0
        %1009 = vmatprep.mubr.f32.mxu0 0.0
        %1010 = vmatmul.mubr.f32.gmra.mrb[0].mxu0 %v818
        %v1011 = vpop.f32.mrb[0].mxu0
        %v1012 = vadd.f32 0.0, %v1011
        %v1013 = vpop.f32.mrb[0].mxu0
        %1014 = vmatprep.mubr.f32.mxu0 0.0
        %1015 = vmatmul.mubr.f32.gmra.mrb[0].mxu0 %v820
        %v1016 = vpop.f32.mrb[0].mxu0
        %v1017 = vadd.f32 0.0, %v1016
        %v1018 = vpop.f32.mrb[0].mxu0
        %1019 = vmatprep.mubr.f32.mxu0 0.0
        %1020 = vmatmul.mubr.f32.gmra.mrb[0].mxu0 %v822
        %v1021 = vpop.f32.mrb[0].mxu0
        %v1022 = vadd.f32 0.0, %v1021
        %v1023 = vpop.f32.mrb[0].mxu0
        %1024 = vmatprep.mubr.f32.mxu0 0.0
        %1025 = vmatmul.mubr.f32.gmra.mrb[0].mxu0 %v824
        %v1026 = vpop.f32.mrb[0].mxu0
        %v1027 = vadd.f32 0.0, %v1026
        %v1028 = vpop.f32.mrb[0].mxu0
        %1029 = vmatprep.mubr.f32.mxu0 0.0
        %1030 = vmatmul.mubr.f32.gmra.mrb[0].mxu0 %v826
        %v1031 = vpop.f32.mrb[0].mxu0
        %v1032 = vadd.f32 0.0, %v1031
        %v1033 = vpop.f32.mrb[0].mxu0
        %1034 = vmatprep.mubr.f32.mxu0 0.0
        %1035 = vmatmul.mubr.f32.gmra.mrb[0].mxu0 %v828
        %v1036 = vpop.f32.mrb[0].mxu0
        %v1037 = vadd.f32 0.0, %v1036
        %v1038 = vpop.f32.mrb[0].mxu0
        %1039 = vmatprep.mubr.f32.mxu0 0.0
        %1040 = vmatmul.mubr.f32.gmra.mrb[0].mxu0 %v830
        %v1041 = vpop.f32.mrb[0].mxu0
        %v1042 = vadd.f32 0.0, %v1041
        %v1043 = vpop.f32.mrb[0].mxu0
        %1044 = vmatprep.mubr.f32.mxu0 0.0
        %1045 = vmatmul.mubr.f32.gmra.mrb[0].mxu0 %v832
        %v1046 = vpop.f32.mrb[0].mxu0
        %v1047 = vadd.f32 0.0, %v1046
        %v1048 = vpop.f32.mrb[0].mxu0
        %1049 = vmatprep.mubr.f32.mxu0 0.0
        %1050 = vmatmul.mubr.f32.gmra.mrb[0].mxu0 %v834
        %v1051 = vpop.f32.mrb[0].mxu0
        %v1052 = vadd.f32 0.0, %v1051
        %v1053 = vpop.f32.mrb[0].mxu0
        %1054 = vmatprep.mubr.f32.mxu0 0.0
        %1055 = vmatmul.mubr.f32.gmra.mrb[0].mxu0 %v836
        %v1056 = vpop.f32.mrb[0].mxu0
        %v1057 = vadd.f32 0.0, %v1056
        %v1058 = vpop.f32.mrb[0].mxu0
        %1059 = vmatprep.mubr.f32.mxu0 0.0
        %1060 = vmatmul.mubr.f32.gmra.mrb[0].mxu0 %v838
        %v1061 = vpop.f32.mrb[0].mxu0
        %v1062 = vadd.f32 0.0, %v1061
        %v1063 = vpop.f32.mrb[0].mxu0
        %1064 = vmatprep.mubr.f32.mxu0 0.0
        %1065 = vmatmul.mubr.f32.gmra.mrb[0].mxu0 %v840
        %v1066 = vpop.f32.mrb[0].mxu0
        %v1067 = vadd.f32 0.0, %v1066
        %v1068 = vpop.f32.mrb[0].mxu0
        %1069 = vdwg.mxu0
        %v1070 = vld [vmem:[#allocation2] sm:$0xff]
        %v1071 = vld [vmem:[#allocation2 + $0x8] sm:$0xff]
        %v1072 = vld [vmem:[#allocation2 + $0x10] sm:$0xff]
        %v1073 = vld [vmem:[#allocation2 + $0x18] sm:$0xff]
        %v1074 = vld [vmem:[#allocation2 + $0x20] sm:$0xff]
        %v1075 = vld [vmem:[#allocation2 + $0x28] sm:$0xff]
        %v1076 = vld [vmem:[#allocation2 + $0x30] sm:$0xff]
        %v1077 = vld [vmem:[#allocation2 + $0x38] sm:$0xff]
        %v1078 = vld [vmem:[#allocation2 + $0x40] sm:$0xff]
        %v1079 = vld [vmem:[#allocation2 + $0x48] sm:$0xff]
        %v1080 = vld [vmem:[#allocation2 + $0x50] sm:$0xff]
        %v1081 = vld [vmem:[#allocation2 + $0x58] sm:$0xff]
        %v1082 = vld [vmem:[#allocation2 + $0x60] sm:$0xff]
        %v1083 = vld [vmem:[#allocation2 + $0x68] sm:$0xff]
        %v1084 = vld [vmem:[#allocation2 + $0x70] sm:$0xff]
        %v1085 = vld [vmem:[#allocation2 + $0x78] sm:$0xff]
        %v1086 = vld [vmem:[#allocation2 + $0x80] sm:$0xff]
        %v1087 = vld [vmem:[#allocation2 + $0x88] sm:$0xff]
        %v1088 = vld [vmem:[#allocation2 + $0x90] sm:$0xff]
        %v1089 = vld [vmem:[#allocation2 + $0x98] sm:$0xff]
        %v1090 = vld [vmem:[#allocation2 + $0xa0] sm:$0xff]
        %v1091 = vld [vmem:[#allocation2 + $0xa8] sm:$0xff]
        %v1092 = vld [vmem:[#allocation2 + $0xb0] sm:$0xff]
        %v1093 = vld [vmem:[#allocation2 + $0xb8] sm:$0xff]
        %v1094 = vld [vmem:[#allocation2 + $0xc0] sm:$0xff]
        %v1095 = vld [vmem:[#allocation2 + $0xc8] sm:$0xff]
        %v1096 = vld [vmem:[#allocation2 + $0xd0] sm:$0xff]
        %v1097 = vld [vmem:[#allocation2 + $0xd8] sm:$0xff]
        %v1098 = vld [vmem:[#allocation2 + $0xe0] sm:$0xff]
        %v1099 = vld [vmem:[#allocation2 + $0xe8] sm:$0xff]
        %v1100 = vld [vmem:[#allocation2 + $0xf0] sm:$0xff]
        %v1101 = vld [vmem:[#allocation2 + $0xf8] sm:$0xff]
        %v1102 = vadd.f32 %v1070, %v912
        %v1103 = vadd.f32 %v1071, %v917
        %v1104 = vadd.f32 %v1072, %v922
        %v1105 = vadd.f32 %v1073, %v927
        %v1106 = vadd.f32 %v1074, %v932
        %v1107 = vadd.f32 %v1075, %v937
        %v1108 = vadd.f32 %v1076, %v942
        %v1109 = vadd.f32 %v1077, %v947
        %v1110 = vadd.f32 %v1078, %v952
        %v1111 = vadd.f32 %v1079, %v957
        %v1112 = vadd.f32 %v1080, %v962
        %v1113 = vadd.f32 %v1081, %v967
        %v1114 = vadd.f32 %v1082, %v972
        %v1115 = vadd.f32 %v1083, %v977
        %v1116 = vadd.f32 %v1084, %v982
        %v1117 = vadd.f32 %v1085, %v987
        %v1118 = vadd.f32 %v1086, %v992
        %v1119 = vadd.f32 %v1087, %v997
        %v1120 = vadd.f32 %v1088, %v1002
        %v1121 = vadd.f32 %v1089, %v1007
        %v1122 = vadd.f32 %v1090, %v1012
        %v1123 = vadd.f32 %v1091, %v1017
        %v1124 = vadd.f32 %v1092, %v1022
        %v1125 = vadd.f32 %v1093, %v1027
        %v1126 = vadd.f32 %v1094, %v1032
        %v1127 = vadd.f32 %v1095, %v1037
        %v1128 = vadd.f32 %v1096, %v1042
        %v1129 = vadd.f32 %v1097, %v1047
        %v1130 = vadd.f32 %v1098, %v1052
        %v1131 = vadd.f32 %v1099, %v1057
        %v1132 = vadd.f32 %v1100, %v1062
        %v1133 = vadd.f32 %v1101, %v1067
        %1134 = vst [vmem:[#allocation2] sm:$0xff] %v1102
        %1135 = vst [vmem:[#allocation2 + $0x8] sm:$0xff] %v1103
        %1136 = vst [vmem:[#allocation2 + $0x10] sm:$0xff] %v1104
        %1137 = vst [vmem:[#allocation2 + $0x18] sm:$0xff] %v1105
        %1138 = vst [vmem:[#allocation2 + $0x20] sm:$0xff] %v1106
        %1139 = vst [vmem:[#allocation2 + $0x28] sm:$0xff] %v1107
        %1140 = vst [vmem:[#allocation2 + $0x30] sm:$0xff] %v1108
        %1141 = vst [vmem:[#allocation2 + $0x38] sm:$0xff] %v1109
        %1142 = vst [vmem:[#allocation2 + $0x40] sm:$0xff] %v1110
        %1143 = vst [vmem:[#allocation2 + $0x48] sm:$0xff] %v1111
        %1144 = vst [vmem:[#allocation2 + $0x50] sm:$0xff] %v1112
        %1145 = vst [vmem:[#allocation2 + $0x58] sm:$0xff] %v1113
        %1146 = vst [vmem:[#allocation2 + $0x60] sm:$0xff] %v1114
        %1147 = vst [vmem:[#allocation2 + $0x68] sm:$0xff] %v1115
        %1148 = vst [vmem:[#allocation2 + $0x70] sm:$0xff] %v1116
        %1149 = vst [vmem:[#allocation2 + $0x78] sm:$0xff] %v1117
        %1150 = vst [vmem:[#allocation2 + $0x80] sm:$0xff] %v1118
        %1151 = vst [vmem:[#allocation2 + $0x88] sm:$0xff] %v1119
        %1152 = vst [vmem:[#allocation2 + $0x90] sm:$0xff] %v1120
        %1153 = vst [vmem:[#allocation2 + $0x98] sm:$0xff] %v1121
        %1154 = vst [vmem:[#allocation2 + $0xa0] sm:$0xff] %v1122
        %1155 = vst [vmem:[#allocation2 + $0xa8] sm:$0xff] %v1123
        %1156 = vst [vmem:[#allocation2 + $0xb0] sm:$0xff] %v1124
        %1157 = vst [vmem:[#allocation2 + $0xb8] sm:$0xff] %v1125
        %1158 = vst [vmem:[#allocation2 + $0xc0] sm:$0xff] %v1126
        %1159 = vst [vmem:[#allocation2 + $0xc8] sm:$0xff] %v1127
        %1160 = vst [vmem:[#allocation2 + $0xd0] sm:$0xff] %v1128
        %1161 = vst [vmem:[#allocation2 + $0xd8] sm:$0xff] %v1129
        %1162 = vst [vmem:[#allocation2 + $0xe0] sm:$0xff] %v1130
        %1163 = vst [vmem:[#allocation2 + $0xe8] sm:$0xff] %v1131
        %1164 = vst [vmem:[#allocation2 + $0xf0] sm:$0xff] %v1132
        %1165 = vst [vmem:[#allocation2 + $0xf8] sm:$0xff] %v1133
        %vm1166 = vcmask 1045504
        %v1167 = vrot.slane %v266, 2
        %v1168 = vrot.slane %v267, 2
        %v1169 = vsel %vm1166, %v1167, %v1168
        %v1170 = vrot.slane %v268, 2
        %v1171 = vsel %vm1166, %v1168, %v1170
        %v1172 = vrot.slane %v269, 2
        %v1173 = vrot.slane %v270, 2
        %v1174 = vsel %vm1166, %v1172, %v1173
        %v1175 = vrot.slane %v271, 2
        %v1176 = vsel %vm1166, %v1173, %v1175
        %v1177 = vrot.slane %v272, 2
        %v1178 = vrot.slane %v273, 2
        %v1179 = vsel %vm1166, %v1177, %v1178
        %v1180 = vrot.slane %v274, 2
        %v1181 = vsel %vm1166, %v1178, %v1180
        %v1182 = vrot.slane %v275, 2
        %v1183 = vrot.slane %v276, 2
        %v1184 = vsel %vm1166, %v1182, %v1183
        %v1185 = vrot.slane %v277, 2
        %v1186 = vsel %vm1166, %v1183, %v1185
        %v1187 = vrot.slane %v278, 2
        %v1188 = vrot.slane %v279, 2
        %v1189 = vsel %vm1166, %v1187, %v1188
        %v1190 = vrot.slane %v280, 2
        %v1191 = vsel %vm1166, %v1188, %v1190
        %v1192 = vrot.slane %v281, 2
        %v1193 = vrot.slane %v282, 2
        %v1194 = vsel %vm1166, %v1192, %v1193
        %v1195 = vrot.slane %v283, 2
        %v1196 = vsel %vm1166, %v1193, %v1195
        %v1197 = vrot.slane %v284, 2
        %v1198 = vrot.slane %v285, 2
        %v1199 = vsel %vm1166, %v1197, %v1198
        %v1200 = vrot.slane %v286, 2
        %v1201 = vsel %vm1166, %v1198, %v1200
        %v1202 = vrot.slane %v287, 2
        %v1203 = vrot.slane %v288, 2
        %v1204 = vsel %vm1166, %v1202, %v1203
        %v1205 = vrot.slane %v289, 2
        %v1206 = vsel %vm1166, %v1203, %v1205
        %v1207 = vrot.slane %v290, 2
        %v1208 = vrot.slane %v291, 2
        %v1209 = vsel %vm1166, %v1207, %v1208
        %v1210 = vrot.slane %v292, 2
        %v1211 = vsel %vm1166, %v1208, %v1210
        %v1212 = vrot.slane %v293, 2
        %v1213 = vrot.slane %v294, 2
        %v1214 = vsel %vm1166, %v1212, %v1213
        %v1215 = vrot.slane %v295, 2
        %v1216 = vsel %vm1166, %v1213, %v1215
        %v1217 = vrot.slane %v296, 2
        %v1218 = vrot.slane %v297, 2
        %v1219 = vsel %vm1166, %v1217, %v1218
        %v1220 = vrot.slane %v298, 2
        %v1221 = vsel %vm1166, %v1218, %v1220
        %v1222 = vrot.slane %v299, 2
        %v1223 = vrot.slane %v300, 2
        %v1224 = vsel %vm1166, %v1222, %v1223
        %v1225 = vrot.slane %v301, 2
        %v1226 = vsel %vm1166, %v1223, %v1225
        %v1227 = vrot.slane %v302, 2
        %v1228 = vrot.slane %v303, 2
        %v1229 = vsel %vm1166, %v1227, %v1228
        %v1230 = vrot.slane %v304, 2
        %v1231 = vsel %vm1166, %v1228, %v1230
        %v1232 = vrot.slane %v305, 2
        %v1233 = vrot.slane %v306, 2
        %v1234 = vsel %vm1166, %v1232, %v1233
        %v1235 = vrot.slane %v307, 2
        %v1236 = vsel %vm1166, %v1233, %v1235
        %v1237 = vrot.slane %v308, 2
        %v1238 = vrot.slane %v309, 2
        %v1239 = vsel %vm1166, %v1237, %v1238
        %v1240 = vrot.slane %v310, 2
        %v1241 = vsel %vm1166, %v1238, %v1240
        %v1242 = vrot.slane %v311, 2
        %v1243 = vrot.slane %v312, 2
        %v1244 = vsel %vm1166, %v1242, %v1243
        %v1245 = vrot.slane %v313, 2
        %v1246 = vsel %vm1166, %v1243, %v1245
        %s1247 = scalar_lea.vmem %s1, 8
        %v1248 = vld [vmem:[%s1247] sm:$0xf]
        %v1249 = vsel %vm321, %v1169, 0
        %v1251 = vsel %vm321, %v1171, 0
        %v1253 = vsel %vm321, %v1174, 0
        %v1255 = vsel %vm321, %v1176, 0
        %v1257 = vsel %vm321, %v1179, 0
        %v1259 = vsel %vm321, %v1181, 0
        %v1261 = vsel %vm321, %v1184, 0
        %v1263 = vsel %vm321, %v1186, 0
        %v1265 = vsel %vm321, %v1189, 0
        %v1267 = vsel %vm321, %v1191, 0
        %v1269 = vsel %vm321, %v1194, 0
        %v1271 = vsel %vm321, %v1196, 0
        %v1273 = vsel %vm321, %v1199, 0
        %v1275 = vsel %vm321, %v1201, 0
        %v1277 = vsel %vm321, %v1204, 0
        %v1279 = vsel %vm321, %v1206, 0
        %v1281 = vsel %vm321, %v1209, 0
        %v1283 = vsel %vm321, %v1211, 0
        %v1285 = vsel %vm321, %v1214, 0
        %v1287 = vsel %vm321, %v1216, 0
        %v1289 = vsel %vm321, %v1219, 0
        %v1291 = vsel %vm321, %v1221, 0
        %v1293 = vsel %vm321, %v1224, 0
        %v1295 = vsel %vm321, %v1226, 0
        %v1297 = vsel %vm321, %v1229, 0
        %v1299 = vsel %vm321, %v1231, 0
        %v1301 = vsel %vm321, %v1234, 0
        %v1303 = vsel %vm321, %v1236, 0
        %v1305 = vsel %vm321, %v1239, 0
        %v1307 = vsel %vm321, %v1241, 0
        %v1309 = vsel %vm321, %v1244, 0
        %v1311 = vsel %vm321, %v1246, 0
        %v1314 = vsel %vm418, %v1248, 0
        %1316 = vmatprep.subr.mxu0 0.0
        %1317 = vmatpush1.msra.mxu0 %v1314
        %1318 = vmatprep.subr.mxu0 0.0
        %1319 = vmatpush1.msra.mxu0 0.0
        %1320 = vmatprep.subr.mxu0 0.0
        %1321 = vmatpush1.msra.mxu0 0.0
        %1322 = vmatprep.subr.mxu0 0.0
        %1323 = vmatpush1.msra.mxu0 0.0
        %1324 = vmatprep.subr.mxu0 0.0
        %1325 = vmatpush1.msra.mxu0 0.0
        %1326 = vmatprep.subr.mxu0 0.0
        %1327 = vmatpush1.msra.mxu0 0.0
        %1328 = vmatprep.subr.mxu0 0.0
        %1329 = vmatpush1.msra.mxu0 0.0
        %1330 = vmatprep.subr.mxu0 0.0
        %1331 = vmatpush1.msra.mxu0 0.0
        %1332 = vmatprep.subr.mxu0 0.0
        %1333 = vmatpush1.msra.mxu0 0.0
        %1334 = vmatprep.subr.mxu0 0.0
        %1335 = vmatpush1.msra.mxu0 0.0
        %1336 = vmatprep.subr.mxu0 0.0
        %1337 = vmatpush1.msra.mxu0 0.0
        %1338 = vmatprep.subr.mxu0 0.0
        %1339 = vmatpush1.msra.mxu0 0.0
        %1340 = vmatprep.subr.mxu0 0.0
        %1341 = vmatpush1.msra.mxu0 0.0
        %1342 = vmatprep.subr.mxu0 0.0
        %1343 = vmatpush1.msra.mxu0 0.0
        %1344 = vmatprep.subr.mxu0 0.0
        %1345 = vmatpush1.msra.mxu0 0.0
        %1346 = vmatprep.subr.mxu0 0.0
        %1347 = vmatpush1.msra.mxu0 0.0
        %1348 = vmatprep.subr.mxu0 0.0
        %1349 = vmatpush1.msra.mxu0 0.0
        %1350 = vmatprep.subr.mxu0 0.0
        %1351 = vmatpush1.msra.mxu0 0.0
        %1352 = vmatprep.subr.mxu0 0.0
        %1353 = vmatpush1.msra.mxu0 0.0
        %1354 = vmatprep.subr.mxu0 0.0
        %1355 = vmatpush1.msra.mxu0 0.0
        %1356 = vmatprep.subr.mxu0 0.0
        %1357 = vmatpush1.msra.mxu0 0.0
        %1358 = vmatprep.subr.mxu0 0.0
        %1359 = vmatpush1.msra.mxu0 0.0
        %1360 = vmatprep.subr.mxu0 0.0
        %1361 = vmatpush1.msra.mxu0 0.0
        %1362 = vmatprep.subr.mxu0 0.0
        %1363 = vmatpush1.msra.mxu0 0.0
        %1364 = vmatprep.subr.mxu0 0.0
        %1365 = vmatpush1.msra.mxu0 0.0
        %1366 = vmatprep.subr.mxu0 0.0
        %1367 = vmatpush1.msra.mxu0 0.0
        %1368 = vmatprep.subr.mxu0 0.0
        %1369 = vmatpush1.msra.mxu0 0.0
        %1370 = vmatprep.subr.mxu0 0.0
        %1371 = vmatpush1.msra.mxu0 0.0
        %1372 = vmatprep.subr.mxu0 0.0
        %1373 = vmatpush1.msra.mxu0 0.0
        %1374 = vmatprep.subr.mxu0 0.0
        %1375 = vmatpush1.msra.mxu0 0.0
        %1376 = vmatprep.subr.mxu0 0.0
        %1377 = vmatpush1.msra.mxu0 0.0
        %1378 = vmatprep.subr.mxu0 0.0
        %1379 = vmatpush1.msra.mxu0 0.0
        %1380 = vmatprep.mubr.f32.mxu0 0.0
        %1381 = vmatmul.mubr.f32.gmra.mrb[0].mxu0 %v1249
        %v1382 = vpop.f32.mrb[0].mxu0
        %v1383 = vadd.f32 0.0, %v1382
        %v1384 = vpop.f32.mrb[0].mxu0
        %1385 = vmatprep.mubr.f32.mxu0 0.0
        %1386 = vmatmul.mubr.f32.gmra.mrb[0].mxu0 %v1251
        %v1387 = vpop.f32.mrb[0].mxu0
        %v1388 = vadd.f32 0.0, %v1387
        %v1389 = vpop.f32.mrb[0].mxu0
        %1390 = vmatprep.mubr.f32.mxu0 0.0
        %1391 = vmatmul.mubr.f32.gmra.mrb[0].mxu0 %v1253
        %v1392 = vpop.f32.mrb[0].mxu0
        %v1393 = vadd.f32 0.0, %v1392
        %v1394 = vpop.f32.mrb[0].mxu0
        %1395 = vmatprep.mubr.f32.mxu0 0.0
        %1396 = vmatmul.mubr.f32.gmra.mrb[0].mxu0 %v1255
        %v1397 = vpop.f32.mrb[0].mxu0
        %v1398 = vadd.f32 0.0, %v1397
        %v1399 = vpop.f32.mrb[0].mxu0
        %1400 = vmatprep.mubr.f32.mxu0 0.0
        %1401 = vmatmul.mubr.f32.gmra.mrb[0].mxu0 %v1257
        %v1402 = vpop.f32.mrb[0].mxu0
        %v1403 = vadd.f32 0.0, %v1402
        %v1404 = vpop.f32.mrb[0].mxu0
        %1405 = vmatprep.mubr.f32.mxu0 0.0
        %1406 = vmatmul.mubr.f32.gmra.mrb[0].mxu0 %v1259
        %v1407 = vpop.f32.mrb[0].mxu0
        %v1408 = vadd.f32 0.0, %v1407
        %v1409 = vpop.f32.mrb[0].mxu0
        %1410 = vmatprep.mubr.f32.mxu0 0.0
        %1411 = vmatmul.mubr.f32.gmra.mrb[0].mxu0 %v1261
        %v1412 = vpop.f32.mrb[0].mxu0
        %v1413 = vadd.f32 0.0, %v1412
        %v1414 = vpop.f32.mrb[0].mxu0
        %1415 = vmatprep.mubr.f32.mxu0 0.0
        %1416 = vmatmul.mubr.f32.gmra.mrb[0].mxu0 %v1263
        %v1417 = vpop.f32.mrb[0].mxu0
        %v1418 = vadd.f32 0.0, %v1417
        %v1419 = vpop.f32.mrb[0].mxu0
        %1420 = vmatprep.mubr.f32.mxu0 0.0
        %1421 = vmatmul.mubr.f32.gmra.mrb[0].mxu0 %v1265
        %v1422 = vpop.f32.mrb[0].mxu0
        %v1423 = vadd.f32 0.0, %v1422
        %v1424 = vpop.f32.mrb[0].mxu0
        %1425 = vmatprep.mubr.f32.mxu0 0.0
        %1426 = vmatmul.mubr.f32.gmra.mrb[0].mxu0 %v1267
        %v1427 = vpop.f32.mrb[0].mxu0
        %v1428 = vadd.f32 0.0, %v1427
        %v1429 = vpop.f32.mrb[0].mxu0
        %1430 = vmatprep.mubr.f32.mxu0 0.0
        %1431 = vmatmul.mubr.f32.gmra.mrb[0].mxu0 %v1269
        %v1432 = vpop.f32.mrb[0].mxu0
        %v1433 = vadd.f32 0.0, %v1432
        %v1434 = vpop.f32.mrb[0].mxu0
        %1435 = vmatprep.mubr.f32.mxu0 0.0
        %1436 = vmatmul.mubr.f32.gmra.mrb[0].mxu0 %v1271
        %v1437 = vpop.f32.mrb[0].mxu0
        %v1438 = vadd.f32 0.0, %v1437
        %v1439 = vpop.f32.mrb[0].mxu0
        %1440 = vmatprep.mubr.f32.mxu0 0.0
        %1441 = vmatmul.mubr.f32.gmra.mrb[0].mxu0 %v1273
        %v1442 = vpop.f32.mrb[0].mxu0
        %v1443 = vadd.f32 0.0, %v1442
        %v1444 = vpop.f32.mrb[0].mxu0
        %1445 = vmatprep.mubr.f32.mxu0 0.0
        %1446 = vmatmul.mubr.f32.gmra.mrb[0].mxu0 %v1275
        %v1447 = vpop.f32.mrb[0].mxu0
        %v1448 = vadd.f32 0.0, %v1447
        %v1449 = vpop.f32.mrb[0].mxu0
        %1450 = vmatprep.mubr.f32.mxu0 0.0
        %1451 = vmatmul.mubr.f32.gmra.mrb[0].mxu0 %v1277
        %v1452 = vpop.f32.mrb[0].mxu0
        %v1453 = vadd.f32 0.0, %v1452
        %v1454 = vpop.f32.mrb[0].mxu0
        %1455 = vmatprep.mubr.f32.mxu0 0.0
        %1456 = vmatmul.mubr.f32.gmra.mrb[0].mxu0 %v1279
        %v1457 = vpop.f32.mrb[0].mxu0
        %v1458 = vadd.f32 0.0, %v1457
        %v1459 = vpop.f32.mrb[0].mxu0
        %1460 = vmatprep.mubr.f32.mxu0 0.0
        %1461 = vmatmul.mubr.f32.gmra.mrb[0].mxu0 %v1281
        %v1462 = vpop.f32.mrb[0].mxu0
        %v1463 = vadd.f32 0.0, %v1462
        %v1464 = vpop.f32.mrb[0].mxu0
        %1465 = vmatprep.mubr.f32.mxu0 0.0
        %1466 = vmatmul.mubr.f32.gmra.mrb[0].mxu0 %v1283
        %v1467 = vpop.f32.mrb[0].mxu0
        %v1468 = vadd.f32 0.0, %v1467
        %v1469 = vpop.f32.mrb[0].mxu0
        %1470 = vmatprep.mubr.f32.mxu0 0.0
        %1471 = vmatmul.mubr.f32.gmra.mrb[0].mxu0 %v1285
        %v1472 = vpop.f32.mrb[0].mxu0
        %v1473 = vadd.f32 0.0, %v1472
        %v1474 = vpop.f32.mrb[0].mxu0
        %1475 = vmatprep.mubr.f32.mxu0 0.0
        %1476 = vmatmul.mubr.f32.gmra.mrb[0].mxu0 %v1287
        %v1477 = vpop.f32.mrb[0].mxu0
        %v1478 = vadd.f32 0.0, %v1477
        %v1479 = vpop.f32.mrb[0].mxu0
        %1480 = vmatprep.mubr.f32.mxu0 0.0
        %1481 = vmatmul.mubr.f32.gmra.mrb[0].mxu0 %v1289
        %v1482 = vpop.f32.mrb[0].mxu0
        %v1483 = vadd.f32 0.0, %v1482
        %v1484 = vpop.f32.mrb[0].mxu0
        %1485 = vmatprep.mubr.f32.mxu0 0.0
        %1486 = vmatmul.mubr.f32.gmra.mrb[0].mxu0 %v1291
        %v1487 = vpop.f32.mrb[0].mxu0
        %v1488 = vadd.f32 0.0, %v1487
        %v1489 = vpop.f32.mrb[0].mxu0
        %1490 = vmatprep.mubr.f32.mxu0 0.0
        %1491 = vmatmul.mubr.f32.gmra.mrb[0].mxu0 %v1293
        %v1492 = vpop.f32.mrb[0].mxu0
        %v1493 = vadd.f32 0.0, %v1492
        %v1494 = vpop.f32.mrb[0].mxu0
        %1495 = vmatprep.mubr.f32.mxu0 0.0
        %1496 = vmatmul.mubr.f32.gmra.mrb[0].mxu0 %v1295
        %v1497 = vpop.f32.mrb[0].mxu0
        %v1498 = vadd.f32 0.0, %v1497
        %v1499 = vpop.f32.mrb[0].mxu0
        %1500 = vmatprep.mubr.f32.mxu0 0.0
        %1501 = vmatmul.mubr.f32.gmra.mrb[0].mxu0 %v1297
        %v1502 = vpop.f32.mrb[0].mxu0
        %v1503 = vadd.f32 0.0, %v1502
        %v1504 = vpop.f32.mrb[0].mxu0
        %1505 = vmatprep.mubr.f32.mxu0 0.0
        %1506 = vmatmul.mubr.f32.gmra.mrb[0].mxu0 %v1299
        %v1507 = vpop.f32.mrb[0].mxu0
        %v1508 = vadd.f32 0.0, %v1507
        %v1509 = vpop.f32.mrb[0].mxu0
        %1510 = vmatprep.mubr.f32.mxu0 0.0
        %1511 = vmatmul.mubr.f32.gmra.mrb[0].mxu0 %v1301
        %v1512 = vpop.f32.mrb[0].mxu0
        %v1513 = vadd.f32 0.0, %v1512
        %v1514 = vpop.f32.mrb[0].mxu0
        %1515 = vmatprep.mubr.f32.mxu0 0.0
        %1516 = vmatmul.mubr.f32.gmra.mrb[0].mxu0 %v1303
        %v1517 = vpop.f32.mrb[0].mxu0
        %v1518 = vadd.f32 0.0, %v1517
        %v1519 = vpop.f32.mrb[0].mxu0
        %1520 = vmatprep.mubr.f32.mxu0 0.0
        %1521 = vmatmul.mubr.f32.gmra.mrb[0].mxu0 %v1305
        %v1522 = vpop.f32.mrb[0].mxu0
        %v1523 = vadd.f32 0.0, %v1522
        %v1524 = vpop.f32.mrb[0].mxu0
        %1525 = vmatprep.mubr.f32.mxu0 0.0
        %1526 = vmatmul.mubr.f32.gmra.mrb[0].mxu0 %v1307
        %v1527 = vpop.f32.mrb[0].mxu0
        %v1528 = vadd.f32 0.0, %v1527
        %v1529 = vpop.f32.mrb[0].mxu0
        %1530 = vmatprep.mubr.f32.mxu0 0.0
        %1531 = vmatmul.mubr.f32.gmra.mrb[0].mxu0 %v1309
        %v1532 = vpop.f32.mrb[0].mxu0
        %v1533 = vadd.f32 0.0, %v1532
        %v1534 = vpop.f32.mrb[0].mxu0
        %1535 = vmatprep.mubr.f32.mxu0 0.0
        %1536 = vmatmul.mubr.f32.gmra.mrb[0].mxu0 %v1311
        %v1537 = vpop.f32.mrb[0].mxu0
        %v1538 = vadd.f32 0.0, %v1537
        %v1539 = vpop.f32.mrb[0].mxu0
        %1540 = vdwg.mxu0
        %v1541 = vld [vmem:[#allocation2] sm:$0xff]
        %v1542 = vld [vmem:[#allocation2 + $0x8] sm:$0xff]
        %v1543 = vld [vmem:[#allocation2 + $0x10] sm:$0xff]
        %v1544 = vld [vmem:[#allocation2 + $0x18] sm:$0xff]
        %v1545 = vld [vmem:[#allocation2 + $0x20] sm:$0xff]
        %v1546 = vld [vmem:[#allocation2 + $0x28] sm:$0xff]
        %v1547 = vld [vmem:[#allocation2 + $0x30] sm:$0xff]
        %v1548 = vld [vmem:[#allocation2 + $0x38] sm:$0xff]
        %v1549 = vld [vmem:[#allocation2 + $0x40] sm:$0xff]
        %v1550 = vld [vmem:[#allocation2 + $0x48] sm:$0xff]
        %v1551 = vld [vmem:[#allocation2 + $0x50] sm:$0xff]
        %v1552 = vld [vmem:[#allocation2 + $0x58] sm:$0xff]
        %v1553 = vld [vmem:[#allocation2 + $0x60] sm:$0xff]
        %v1554 = vld [vmem:[#allocation2 + $0x68] sm:$0xff]
        %v1555 = vld [vmem:[#allocation2 + $0x70] sm:$0xff]
        %v1556 = vld [vmem:[#allocation2 + $0x78] sm:$0xff]
        %v1557 = vld [vmem:[#allocation2 + $0x80] sm:$0xff]
        %v1558 = vld [vmem:[#allocation2 + $0x88] sm:$0xff]
        %v1559 = vld [vmem:[#allocation2 + $0x90] sm:$0xff]
        %v1560 = vld [vmem:[#allocation2 + $0x98] sm:$0xff]
        %v1561 = vld [vmem:[#allocation2 + $0xa0] sm:$0xff]
        %v1562 = vld [vmem:[#allocation2 + $0xa8] sm:$0xff]
        %v1563 = vld [vmem:[#allocation2 + $0xb0] sm:$0xff]
        %v1564 = vld [vmem:[#allocation2 + $0xb8] sm:$0xff]
        %v1565 = vld [vmem:[#allocation2 + $0xc0] sm:$0xff]
        %v1566 = vld [vmem:[#allocation2 + $0xc8] sm:$0xff]
        %v1567 = vld [vmem:[#allocation2 + $0xd0] sm:$0xff]
        %v1568 = vld [vmem:[#allocation2 + $0xd8] sm:$0xff]
        %v1569 = vld [vmem:[#allocation2 + $0xe0] sm:$0xff]
        %v1570 = vld [vmem:[#allocation2 + $0xe8] sm:$0xff]
        %v1571 = vld [vmem:[#allocation2 + $0xf0] sm:$0xff]
        %v1572 = vld [vmem:[#allocation2 + $0xf8] sm:$0xff]
        %v1573 = vadd.f32 %v1541, %v1383
        %v1574 = vadd.f32 %v1542, %v1388
        %v1575 = vadd.f32 %v1543, %v1393
        %v1576 = vadd.f32 %v1544, %v1398
        %v1577 = vadd.f32 %v1545, %v1403
        %v1578 = vadd.f32 %v1546, %v1408
        %v1579 = vadd.f32 %v1547, %v1413
        %v1580 = vadd.f32 %v1548, %v1418
        %v1581 = vadd.f32 %v1549, %v1423
        %v1582 = vadd.f32 %v1550, %v1428
        %v1583 = vadd.f32 %v1551, %v1433
        %v1584 = vadd.f32 %v1552, %v1438
        %v1585 = vadd.f32 %v1553, %v1443
        %v1586 = vadd.f32 %v1554, %v1448
        %v1587 = vadd.f32 %v1555, %v1453
        %v1588 = vadd.f32 %v1556, %v1458
        %v1589 = vadd.f32 %v1557, %v1463
        %v1590 = vadd.f32 %v1558, %v1468
        %v1591 = vadd.f32 %v1559, %v1473
        %v1592 = vadd.f32 %v1560, %v1478
        %v1593 = vadd.f32 %v1561, %v1483
        %v1594 = vadd.f32 %v1562, %v1488
        %v1595 = vadd.f32 %v1563, %v1493
        %v1596 = vadd.f32 %v1564, %v1498
        %v1597 = vadd.f32 %v1565, %v1503
        %v1598 = vadd.f32 %v1566, %v1508
        %v1599 = vadd.f32 %v1567, %v1513
        %v1600 = vadd.f32 %v1568, %v1518
        %v1601 = vadd.f32 %v1569, %v1523
        %v1602 = vadd.f32 %v1570, %v1528
        %v1603 = vadd.f32 %v1571, %v1533
        %v1604 = vadd.f32 %v1572, %v1538
        %1605 = vst [vmem:[#allocation2] sm:$0xff] %v1573
        %1606 = vst [vmem:[#allocation2 + $0x8] sm:$0xff] %v1574
        %1607 = vst [vmem:[#allocation2 + $0x10] sm:$0xff] %v1575
        %1608 = vst [vmem:[#allocation2 + $0x18] sm:$0xff] %v1576
        %1609 = vst [vmem:[#allocation2 + $0x20] sm:$0xff] %v1577
        %1610 = vst [vmem:[#allocation2 + $0x28] sm:$0xff] %v1578
        %1611 = vst [vmem:[#allocation2 + $0x30] sm:$0xff] %v1579
        %1612 = vst [vmem:[#allocation2 + $0x38] sm:$0xff] %v1580
        %1613 = vst [vmem:[#allocation2 + $0x40] sm:$0xff] %v1581
        %1614 = vst [vmem:[#allocation2 + $0x48] sm:$0xff] %v1582
        %1615 = vst [vmem:[#allocation2 + $0x50] sm:$0xff] %v1583
        %1616 = vst [vmem:[#allocation2 + $0x58] sm:$0xff] %v1584
        %1617 = vst [vmem:[#allocation2 + $0x60] sm:$0xff] %v1585
        %1618 = vst [vmem:[#allocation2 + $0x68] sm:$0xff] %v1586
        %1619 = vst [vmem:[#allocation2 + $0x70] sm:$0xff] %v1587
        %1620 = vst [vmem:[#allocation2 + $0x78] sm:$0xff] %v1588
        %1621 = vst [vmem:[#allocation2 + $0x80] sm:$0xff] %v1589
        %1622 = vst [vmem:[#allocation2 + $0x88] sm:$0xff] %v1590
        %1623 = vst [vmem:[#allocation2 + $0x90] sm:$0xff] %v1591
        %1624 = vst [vmem:[#allocation2 + $0x98] sm:$0xff] %v1592
        %1625 = vst [vmem:[#allocation2 + $0xa0] sm:$0xff] %v1593
        %1626 = vst [vmem:[#allocation2 + $0xa8] sm:$0xff] %v1594
        %1627 = vst [vmem:[#allocation2 + $0xb0] sm:$0xff] %v1595
        %1628 = vst [vmem:[#allocation2 + $0xb8] sm:$0xff] %v1596
        %1629 = vst [vmem:[#allocation2 + $0xc0] sm:$0xff] %v1597
        %1630 = vst [vmem:[#allocation2 + $0xc8] sm:$0xff] %v1598
        %1631 = vst [vmem:[#allocation2 + $0xd0] sm:$0xff] %v1599
        %1632 = vst [vmem:[#allocation2 + $0xd8] sm:$0xff] %v1600
        %1633 = vst [vmem:[#allocation2 + $0xe0] sm:$0xff] %v1601
        %1634 = vst [vmem:[#allocation2 + $0xe8] sm:$0xff] %v1602
        %1635 = vst [vmem:[#allocation2 + $0xf0] sm:$0xff] %v1603
        %1636 = vst [vmem:[#allocation2 + $0xf8] sm:$0xff] %v1604
        %s1637 = scalar_lea.vmem %s1, 12
        %v1638 = vld [vmem:[%s1637] sm:$0xf]
        %v1640 = vsel %vm321, %v314, 0
        %v1643 = vsel %vm321, %v315, 0
        %v1646 = vsel %vm418, %v1638, 0
        %1648 = vmatprep.subr.mxu0 0.0
        %1649 = vmatpush1.msra.mxu0 %v1646
        %1650 = vmatprep.subr.mxu0 0.0
        %1651 = vmatpush1.msra.mxu0 0.0
        %1652 = vmatprep.subr.mxu0 0.0
        %1653 = vmatpush1.msra.mxu0 0.0
        %1654 = vmatprep.subr.mxu0 0.0
        %1655 = vmatpush1.msra.mxu0 0.0
        %1656 = vmatprep.subr.mxu0 0.0
        %1657 = vmatpush1.msra.mxu0 0.0
        %1658 = vmatprep.subr.mxu0 0.0
        %1659 = vmatpush1.msra.mxu0 0.0
        %1660 = vmatprep.subr.mxu0 0.0
        %1661 = vmatpush1.msra.mxu0 0.0
        %1662 = vmatprep.subr.mxu0 0.0
        %1663 = vmatpush1.msra.mxu0 0.0
        %1664 = vmatprep.subr.mxu0 0.0
        %1665 = vmatpush1.msra.mxu0 0.0
        %1666 = vmatprep.subr.mxu0 0.0
        %1667 = vmatpush1.msra.mxu0 0.0
        %1668 = vmatprep.subr.mxu0 0.0
        %1669 = vmatpush1.msra.mxu0 0.0
        %1670 = vmatprep.subr.mxu0 0.0
        %1671 = vmatpush1.msra.mxu0 0.0
        %1672 = vmatprep.subr.mxu0 0.0
        %1673 = vmatpush1.msra.mxu0 0.0
        %1674 = vmatprep.subr.mxu0 0.0
        %1675 = vmatpush1.msra.mxu0 0.0
        %1676 = vmatprep.subr.mxu0 0.0
        %1677 = vmatpush1.msra.mxu0 0.0
        %1678 = vmatprep.subr.mxu0 0.0
        %1679 = vmatpush1.msra.mxu0 0.0
        %1680 = vmatprep.subr.mxu0 0.0
        %1681 = vmatpush1.msra.mxu0 0.0
        %1682 = vmatprep.subr.mxu0 0.0
        %1683 = vmatpush1.msra.mxu0 0.0
        %1684 = vmatprep.subr.mxu0 0.0
        %1685 = vmatpush1.msra.mxu0 0.0
        %1686 = vmatprep.subr.mxu0 0.0
        %1687 = vmatpush1.msra.mxu0 0.0
        %1688 = vmatprep.subr.mxu0 0.0
        %1689 = vmatpush1.msra.mxu0 0.0
        %1690 = vmatprep.subr.mxu0 0.0
        %1691 = vmatpush1.msra.mxu0 0.0
        %1692 = vmatprep.subr.mxu0 0.0
        %1693 = vmatpush1.msra.mxu0 0.0
        %1694 = vmatprep.subr.mxu0 0.0
        %1695 = vmatpush1.msra.mxu0 0.0
        %1696 = vmatprep.subr.mxu0 0.0
        %1697 = vmatpush1.msra.mxu0 0.0
        %1698 = vmatprep.subr.mxu0 0.0
        %1699 = vmatpush1.msra.mxu0 0.0
        %1700 = vmatprep.subr.mxu0 0.0
        %1701 = vmatpush1.msra.mxu0 0.0
        %1702 = vmatprep.subr.mxu0 0.0
        %1703 = vmatpush1.msra.mxu0 0.0
        %1704 = vmatprep.subr.mxu0 0.0
        %1705 = vmatpush1.msra.mxu0 0.0
        %1706 = vmatprep.subr.mxu0 0.0
        %1707 = vmatpush1.msra.mxu0 0.0
        %1708 = vmatprep.subr.mxu0 0.0
        %1709 = vmatpush1.msra.mxu0 0.0
        %1710 = vmatprep.subr.mxu0 0.0
        %1711 = vmatpush1.msra.mxu0 0.0
        %1712 = vmatprep.mubr.f32.mxu0 0.0
        %1713 = vmatmul.mubr.f32.gmra.mrb[0].mxu0 %v329
        %v1714 = vpop.f32.mrb[0].mxu0
        %v1715 = vadd.f32 0.0, %v1714
        %v1716 = vpop.f32.mrb[0].mxu0
        %1717 = vmatprep.mubr.f32.mxu0 0.0
        %1718 = vmatmul.mubr.f32.gmra.mrb[0].mxu0 %v332
        %v1719 = vpop.f32.mrb[0].mxu0
        %v1720 = vadd.f32 0.0, %v1719
        %v1721 = vpop.f32.mrb[0].mxu0
        %1722 = vmatprep.mubr.f32.mxu0 0.0
        %1723 = vmatmul.mubr.f32.gmra.mrb[0].mxu0 %v335
        %v1724 = vpop.f32.mrb[0].mxu0
        %v1725 = vadd.f32 0.0, %v1724
        %v1726 = vpop.f32.mrb[0].mxu0
        %1727 = vmatprep.mubr.f32.mxu0 0.0
        %1728 = vmatmul.mubr.f32.gmra.mrb[0].mxu0 %v338
        %v1729 = vpop.f32.mrb[0].mxu0
        %v1730 = vadd.f32 0.0, %v1729
        %v1731 = vpop.f32.mrb[0].mxu0
        %1732 = vmatprep.mubr.f32.mxu0 0.0
        %1733 = vmatmul.mubr.f32.gmra.mrb[0].mxu0 %v341
        %v1734 = vpop.f32.mrb[0].mxu0
        %v1735 = vadd.f32 0.0, %v1734
        %v1736 = vpop.f32.mrb[0].mxu0
        %1737 = vmatprep.mubr.f32.mxu0 0.0
        %1738 = vmatmul.mubr.f32.gmra.mrb[0].mxu0 %v344
        %v1739 = vpop.f32.mrb[0].mxu0
        %v1740 = vadd.f32 0.0, %v1739
        %v1741 = vpop.f32.mrb[0].mxu0
        %1742 = vmatprep.mubr.f32.mxu0 0.0
        %1743 = vmatmul.mubr.f32.gmra.mrb[0].mxu0 %v347
        %v1744 = vpop.f32.mrb[0].mxu0
        %v1745 = vadd.f32 0.0, %v1744
        %v1746 = vpop.f32.mrb[0].mxu0
        %1747 = vmatprep.mubr.f32.mxu0 0.0
        %1748 = vmatmul.mubr.f32.gmra.mrb[0].mxu0 %v350
        %v1749 = vpop.f32.mrb[0].mxu0
        %v1750 = vadd.f32 0.0, %v1749
        %v1751 = vpop.f32.mrb[0].mxu0
        %1752 = vmatprep.mubr.f32.mxu0 0.0
        %1753 = vmatmul.mubr.f32.gmra.mrb[0].mxu0 %v353
        %v1754 = vpop.f32.mrb[0].mxu0
        %v1755 = vadd.f32 0.0, %v1754
        %v1756 = vpop.f32.mrb[0].mxu0
        %1757 = vmatprep.mubr.f32.mxu0 0.0
        %1758 = vmatmul.mubr.f32.gmra.mrb[0].mxu0 %v356
        %v1759 = vpop.f32.mrb[0].mxu0
        %v1760 = vadd.f32 0.0, %v1759
        %v1761 = vpop.f32.mrb[0].mxu0
        %1762 = vmatprep.mubr.f32.mxu0 0.0
        %1763 = vmatmul.mubr.f32.gmra.mrb[0].mxu0 %v359
        %v1764 = vpop.f32.mrb[0].mxu0
        %v1765 = vadd.f32 0.0, %v1764
        %v1766 = vpop.f32.mrb[0].mxu0
        %1767 = vmatprep.mubr.f32.mxu0 0.0
        %1768 = vmatmul.mubr.f32.gmra.mrb[0].mxu0 %v362
        %v1769 = vpop.f32.mrb[0].mxu0
        %v1770 = vadd.f32 0.0, %v1769
        %v1771 = vpop.f32.mrb[0].mxu0
        %1772 = vmatprep.mubr.f32.mxu0 0.0
        %1773 = vmatmul.mubr.f32.gmra.mrb[0].mxu0 %v365
        %v1774 = vpop.f32.mrb[0].mxu0
        %v1775 = vadd.f32 0.0, %v1774
        %v1776 = vpop.f32.mrb[0].mxu0
        %1777 = vmatprep.mubr.f32.mxu0 0.0
        %1778 = vmatmul.mubr.f32.gmra.mrb[0].mxu0 %v368
        %v1779 = vpop.f32.mrb[0].mxu0
        %v1780 = vadd.f32 0.0, %v1779
        %v1781 = vpop.f32.mrb[0].mxu0
        %1782 = vmatprep.mubr.f32.mxu0 0.0
        %1783 = vmatmul.mubr.f32.gmra.mrb[0].mxu0 %v371
        %v1784 = vpop.f32.mrb[0].mxu0
        %v1785 = vadd.f32 0.0, %v1784
        %v1786 = vpop.f32.mrb[0].mxu0
        %1787 = vmatprep.mubr.f32.mxu0 0.0
        %1788 = vmatmul.mubr.f32.gmra.mrb[0].mxu0 %v374
        %v1789 = vpop.f32.mrb[0].mxu0
        %v1790 = vadd.f32 0.0, %v1789
        %v1791 = vpop.f32.mrb[0].mxu0
        %1792 = vmatprep.mubr.f32.mxu0 0.0
        %1793 = vmatmul.mubr.f32.gmra.mrb[0].mxu0 %v377
        %v1794 = vpop.f32.mrb[0].mxu0
        %v1795 = vadd.f32 0.0, %v1794
        %v1796 = vpop.f32.mrb[0].mxu0
        %1797 = vmatprep.mubr.f32.mxu0 0.0
        %1798 = vmatmul.mubr.f32.gmra.mrb[0].mxu0 %v380
        %v1799 = vpop.f32.mrb[0].mxu0
        %v1800 = vadd.f32 0.0, %v1799
        %v1801 = vpop.f32.mrb[0].mxu0
        %1802 = vmatprep.mubr.f32.mxu0 0.0
        %1803 = vmatmul.mubr.f32.gmra.mrb[0].mxu0 %v383
        %v1804 = vpop.f32.mrb[0].mxu0
        %v1805 = vadd.f32 0.0, %v1804
        %v1806 = vpop.f32.mrb[0].mxu0
        %1807 = vmatprep.mubr.f32.mxu0 0.0
        %1808 = vmatmul.mubr.f32.gmra.mrb[0].mxu0 %v386
        %v1809 = vpop.f32.mrb[0].mxu0
        %v1810 = vadd.f32 0.0, %v1809
        %v1811 = vpop.f32.mrb[0].mxu0
        %1812 = vmatprep.mubr.f32.mxu0 0.0
        %1813 = vmatmul.mubr.f32.gmra.mrb[0].mxu0 %v389
        %v1814 = vpop.f32.mrb[0].mxu0
        %v1815 = vadd.f32 0.0, %v1814
        %v1816 = vpop.f32.mrb[0].mxu0
        %1817 = vmatprep.mubr.f32.mxu0 0.0
        %1818 = vmatmul.mubr.f32.gmra.mrb[0].mxu0 %v392
        %v1819 = vpop.f32.mrb[0].mxu0
        %v1820 = vadd.f32 0.0, %v1819
        %v1821 = vpop.f32.mrb[0].mxu0
        %1822 = vmatprep.mubr.f32.mxu0 0.0
        %1823 = vmatmul.mubr.f32.gmra.mrb[0].mxu0 %v395
        %v1824 = vpop.f32.mrb[0].mxu0
        %v1825 = vadd.f32 0.0, %v1824
        %v1826 = vpop.f32.mrb[0].mxu0
        %1827 = vmatprep.mubr.f32.mxu0 0.0
        %1828 = vmatmul.mubr.f32.gmra.mrb[0].mxu0 %v398
        %v1829 = vpop.f32.mrb[0].mxu0
        %v1830 = vadd.f32 0.0, %v1829
        %v1831 = vpop.f32.mrb[0].mxu0
        %1832 = vmatprep.mubr.f32.mxu0 0.0
        %1833 = vmatmul.mubr.f32.gmra.mrb[0].mxu0 %v401
        %v1834 = vpop.f32.mrb[0].mxu0
        %v1835 = vadd.f32 0.0, %v1834
        %v1836 = vpop.f32.mrb[0].mxu0
        %1837 = vmatprep.mubr.f32.mxu0 0.0
        %1838 = vmatmul.mubr.f32.gmra.mrb[0].mxu0 %v404
        %v1839 = vpop.f32.mrb[0].mxu0
        %v1840 = vadd.f32 0.0, %v1839
        %v1841 = vpop.f32.mrb[0].mxu0
        %1842 = vmatprep.mubr.f32.mxu0 0.0
        %1843 = vmatmul.mubr.f32.gmra.mrb[0].mxu0 %v407
        %v1844 = vpop.f32.mrb[0].mxu0
        %v1845 = vadd.f32 0.0, %v1844
        %v1846 = vpop.f32.mrb[0].mxu0
        %1847 = vmatprep.mubr.f32.mxu0 0.0
        %1848 = vmatmul.mubr.f32.gmra.mrb[0].mxu0 %v410
        %v1849 = vpop.f32.mrb[0].mxu0
        %v1850 = vadd.f32 0.0, %v1849
        %v1851 = vpop.f32.mrb[0].mxu0
        %1852 = vmatprep.mubr.f32.mxu0 0.0
        %1853 = vmatmul.mubr.f32.gmra.mrb[0].mxu0 %v413
        %v1854 = vpop.f32.mrb[0].mxu0
        %v1855 = vadd.f32 0.0, %v1854
        %v1856 = vpop.f32.mrb[0].mxu0
        %1857 = vmatprep.mubr.f32.mxu0 0.0
        %1858 = vmatmul.mubr.f32.gmra.mrb[0].mxu0 %v416
        %v1859 = vpop.f32.mrb[0].mxu0
        %v1860 = vadd.f32 0.0, %v1859
        %v1861 = vpop.f32.mrb[0].mxu0
        %1862 = vmatprep.mubr.f32.mxu0 0.0
        %1863 = vmatmul.mubr.f32.gmra.mrb[0].mxu0 %v1640
        %v1864 = vpop.f32.mrb[0].mxu0
        %v1865 = vadd.f32 0.0, %v1864
        %v1866 = vpop.f32.mrb[0].mxu0
        %1867 = vmatprep.mubr.f32.mxu0 0.0
        %1868 = vmatmul.mubr.f32.gmra.mrb[0].mxu0 %v1643
        %v1869 = vpop.f32.mrb[0].mxu0
        %v1870 = vadd.f32 0.0, %v1869
        %v1871 = vpop.f32.mrb[0].mxu0
        %1872 = vdwg.mxu0
        %v1873 = vld [vmem:[#allocation2] sm:$0xff]
        %v1874 = vld [vmem:[#allocation2 + $0x8] sm:$0xff]
        %v1875 = vld [vmem:[#allocation2 + $0x10] sm:$0xff]
        %v1876 = vld [vmem:[#allocation2 + $0x18] sm:$0xff]
        %v1877 = vld [vmem:[#allocation2 + $0x20] sm:$0xff]
        %v1878 = vld [vmem:[#allocation2 + $0x28] sm:$0xff]
        %v1879 = vld [vmem:[#allocation2 + $0x30] sm:$0xff]
        %v1880 = vld [vmem:[#allocation2 + $0x38] sm:$0xff]
        %v1881 = vld [vmem:[#allocation2 + $0x40] sm:$0xff]
        %v1882 = vld [vmem:[#allocation2 + $0x48] sm:$0xff]
        %v1883 = vld [vmem:[#allocation2 + $0x50] sm:$0xff]
        %v1884 = vld [vmem:[#allocation2 + $0x58] sm:$0xff]
        %v1885 = vld [vmem:[#allocation2 + $0x60] sm:$0xff]
        %v1886 = vld [vmem:[#allocation2 + $0x68] sm:$0xff]
        %v1887 = vld [vmem:[#allocation2 + $0x70] sm:$0xff]
        %v1888 = vld [vmem:[#allocation2 + $0x78] sm:$0xff]
        %v1889 = vld [vmem:[#allocation2 + $0x80] sm:$0xff]
        %v1890 = vld [vmem:[#allocation2 + $0x88] sm:$0xff]
        %v1891 = vld [vmem:[#allocation2 + $0x90] sm:$0xff]
        %v1892 = vld [vmem:[#allocation2 + $0x98] sm:$0xff]
        %v1893 = vld [vmem:[#allocation2 + $0xa0] sm:$0xff]
        %v1894 = vld [vmem:[#allocation2 + $0xa8] sm:$0xff]
        %v1895 = vld [vmem:[#allocation2 + $0xb0] sm:$0xff]
        %v1896 = vld [vmem:[#allocation2 + $0xb8] sm:$0xff]
        %v1897 = vld [vmem:[#allocation2 + $0xc0] sm:$0xff]
        %v1898 = vld [vmem:[#allocation2 + $0xc8] sm:$0xff]
        %v1899 = vld [vmem:[#allocation2 + $0xd0] sm:$0xff]
        %v1900 = vld [vmem:[#allocation2 + $0xd8] sm:$0xff]
        %v1901 = vld [vmem:[#allocation2 + $0xe0] sm:$0xff]
        %v1902 = vld [vmem:[#allocation2 + $0xe8] sm:$0xff]
        %v1903 = vld [vmem:[#allocation2 + $0xf0] sm:$0xff]
        %v1904 = vld [vmem:[#allocation2 + $0xf8] sm:$0xff]
        %v1905 = vadd.f32 %v1873, %v1715
        %v1906 = vadd.f32 %v1874, %v1720
        %v1907 = vadd.f32 %v1875, %v1725
        %v1908 = vadd.f32 %v1876, %v1730
        %v1909 = vadd.f32 %v1877, %v1735
        %v1910 = vadd.f32 %v1878, %v1740
        %v1911 = vadd.f32 %v1879, %v1745
        %v1912 = vadd.f32 %v1880, %v1750
        %v1913 = vadd.f32 %v1881, %v1755
        %v1914 = vadd.f32 %v1882, %v1760
        %v1915 = vadd.f32 %v1883, %v1765
        %v1916 = vadd.f32 %v1884, %v1770
        %v1917 = vadd.f32 %v1885, %v1775
        %v1918 = vadd.f32 %v1886, %v1780
        %v1919 = vadd.f32 %v1887, %v1785
        %v1920 = vadd.f32 %v1888, %v1790
        %v1921 = vadd.f32 %v1889, %v1795
        %v1922 = vadd.f32 %v1890, %v1800
        %v1923 = vadd.f32 %v1891, %v1805
        %v1924 = vadd.f32 %v1892, %v1810
        %v1925 = vadd.f32 %v1893, %v1815
        %v1926 = vadd.f32 %v1894, %v1820
        %v1927 = vadd.f32 %v1895, %v1825
        %v1928 = vadd.f32 %v1896, %v1830
        %v1929 = vadd.f32 %v1897, %v1835
        %v1930 = vadd.f32 %v1898, %v1840
        %v1931 = vadd.f32 %v1899, %v1845
        %v1932 = vadd.f32 %v1900, %v1850
        %v1933 = vadd.f32 %v1901, %v1855
        %v1934 = vadd.f32 %v1902, %v1860
        %v1935 = vadd.f32 %v1903, %v1865
        %v1936 = vadd.f32 %v1904, %v1870
        %1937 = vst [vmem:[#allocation2] sm:$0xff] %v1905
        %1938 = vst [vmem:[#allocation2 + $0x8] sm:$0xff] %v1906
        %1939 = vst [vmem:[#allocation2 + $0x10] sm:$0xff] %v1907
        %1940 = vst [vmem:[#allocation2 + $0x18] sm:$0xff] %v1908
        %1941 = vst [vmem:[#allocation2 + $0x20] sm:$0xff] %v1909
        %1942 = vst [vmem:[#allocation2 + $0x28] sm:$0xff] %v1910
        %1943 = vst [vmem:[#allocation2 + $0x30] sm:$0xff] %v1911
        %1944 = vst [vmem:[#allocation2 + $0x38] sm:$0xff] %v1912
        %1945 = vst [vmem:[#allocation2 + $0x40] sm:$0xff] %v1913
        %1946 = vst [vmem:[#allocation2 + $0x48] sm:$0xff] %v1914
        %1947 = vst [vmem:[#allocation2 + $0x50] sm:$0xff] %v1915
        %1948 = vst [vmem:[#allocation2 + $0x58] sm:$0xff] %v1916
        %1949 = vst [vmem:[#allocation2 + $0x60] sm:$0xff] %v1917
        %1950 = vst [vmem:[#allocation2 + $0x68] sm:$0xff] %v1918
        %1951 = vst [vmem:[#allocation2 + $0x70] sm:$0xff] %v1919
        %1952 = vst [vmem:[#allocation2 + $0x78] sm:$0xff] %v1920
        %1953 = vst [vmem:[#allocation2 + $0x80] sm:$0xff] %v1921
        %1954 = vst [vmem:[#allocation2 + $0x88] sm:$0xff] %v1922
        %1955 = vst [vmem:[#allocation2 + $0x90] sm:$0xff] %v1923
        %1956 = vst [vmem:[#allocation2 + $0x98] sm:$0xff] %v1924
        %1957 = vst [vmem:[#allocation2 + $0xa0] sm:$0xff] %v1925
        %1958 = vst [vmem:[#allocation2 + $0xa8] sm:$0xff] %v1926
        %1959 = vst [vmem:[#allocation2 + $0xb0] sm:$0xff] %v1927
        %1960 = vst [vmem:[#allocation2 + $0xb8] sm:$0xff] %v1928
        %1961 = vst [vmem:[#allocation2 + $0xc0] sm:$0xff] %v1929
        %1962 = vst [vmem:[#allocation2 + $0xc8] sm:$0xff] %v1930
        %1963 = vst [vmem:[#allocation2 + $0xd0] sm:$0xff] %v1931
        %1964 = vst [vmem:[#allocation2 + $0xd8] sm:$0xff] %v1932
        %1965 = vst [vmem:[#allocation2 + $0xe0] sm:$0xff] %v1933
        %1966 = vst [vmem:[#allocation2 + $0xe8] sm:$0xff] %v1934
        %1967 = vst [vmem:[#allocation2 + $0xf0] sm:$0xff] %v1935
        %1968 = vst [vmem:[#allocation2 + $0xf8] sm:$0xff] %v1936
        %v1970 = vrot.slane %v314, 1
        %v1971 = vrot.slane %v315, 1
        %v1972 = vsel %vm695, %v1970, %v1971
        %v1973 = vrot.slane %v316, 1
        %v1974 = vsel %vm695, %v1971, %v1973
        %s1975 = scalar_lea.vmem %s1, 16
        %v1976 = vld [vmem:[%s1975] sm:$0xf]
        %v1977 = vsel %vm321, %v1972, 0
        %v1979 = vsel %vm321, %v1974, 0
        %v1982 = vsel %vm418, %v1976, 0
        %1984 = vmatprep.subr.mxu0 0.0
        %1985 = vmatpush1.msra.mxu0 %v1982
        %1986 = vmatprep.subr.mxu0 0.0
        %1987 = vmatpush1.msra.mxu0 0.0
        %1988 = vmatprep.subr.mxu0 0.0
        %1989 = vmatpush1.msra.mxu0 0.0
        %1990 = vmatprep.subr.mxu0 0.0
        %1991 = vmatpush1.msra.mxu0 0.0
        %1992 = vmatprep.subr.mxu0 0.0
        %1993 = vmatpush1.msra.mxu0 0.0
        %1994 = vmatprep.subr.mxu0 0.0
        %1995 = vmatpush1.msra.mxu0 0.0
        %1996 = vmatprep.subr.mxu0 0.0
        %1997 = vmatpush1.msra.mxu0 0.0
        %1998 = vmatprep.subr.mxu0 0.0
        %1999 = vmatpush1.msra.mxu0 0.0
        %2000 = vmatprep.subr.mxu0 0.0
        %2001 = vmatpush1.msra.mxu0 0.0
        %2002 = vmatprep.subr.mxu0 0.0
        %2003 = vmatpush1.msra.mxu0 0.0
        %2004 = vmatprep.subr.mxu0 0.0
        %2005 = vmatpush1.msra.mxu0 0.0
        %2006 = vmatprep.subr.mxu0 0.0
        %2007 = vmatpush1.msra.mxu0 0.0
        %2008 = vmatprep.subr.mxu0 0.0
        %2009 = vmatpush1.msra.mxu0 0.0
        %2010 = vmatprep.subr.mxu0 0.0
        %2011 = vmatpush1.msra.mxu0 0.0
        %2012 = vmatprep.subr.mxu0 0.0
        %2013 = vmatpush1.msra.mxu0 0.0
        %2014 = vmatprep.subr.mxu0 0.0
        %2015 = vmatpush1.msra.mxu0 0.0
        %2016 = vmatprep.subr.mxu0 0.0
        %2017 = vmatpush1.msra.mxu0 0.0
        %2018 = vmatprep.subr.mxu0 0.0
        %2019 = vmatpush1.msra.mxu0 0.0
        %2020 = vmatprep.subr.mxu0 0.0
        %2021 = vmatpush1.msra.mxu0 0.0
        %2022 = vmatprep.subr.mxu0 0.0
        %2023 = vmatpush1.msra.mxu0 0.0
        %2024 = vmatprep.subr.mxu0 0.0
        %2025 = vmatpush1.msra.mxu0 0.0
        %2026 = vmatprep.subr.mxu0 0.0
        %2027 = vmatpush1.msra.mxu0 0.0
        %2028 = vmatprep.subr.mxu0 0.0
        %2029 = vmatpush1.msra.mxu0 0.0
        %2030 = vmatprep.subr.mxu0 0.0
        %2031 = vmatpush1.msra.mxu0 0.0
        %2032 = vmatprep.subr.mxu0 0.0
        %2033 = vmatpush1.msra.mxu0 0.0
        %2034 = vmatprep.subr.mxu0 0.0
        %2035 = vmatpush1.msra.mxu0 0.0
        %2036 = vmatprep.subr.mxu0 0.0
        %2037 = vmatpush1.msra.mxu0 0.0
        %2038 = vmatprep.subr.mxu0 0.0
        %2039 = vmatpush1.msra.mxu0 0.0
        %2040 = vmatprep.subr.mxu0 0.0
        %2041 = vmatpush1.msra.mxu0 0.0
        %2042 = vmatprep.subr.mxu0 0.0
        %2043 = vmatpush1.msra.mxu0 0.0
        %2044 = vmatprep.subr.mxu0 0.0
        %2045 = vmatpush1.msra.mxu0 0.0
        %2046 = vmatprep.subr.mxu0 0.0
        %2047 = vmatpush1.msra.mxu0 0.0
        %2048 = vmatprep.mubr.f32.mxu0 0.0
        %2049 = vmatmul.mubr.f32.gmra.mrb[0].mxu0 %v782
        %v2050 = vpop.f32.mrb[0].mxu0
        %v2051 = vadd.f32 0.0, %v2050
        %v2052 = vpop.f32.mrb[0].mxu0
        %2053 = vmatprep.mubr.f32.mxu0 0.0
        %2054 = vmatmul.mubr.f32.gmra.mrb[0].mxu0 %v784
        %v2055 = vpop.f32.mrb[0].mxu0
        %v2056 = vadd.f32 0.0, %v2055
        %v2057 = vpop.f32.mrb[0].mxu0
        %2058 = vmatprep.mubr.f32.mxu0 0.0
        %2059 = vmatmul.mubr.f32.gmra.mrb[0].mxu0 %v786
        %v2060 = vpop.f32.mrb[0].mxu0
        %v2061 = vadd.f32 0.0, %v2060
        %v2062 = vpop.f32.mrb[0].mxu0
        %2063 = vmatprep.mubr.f32.mxu0 0.0
        %2064 = vmatmul.mubr.f32.gmra.mrb[0].mxu0 %v788
        %v2065 = vpop.f32.mrb[0].mxu0
        %v2066 = vadd.f32 0.0, %v2065
        %v2067 = vpop.f32.mrb[0].mxu0
        %2068 = vmatprep.mubr.f32.mxu0 0.0
        %2069 = vmatmul.mubr.f32.gmra.mrb[0].mxu0 %v790
        %v2070 = vpop.f32.mrb[0].mxu0
        %v2071 = vadd.f32 0.0, %v2070
        %v2072 = vpop.f32.mrb[0].mxu0
        %2073 = vmatprep.mubr.f32.mxu0 0.0
        %2074 = vmatmul.mubr.f32.gmra.mrb[0].mxu0 %v792
        %v2075 = vpop.f32.mrb[0].mxu0
        %v2076 = vadd.f32 0.0, %v2075
        %v2077 = vpop.f32.mrb[0].mxu0
        %2078 = vmatprep.mubr.f32.mxu0 0.0
        %2079 = vmatmul.mubr.f32.gmra.mrb[0].mxu0 %v794
        %v2080 = vpop.f32.mrb[0].mxu0
        %v2081 = vadd.f32 0.0, %v2080
        %v2082 = vpop.f32.mrb[0].mxu0
        %2083 = vmatprep.mubr.f32.mxu0 0.0
        %2084 = vmatmul.mubr.f32.gmra.mrb[0].mxu0 %v796
        %v2085 = vpop.f32.mrb[0].mxu0
        %v2086 = vadd.f32 0.0, %v2085
        %v2087 = vpop.f32.mrb[0].mxu0
        %2088 = vmatprep.mubr.f32.mxu0 0.0
        %2089 = vmatmul.mubr.f32.gmra.mrb[0].mxu0 %v798
        %v2090 = vpop.f32.mrb[0].mxu0
        %v2091 = vadd.f32 0.0, %v2090
        %v2092 = vpop.f32.mrb[0].mxu0
        %2093 = vmatprep.mubr.f32.mxu0 0.0
        %2094 = vmatmul.mubr.f32.gmra.mrb[0].mxu0 %v800
        %v2095 = vpop.f32.mrb[0].mxu0
        %v2096 = vadd.f32 0.0, %v2095
        %v2097 = vpop.f32.mrb[0].mxu0
        %2098 = vmatprep.mubr.f32.mxu0 0.0
        %2099 = vmatmul.mubr.f32.gmra.mrb[0].mxu0 %v802
        %v2100 = vpop.f32.mrb[0].mxu0
        %v2101 = vadd.f32 0.0, %v2100
        %v2102 = vpop.f32.mrb[0].mxu0
        %2103 = vmatprep.mubr.f32.mxu0 0.0
        %2104 = vmatmul.mubr.f32.gmra.mrb[0].mxu0 %v804
        %v2105 = vpop.f32.mrb[0].mxu0
        %v2106 = vadd.f32 0.0, %v2105
        %v2107 = vpop.f32.mrb[0].mxu0
        %2108 = vmatprep.mubr.f32.mxu0 0.0
        %2109 = vmatmul.mubr.f32.gmra.mrb[0].mxu0 %v806
        %v2110 = vpop.f32.mrb[0].mxu0
        %v2111 = vadd.f32 0.0, %v2110
        %v2112 = vpop.f32.mrb[0].mxu0
        %2113 = vmatprep.mubr.f32.mxu0 0.0
        %2114 = vmatmul.mubr.f32.gmra.mrb[0].mxu0 %v808
        %v2115 = vpop.f32.mrb[0].mxu0
        %v2116 = vadd.f32 0.0, %v2115
        %v2117 = vpop.f32.mrb[0].mxu0
        %2118 = vmatprep.mubr.f32.mxu0 0.0
        %2119 = vmatmul.mubr.f32.gmra.mrb[0].mxu0 %v810
        %v2120 = vpop.f32.mrb[0].mxu0
        %v2121 = vadd.f32 0.0, %v2120
        %v2122 = vpop.f32.mrb[0].mxu0
        %2123 = vmatprep.mubr.f32.mxu0 0.0
        %2124 = vmatmul.mubr.f32.gmra.mrb[0].mxu0 %v812
        %v2125 = vpop.f32.mrb[0].mxu0
        %v2126 = vadd.f32 0.0, %v2125
        %v2127 = vpop.f32.mrb[0].mxu0
        %2128 = vmatprep.mubr.f32.mxu0 0.0
        %2129 = vmatmul.mubr.f32.gmra.mrb[0].mxu0 %v814
        %v2130 = vpop.f32.mrb[0].mxu0
        %v2131 = vadd.f32 0.0, %v2130
        %v2132 = vpop.f32.mrb[0].mxu0
        %2133 = vmatprep.mubr.f32.mxu0 0.0
        %2134 = vmatmul.mubr.f32.gmra.mrb[0].mxu0 %v816
        %v2135 = vpop.f32.mrb[0].mxu0
        %v2136 = vadd.f32 0.0, %v2135
        %v2137 = vpop.f32.mrb[0].mxu0
        %2138 = vmatprep.mubr.f32.mxu0 0.0
        %2139 = vmatmul.mubr.f32.gmra.mrb[0].mxu0 %v818
        %v2140 = vpop.f32.mrb[0].mxu0
        %v2141 = vadd.f32 0.0, %v2140
        %v2142 = vpop.f32.mrb[0].mxu0
        %2143 = vmatprep.mubr.f32.mxu0 0.0
        %2144 = vmatmul.mubr.f32.gmra.mrb[0].mxu0 %v820
        %v2145 = vpop.f32.mrb[0].mxu0
        %v2146 = vadd.f32 0.0, %v2145
        %v2147 = vpop.f32.mrb[0].mxu0
        %2148 = vmatprep.mubr.f32.mxu0 0.0
        %2149 = vmatmul.mubr.f32.gmra.mrb[0].mxu0 %v822
        %v2150 = vpop.f32.mrb[0].mxu0
        %v2151 = vadd.f32 0.0, %v2150
        %v2152 = vpop.f32.mrb[0].mxu0
        %2153 = vmatprep.mubr.f32.mxu0 0.0
        %2154 = vmatmul.mubr.f32.gmra.mrb[0].mxu0 %v824
        %v2155 = vpop.f32.mrb[0].mxu0
        %v2156 = vadd.f32 0.0, %v2155
        %v2157 = vpop.f32.mrb[0].mxu0
        %2158 = vmatprep.mubr.f32.mxu0 0.0
        %2159 = vmatmul.mubr.f32.gmra.mrb[0].mxu0 %v826
        %v2160 = vpop.f32.mrb[0].mxu0
        %v2161 = vadd.f32 0.0, %v2160
        %v2162 = vpop.f32.mrb[0].mxu0
        %2163 = vmatprep.mubr.f32.mxu0 0.0
        %2164 = vmatmul.mubr.f32.gmra.mrb[0].mxu0 %v828
        %v2165 = vpop.f32.mrb[0].mxu0
        %v2166 = vadd.f32 0.0, %v2165
        %v2167 = vpop.f32.mrb[0].mxu0
        %2168 = vmatprep.mubr.f32.mxu0 0.0
        %2169 = vmatmul.mubr.f32.gmra.mrb[0].mxu0 %v830
        %v2170 = vpop.f32.mrb[0].mxu0
        %v2171 = vadd.f32 0.0, %v2170
        %v2172 = vpop.f32.mrb[0].mxu0
        %2173 = vmatprep.mubr.f32.mxu0 0.0
        %2174 = vmatmul.mubr.f32.gmra.mrb[0].mxu0 %v832
        %v2175 = vpop.f32.mrb[0].mxu0
        %v2176 = vadd.f32 0.0, %v2175
        %v2177 = vpop.f32.mrb[0].mxu0
        %2178 = vmatprep.mubr.f32.mxu0 0.0
        %2179 = vmatmul.mubr.f32.gmra.mrb[0].mxu0 %v834
        %v2180 = vpop.f32.mrb[0].mxu0
        %v2181 = vadd.f32 0.0, %v2180
        %v2182 = vpop.f32.mrb[0].mxu0
        %2183 = vmatprep.mubr.f32.mxu0 0.0
        %2184 = vmatmul.mubr.f32.gmra.mrb[0].mxu0 %v836
        %v2185 = vpop.f32.mrb[0].mxu0
        %v2186 = vadd.f32 0.0, %v2185
        %v2187 = vpop.f32.mrb[0].mxu0
        %2188 = vmatprep.mubr.f32.mxu0 0.0
        %2189 = vmatmul.mubr.f32.gmra.mrb[0].mxu0 %v838
        %v2190 = vpop.f32.mrb[0].mxu0
        %v2191 = vadd.f32 0.0, %v2190
        %v2192 = vpop.f32.mrb[0].mxu0
        %2193 = vmatprep.mubr.f32.mxu0 0.0
        %2194 = vmatmul.mubr.f32.gmra.mrb[0].mxu0 %v840
        %v2195 = vpop.f32.mrb[0].mxu0
        %v2196 = vadd.f32 0.0, %v2195
        %v2197 = vpop.f32.mrb[0].mxu0
        %2198 = vmatprep.mubr.f32.mxu0 0.0
        %2199 = vmatmul.mubr.f32.gmra.mrb[0].mxu0 %v1977
        %v2200 = vpop.f32.mrb[0].mxu0
        %v2201 = vadd.f32 0.0, %v2200
        %v2202 = vpop.f32.mrb[0].mxu0
        %2203 = vmatprep.mubr.f32.mxu0 0.0
        %2204 = vmatmul.mubr.f32.gmra.mrb[0].mxu0 %v1979
        %v2205 = vpop.f32.mrb[0].mxu0
        %v2206 = vadd.f32 0.0, %v2205
        %v2207 = vpop.f32.mrb[0].mxu0
        %2208 = vdwg.mxu0
        %v2209 = vld [vmem:[#allocation2] sm:$0xff]
        %v2210 = vld [vmem:[#allocation2 + $0x8] sm:$0xff]
        %v2211 = vld [vmem:[#allocation2 + $0x10] sm:$0xff]
        %v2212 = vld [vmem:[#allocation2 + $0x18] sm:$0xff]
        %v2213 = vld [vmem:[#allocation2 + $0x20] sm:$0xff]
        %v2214 = vld [vmem:[#allocation2 + $0x28] sm:$0xff]
        %v2215 = vld [vmem:[#allocation2 + $0x30] sm:$0xff]
        %v2216 = vld [vmem:[#allocation2 + $0x38] sm:$0xff]
        %v2217 = vld [vmem:[#allocation2 + $0x40] sm:$0xff]
        %v2218 = vld [vmem:[#allocation2 + $0x48] sm:$0xff]
        %v2219 = vld [vmem:[#allocation2 + $0x50] sm:$0xff]
        %v2220 = vld [vmem:[#allocation2 + $0x58] sm:$0xff]
        %v2221 = vld [vmem:[#allocation2 + $0x60] sm:$0xff]
        %v2222 = vld [vmem:[#allocation2 + $0x68] sm:$0xff]
        %v2223 = vld [vmem:[#allocation2 + $0x70] sm:$0xff]
        %v2224 = vld [vmem:[#allocation2 + $0x78] sm:$0xff]
        %v2225 = vld [vmem:[#allocation2 + $0x80] sm:$0xff]
        %v2226 = vld [vmem:[#allocation2 + $0x88] sm:$0xff]
        %v2227 = vld [vmem:[#allocation2 + $0x90] sm:$0xff]
        %v2228 = vld [vmem:[#allocation2 + $0x98] sm:$0xff]
        %v2229 = vld [vmem:[#allocation2 + $0xa0] sm:$0xff]
        %v2230 = vld [vmem:[#allocation2 + $0xa8] sm:$0xff]
        %v2231 = vld [vmem:[#allocation2 + $0xb0] sm:$0xff]
        %v2232 = vld [vmem:[#allocation2 + $0xb8] sm:$0xff]
        %v2233 = vld [vmem:[#allocation2 + $0xc0] sm:$0xff]
        %v2234 = vld [vmem:[#allocation2 + $0xc8] sm:$0xff]
        %v2235 = vld [vmem:[#allocation2 + $0xd0] sm:$0xff]
        %v2236 = vld [vmem:[#allocation2 + $0xd8] sm:$0xff]
        %v2237 = vld [vmem:[#allocation2 + $0xe0] sm:$0xff]
        %v2238 = vld [vmem:[#allocation2 + $0xe8] sm:$0xff]
        %v2239 = vld [vmem:[#allocation2 + $0xf0] sm:$0xff]
        %v2240 = vld [vmem:[#allocation2 + $0xf8] sm:$0xff]
        %v2241 = vadd.f32 %v2209, %v2051
        %v2242 = vadd.f32 %v2210, %v2056
        %v2243 = vadd.f32 %v2211, %v2061
        %v2244 = vadd.f32 %v2212, %v2066
        %v2245 = vadd.f32 %v2213, %v2071
        %v2246 = vadd.f32 %v2214, %v2076
        %v2247 = vadd.f32 %v2215, %v2081
        %v2248 = vadd.f32 %v2216, %v2086
        %v2249 = vadd.f32 %v2217, %v2091
        %v2250 = vadd.f32 %v2218, %v2096
        %v2251 = vadd.f32 %v2219, %v2101
        %v2252 = vadd.f32 %v2220, %v2106
        %v2253 = vadd.f32 %v2221, %v2111
        %v2254 = vadd.f32 %v2222, %v2116
        %v2255 = vadd.f32 %v2223, %v2121
        %v2256 = vadd.f32 %v2224, %v2126
        %v2257 = vadd.f32 %v2225, %v2131
        %v2258 = vadd.f32 %v2226, %v2136
        %v2259 = vadd.f32 %v2227, %v2141
        %v2260 = vadd.f32 %v2228, %v2146
        %v2261 = vadd.f32 %v2229, %v2151
        %v2262 = vadd.f32 %v2230, %v2156
        %v2263 = vadd.f32 %v2231, %v2161
        %v2264 = vadd.f32 %v2232, %v2166
        %v2265 = vadd.f32 %v2233, %v2171
        %v2266 = vadd.f32 %v2234, %v2176
        %v2267 = vadd.f32 %v2235, %v2181
        %v2268 = vadd.f32 %v2236, %v2186
        %v2269 = vadd.f32 %v2237, %v2191
        %v2270 = vadd.f32 %v2238, %v2196
        %v2271 = vadd.f32 %v2239, %v2201
        %v2272 = vadd.f32 %v2240, %v2206
        %2273 = vst [vmem:[#allocation2] sm:$0xff] %v2241
        %2274 = vst [vmem:[#allocation2 + $0x8] sm:$0xff] %v2242
        %2275 = vst [vmem:[#allocation2 + $0x10] sm:$0xff] %v2243
        %2276 = vst [vmem:[#allocation2 + $0x18] sm:$0xff] %v2244
        %2277 = vst [vmem:[#allocation2 + $0x20] sm:$0xff] %v2245
        %2278 = vst [vmem:[#allocation2 + $0x28] sm:$0xff] %v2246
        %2279 = vst [vmem:[#allocation2 + $0x30] sm:$0xff] %v2247
        %2280 = vst [vmem:[#allocation2 + $0x38] sm:$0xff] %v2248
        %2281 = vst [vmem:[#allocation2 + $0x40] sm:$0xff] %v2249
        %2282 = vst [vmem:[#allocation2 + $0x48] sm:$0xff] %v2250
        %2283 = vst [vmem:[#allocation2 + $0x50] sm:$0xff] %v2251
        %2284 = vst [vmem:[#allocation2 + $0x58] sm:$0xff] %v2252
        %2285 = vst [vmem:[#allocation2 + $0x60] sm:$0xff] %v2253
        %2286 = vst [vmem:[#allocation2 + $0x68] sm:$0xff] %v2254
        %2287 = vst [vmem:[#allocation2 + $0x70] sm:$0xff] %v2255
        %2288 = vst [vmem:[#allocation2 + $0x78] sm:$0xff] %v2256
        %2289 = vst [vmem:[#allocation2 + $0x80] sm:$0xff] %v2257
        %2290 = vst [vmem:[#allocation2 + $0x88] sm:$0xff] %v2258
        %2291 = vst [vmem:[#allocation2 + $0x90] sm:$0xff] %v2259
        %2292 = vst [vmem:[#allocation2 + $0x98] sm:$0xff] %v2260
        %2293 = vst [vmem:[#allocation2 + $0xa0] sm:$0xff] %v2261
        %2294 = vst [vmem:[#allocation2 + $0xa8] sm:$0xff] %v2262
        %2295 = vst [vmem:[#allocation2 + $0xb0] sm:$0xff] %v2263
        %2296 = vst [vmem:[#allocation2 + $0xb8] sm:$0xff] %v2264
        %2297 = vst [vmem:[#allocation2 + $0xc0] sm:$0xff] %v2265
        %2298 = vst [vmem:[#allocation2 + $0xc8] sm:$0xff] %v2266
        %2299 = vst [vmem:[#allocation2 + $0xd0] sm:$0xff] %v2267
        %2300 = vst [vmem:[#allocation2 + $0xd8] sm:$0xff] %v2268
        %2301 = vst [vmem:[#allocation2 + $0xe0] sm:$0xff] %v2269
        %2302 = vst [vmem:[#allocation2 + $0xe8] sm:$0xff] %v2270
        %2303 = vst [vmem:[#allocation2 + $0xf0] sm:$0xff] %v2271
        %2304 = vst [vmem:[#allocation2 + $0xf8] sm:$0xff] %v2272
        %v2305 = vrot.slane %v314, 2
        %v2306 = vrot.slane %v315, 2
        %v2307 = vsel %vm1166, %v2305, %v2306
        %v2308 = vrot.slane %v316, 2
        %v2309 = vsel %vm1166, %v2306, %v2308
        %s2310 = scalar_lea.vmem %s1, 20
        %v2311 = vld [vmem:[%s2310] sm:$0xf]
        %v2312 = vsel %vm321, %v2307, 0
        %v2314 = vsel %vm321, %v2309, 0
        %v2317 = vsel %vm418, %v2311, 0
        %2319 = vmatprep.subr.mxu0 0.0
        %2320 = vmatpush1.msra.mxu0 %v2317
        %2321 = vmatprep.subr.mxu0 0.0
        %2322 = vmatpush1.msra.mxu0 0.0
        %2323 = vmatprep.subr.mxu0 0.0
        %2324 = vmatpush1.msra.mxu0 0.0
        %2325 = vmatprep.subr.mxu0 0.0
        %2326 = vmatpush1.msra.mxu0 0.0
        %2327 = vmatprep.subr.mxu0 0.0
        %2328 = vmatpush1.msra.mxu0 0.0
        %2329 = vmatprep.subr.mxu0 0.0
        %2330 = vmatpush1.msra.mxu0 0.0
        %2331 = vmatprep.subr.mxu0 0.0
        %2332 = vmatpush1.msra.mxu0 0.0
        %2333 = vmatprep.subr.mxu0 0.0
        %2334 = vmatpush1.msra.mxu0 0.0
        %2335 = vmatprep.subr.mxu0 0.0
        %2336 = vmatpush1.msra.mxu0 0.0
        %2337 = vmatprep.subr.mxu0 0.0
        %2338 = vmatpush1.msra.mxu0 0.0
        %2339 = vmatprep.subr.mxu0 0.0
        %2340 = vmatpush1.msra.mxu0 0.0
        %2341 = vmatprep.subr.mxu0 0.0
        %2342 = vmatpush1.msra.mxu0 0.0
        %2343 = vmatprep.subr.mxu0 0.0
        %2344 = vmatpush1.msra.mxu0 0.0
        %2345 = vmatprep.subr.mxu0 0.0
        %2346 = vmatpush1.msra.mxu0 0.0
        %2347 = vmatprep.subr.mxu0 0.0
        %2348 = vmatpush1.msra.mxu0 0.0
        %2349 = vmatprep.subr.mxu0 0.0
        %2350 = vmatpush1.msra.mxu0 0.0
        %2351 = vmatprep.subr.mxu0 0.0
        %2352 = vmatpush1.msra.mxu0 0.0
        %2353 = vmatprep.subr.mxu0 0.0
        %2354 = vmatpush1.msra.mxu0 0.0
        %2355 = vmatprep.subr.mxu0 0.0
        %2356 = vmatpush1.msra.mxu0 0.0
        %2357 = vmatprep.subr.mxu0 0.0
        %2358 = vmatpush1.msra.mxu0 0.0
        %2359 = vmatprep.subr.mxu0 0.0
        %2360 = vmatpush1.msra.mxu0 0.0
        %2361 = vmatprep.subr.mxu0 0.0
        %2362 = vmatpush1.msra.mxu0 0.0
        %2363 = vmatprep.subr.mxu0 0.0
        %2364 = vmatpush1.msra.mxu0 0.0
        %2365 = vmatprep.subr.mxu0 0.0
        %2366 = vmatpush1.msra.mxu0 0.0
        %2367 = vmatprep.subr.mxu0 0.0
        %2368 = vmatpush1.msra.mxu0 0.0
        %2369 = vmatprep.subr.mxu0 0.0
        %2370 = vmatpush1.msra.mxu0 0.0
        %2371 = vmatprep.subr.mxu0 0.0
        %2372 = vmatpush1.msra.mxu0 0.0
        %2373 = vmatprep.subr.mxu0 0.0
        %2374 = vmatpush1.msra.mxu0 0.0
        %2375 = vmatprep.subr.mxu0 0.0
        %2376 = vmatpush1.msra.mxu0 0.0
        %2377 = vmatprep.subr.mxu0 0.0
        %2378 = vmatpush1.msra.mxu0 0.0
        %2379 = vmatprep.subr.mxu0 0.0
        %2380 = vmatpush1.msra.mxu0 0.0
        %2381 = vmatprep.subr.mxu0 0.0
        %2382 = vmatpush1.msra.mxu0 0.0
        %2383 = vmatprep.mubr.f32.mxu0 0.0
        %2384 = vmatmul.mubr.f32.gmra.mrb[0].mxu0 %v1253
        %v2385 = vpop.f32.mrb[0].mxu0
        %v2386 = vadd.f32 0.0, %v2385
        %v2387 = vpop.f32.mrb[0].mxu0
        %2388 = vmatprep.mubr.f32.mxu0 0.0
        %2389 = vmatmul.mubr.f32.gmra.mrb[0].mxu0 %v1255
        %v2390 = vpop.f32.mrb[0].mxu0
        %v2391 = vadd.f32 0.0, %v2390
        %v2392 = vpop.f32.mrb[0].mxu0
        %2393 = vmatprep.mubr.f32.mxu0 0.0
        %2394 = vmatmul.mubr.f32.gmra.mrb[0].mxu0 %v1257
        %v2395 = vpop.f32.mrb[0].mxu0
        %v2396 = vadd.f32 0.0, %v2395
        %v2397 = vpop.f32.mrb[0].mxu0
        %2398 = vmatprep.mubr.f32.mxu0 0.0
        %2399 = vmatmul.mubr.f32.gmra.mrb[0].mxu0 %v1259
        %v2400 = vpop.f32.mrb[0].mxu0
        %v2401 = vadd.f32 0.0, %v2400
        %v2402 = vpop.f32.mrb[0].mxu0
        %2403 = vmatprep.mubr.f32.mxu0 0.0
        %2404 = vmatmul.mubr.f32.gmra.mrb[0].mxu0 %v1261
        %v2405 = vpop.f32.mrb[0].mxu0
        %v2406 = vadd.f32 0.0, %v2405
        %v2407 = vpop.f32.mrb[0].mxu0
        %2408 = vmatprep.mubr.f32.mxu0 0.0
        %2409 = vmatmul.mubr.f32.gmra.mrb[0].mxu0 %v1263
        %v2410 = vpop.f32.mrb[0].mxu0
        %v2411 = vadd.f32 0.0, %v2410
        %v2412 = vpop.f32.mrb[0].mxu0
        %2413 = vmatprep.mubr.f32.mxu0 0.0
        %2414 = vmatmul.mubr.f32.gmra.mrb[0].mxu0 %v1265
        %v2415 = vpop.f32.mrb[0].mxu0
        %v2416 = vadd.f32 0.0, %v2415
        %v2417 = vpop.f32.mrb[0].mxu0
        %2418 = vmatprep.mubr.f32.mxu0 0.0
        %2419 = vmatmul.mubr.f32.gmra.mrb[0].mxu0 %v1267
        %v2420 = vpop.f32.mrb[0].mxu0
        %v2421 = vadd.f32 0.0, %v2420
        %v2422 = vpop.f32.mrb[0].mxu0
        %2423 = vmatprep.mubr.f32.mxu0 0.0
        %2424 = vmatmul.mubr.f32.gmra.mrb[0].mxu0 %v1269
        %v2425 = vpop.f32.mrb[0].mxu0
        %v2426 = vadd.f32 0.0, %v2425
        %v2427 = vpop.f32.mrb[0].mxu0
        %2428 = vmatprep.mubr.f32.mxu0 0.0
        %2429 = vmatmul.mubr.f32.gmra.mrb[0].mxu0 %v1271
        %v2430 = vpop.f32.mrb[0].mxu0
        %v2431 = vadd.f32 0.0, %v2430
        %v2432 = vpop.f32.mrb[0].mxu0
        %2433 = vmatprep.mubr.f32.mxu0 0.0
        %2434 = vmatmul.mubr.f32.gmra.mrb[0].mxu0 %v1273
        %v2435 = vpop.f32.mrb[0].mxu0
        %v2436 = vadd.f32 0.0, %v2435
        %v2437 = vpop.f32.mrb[0].mxu0
        %2438 = vmatprep.mubr.f32.mxu0 0.0
        %2439 = vmatmul.mubr.f32.gmra.mrb[0].mxu0 %v1275
        %v2440 = vpop.f32.mrb[0].mxu0
        %v2441 = vadd.f32 0.0, %v2440
        %v2442 = vpop.f32.mrb[0].mxu0
        %2443 = vmatprep.mubr.f32.mxu0 0.0
        %2444 = vmatmul.mubr.f32.gmra.mrb[0].mxu0 %v1277
        %v2445 = vpop.f32.mrb[0].mxu0
        %v2446 = vadd.f32 0.0, %v2445
        %v2447 = vpop.f32.mrb[0].mxu0
        %2448 = vmatprep.mubr.f32.mxu0 0.0
        %2449 = vmatmul.mubr.f32.gmra.mrb[0].mxu0 %v1279
        %v2450 = vpop.f32.mrb[0].mxu0
        %v2451 = vadd.f32 0.0, %v2450
        %v2452 = vpop.f32.mrb[0].mxu0
        %2453 = vmatprep.mubr.f32.mxu0 0.0
        %2454 = vmatmul.mubr.f32.gmra.mrb[0].mxu0 %v1281
        %v2455 = vpop.f32.mrb[0].mxu0
        %v2456 = vadd.f32 0.0, %v2455
        %v2457 = vpop.f32.mrb[0].mxu0
        %2458 = vmatprep.mubr.f32.mxu0 0.0
        %2459 = vmatmul.mubr.f32.gmra.mrb[0].mxu0 %v1283
        %v2460 = vpop.f32.mrb[0].mxu0
        %v2461 = vadd.f32 0.0, %v2460
        %v2462 = vpop.f32.mrb[0].mxu0
        %2463 = vmatprep.mubr.f32.mxu0 0.0
        %2464 = vmatmul.mubr.f32.gmra.mrb[0].mxu0 %v1285
        %v2465 = vpop.f32.mrb[0].mxu0
        %v2466 = vadd.f32 0.0, %v2465
        %v2467 = vpop.f32.mrb[0].mxu0
        %2468 = vmatprep.mubr.f32.mxu0 0.0
        %2469 = vmatmul.mubr.f32.gmra.mrb[0].mxu0 %v1287
        %v2470 = vpop.f32.mrb[0].mxu0
        %v2471 = vadd.f32 0.0, %v2470
        %v2472 = vpop.f32.mrb[0].mxu0
        %2473 = vmatprep.mubr.f32.mxu0 0.0
        %2474 = vmatmul.mubr.f32.gmra.mrb[0].mxu0 %v1289
        %v2475 = vpop.f32.mrb[0].mxu0
        %v2476 = vadd.f32 0.0, %v2475
        %v2477 = vpop.f32.mrb[0].mxu0
        %2478 = vmatprep.mubr.f32.mxu0 0.0
        %2479 = vmatmul.mubr.f32.gmra.mrb[0].mxu0 %v1291
        %v2480 = vpop.f32.mrb[0].mxu0
        %v2481 = vadd.f32 0.0, %v2480
        %v2482 = vpop.f32.mrb[0].mxu0
        %2483 = vmatprep.mubr.f32.mxu0 0.0
        %2484 = vmatmul.mubr.f32.gmra.mrb[0].mxu0 %v1293
        %v2485 = vpop.f32.mrb[0].mxu0
        %v2486 = vadd.f32 0.0, %v2485
        %v2487 = vpop.f32.mrb[0].mxu0
        %2488 = vmatprep.mubr.f32.mxu0 0.0
        %2489 = vmatmul.mubr.f32.gmra.mrb[0].mxu0 %v1295
        %v2490 = vpop.f32.mrb[0].mxu0
        %v2491 = vadd.f32 0.0, %v2490
        %v2492 = vpop.f32.mrb[0].mxu0
        %2493 = vmatprep.mubr.f32.mxu0 0.0
        %2494 = vmatmul.mubr.f32.gmra.mrb[0].mxu0 %v1297
        %v2495 = vpop.f32.mrb[0].mxu0
        %v2496 = vadd.f32 0.0, %v2495
        %v2497 = vpop.f32.mrb[0].mxu0
        %2498 = vmatprep.mubr.f32.mxu0 0.0
        %2499 = vmatmul.mubr.f32.gmra.mrb[0].mxu0 %v1299
        %v2500 = vpop.f32.mrb[0].mxu0
        %v2501 = vadd.f32 0.0, %v2500
        %v2502 = vpop.f32.mrb[0].mxu0
        %2503 = vmatprep.mubr.f32.mxu0 0.0
        %2504 = vmatmul.mubr.f32.gmra.mrb[0].mxu0 %v1301
        %v2505 = vpop.f32.mrb[0].mxu0
        %v2506 = vadd.f32 0.0, %v2505
        %v2507 = vpop.f32.mrb[0].mxu0
        %2508 = vmatprep.mubr.f32.mxu0 0.0
        %2509 = vmatmul.mubr.f32.gmra.mrb[0].mxu0 %v1303
        %v2510 = vpop.f32.mrb[0].mxu0
        %v2511 = vadd.f32 0.0, %v2510
        %v2512 = vpop.f32.mrb[0].mxu0
        %2513 = vmatprep.mubr.f32.mxu0 0.0
        %2514 = vmatmul.mubr.f32.gmra.mrb[0].mxu0 %v1305
        %v2515 = vpop.f32.mrb[0].mxu0
        %v2516 = vadd.f32 0.0, %v2515
        %v2517 = vpop.f32.mrb[0].mxu0
        %2518 = vmatprep.mubr.f32.mxu0 0.0
        %2519 = vmatmul.mubr.f32.gmra.mrb[0].mxu0 %v1307
        %v2520 = vpop.f32.mrb[0].mxu0
        %v2521 = vadd.f32 0.0, %v2520
        %v2522 = vpop.f32.mrb[0].mxu0
        %2523 = vmatprep.mubr.f32.mxu0 0.0
        %2524 = vmatmul.mubr.f32.gmra.mrb[0].mxu0 %v1309
        %v2525 = vpop.f32.mrb[0].mxu0
        %v2526 = vadd.f32 0.0, %v2525
        %v2527 = vpop.f32.mrb[0].mxu0
        %2528 = vmatprep.mubr.f32.mxu0 0.0
        %2529 = vmatmul.mubr.f32.gmra.mrb[0].mxu0 %v1311
        %v2530 = vpop.f32.mrb[0].mxu0
        %v2531 = vadd.f32 0.0, %v2530
        %v2532 = vpop.f32.mrb[0].mxu0
        %2533 = vmatprep.mubr.f32.mxu0 0.0
        %2534 = vmatmul.mubr.f32.gmra.mrb[0].mxu0 %v2312
        %v2535 = vpop.f32.mrb[0].mxu0
        %v2536 = vadd.f32 0.0, %v2535
        %v2537 = vpop.f32.mrb[0].mxu0
        %2538 = vmatprep.mubr.f32.mxu0 0.0
        %2539 = vmatmul.mubr.f32.gmra.mrb[0].mxu0 %v2314
        %v2540 = vpop.f32.mrb[0].mxu0
        %v2541 = vadd.f32 0.0, %v2540
        %v2542 = vpop.f32.mrb[0].mxu0
        %2543 = vdwg.mxu0
        %v2544 = vld [vmem:[#allocation2] sm:$0xff]
        %v2545 = vld [vmem:[#allocation2 + $0x8] sm:$0xff]
        %v2546 = vld [vmem:[#allocation2 + $0x10] sm:$0xff]
        %v2547 = vld [vmem:[#allocation2 + $0x18] sm:$0xff]
        %v2548 = vld [vmem:[#allocation2 + $0x20] sm:$0xff]
        %v2549 = vld [vmem:[#allocation2 + $0x28] sm:$0xff]
        %v2550 = vld [vmem:[#allocation2 + $0x30] sm:$0xff]
        %v2551 = vld [vmem:[#allocation2 + $0x38] sm:$0xff]
        %v2552 = vld [vmem:[#allocation2 + $0x40] sm:$0xff]
        %v2553 = vld [vmem:[#allocation2 + $0x48] sm:$0xff]
        %v2554 = vld [vmem:[#allocation2 + $0x50] sm:$0xff]
        %v2555 = vld [vmem:[#allocation2 + $0x58] sm:$0xff]
        %v2556 = vld [vmem:[#allocation2 + $0x60] sm:$0xff]
        %v2557 = vld [vmem:[#allocation2 + $0x68] sm:$0xff]
        %v2558 = vld [vmem:[#allocation2 + $0x70] sm:$0xff]
        %v2559 = vld [vmem:[#allocation2 + $0x78] sm:$0xff]
        %v2560 = vld [vmem:[#allocation2 + $0x80] sm:$0xff]
        %v2561 = vld [vmem:[#allocation2 + $0x88] sm:$0xff]
        %v2562 = vld [vmem:[#allocation2 + $0x90] sm:$0xff]
        %v2563 = vld [vmem:[#allocation2 + $0x98] sm:$0xff]
        %v2564 = vld [vmem:[#allocation2 + $0xa0] sm:$0xff]
        %v2565 = vld [vmem:[#allocation2 + $0xa8] sm:$0xff]
        %v2566 = vld [vmem:[#allocation2 + $0xb0] sm:$0xff]
        %v2567 = vld [vmem:[#allocation2 + $0xb8] sm:$0xff]
        %v2568 = vld [vmem:[#allocation2 + $0xc0] sm:$0xff]
        %v2569 = vld [vmem:[#allocation2 + $0xc8] sm:$0xff]
        %v2570 = vld [vmem:[#allocation2 + $0xd0] sm:$0xff]
        %v2571 = vld [vmem:[#allocation2 + $0xd8] sm:$0xff]
        %v2572 = vld [vmem:[#allocation2 + $0xe0] sm:$0xff]
        %v2573 = vld [vmem:[#allocation2 + $0xe8] sm:$0xff]
        %v2574 = vld [vmem:[#allocation2 + $0xf0] sm:$0xff]
        %v2575 = vld [vmem:[#allocation2 + $0xf8] sm:$0xff]
        %v2576 = vadd.f32 %v2544, %v2386
        %v2577 = vadd.f32 %v2545, %v2391
        %v2578 = vadd.f32 %v2546, %v2396
        %v2579 = vadd.f32 %v2547, %v2401
        %v2580 = vadd.f32 %v2548, %v2406
        %v2581 = vadd.f32 %v2549, %v2411
        %v2582 = vadd.f32 %v2550, %v2416
        %v2583 = vadd.f32 %v2551, %v2421
        %v2584 = vadd.f32 %v2552, %v2426
        %v2585 = vadd.f32 %v2553, %v2431
        %v2586 = vadd.f32 %v2554, %v2436
        %v2587 = vadd.f32 %v2555, %v2441
        %v2588 = vadd.f32 %v2556, %v2446
        %v2589 = vadd.f32 %v2557, %v2451
        %v2590 = vadd.f32 %v2558, %v2456
        %v2591 = vadd.f32 %v2559, %v2461
        %v2592 = vadd.f32 %v2560, %v2466
        %v2593 = vadd.f32 %v2561, %v2471
        %v2594 = vadd.f32 %v2562, %v2476
        %v2595 = vadd.f32 %v2563, %v2481
        %v2596 = vadd.f32 %v2564, %v2486
        %v2597 = vadd.f32 %v2565, %v2491
        %v2598 = vadd.f32 %v2566, %v2496
        %v2599 = vadd.f32 %v2567, %v2501
        %v2600 = vadd.f32 %v2568, %v2506
        %v2601 = vadd.f32 %v2569, %v2511
        %v2602 = vadd.f32 %v2570, %v2516
        %v2603 = vadd.f32 %v2571, %v2521
        %v2604 = vadd.f32 %v2572, %v2526
        %v2605 = vadd.f32 %v2573, %v2531
        %v2606 = vadd.f32 %v2574, %v2536
        %v2607 = vadd.f32 %v2575, %v2541
        %2608 = vst [vmem:[#allocation2] sm:$0xff] %v2576
        %2609 = vst [vmem:[#allocation2 + $0x8] sm:$0xff] %v2577
        %2610 = vst [vmem:[#allocation2 + $0x10] sm:$0xff] %v2578
        %2611 = vst [vmem:[#allocation2 + $0x18] sm:$0xff] %v2579
        %2612 = vst [vmem:[#allocation2 + $0x20] sm:$0xff] %v2580
        %2613 = vst [vmem:[#allocation2 + $0x28] sm:$0xff] %v2581
        %2614 = vst [vmem:[#allocation2 + $0x30] sm:$0xff] %v2582
        %2615 = vst [vmem:[#allocation2 + $0x38] sm:$0xff] %v2583
        %2616 = vst [vmem:[#allocation2 + $0x40] sm:$0xff] %v2584
        %2617 = vst [vmem:[#allocation2 + $0x48] sm:$0xff] %v2585
        %2618 = vst [vmem:[#allocation2 + $0x50] sm:$0xff] %v2586
        %2619 = vst [vmem:[#allocation2 + $0x58] sm:$0xff] %v2587
        %2620 = vst [vmem:[#allocation2 + $0x60] sm:$0xff] %v2588
        %2621 = vst [vmem:[#allocation2 + $0x68] sm:$0xff] %v2589
        %2622 = vst [vmem:[#allocation2 + $0x70] sm:$0xff] %v2590
        %2623 = vst [vmem:[#allocation2 + $0x78] sm:$0xff] %v2591
        %2624 = vst [vmem:[#allocation2 + $0x80] sm:$0xff] %v2592
        %2625 = vst [vmem:[#allocation2 + $0x88] sm:$0xff] %v2593
        %2626 = vst [vmem:[#allocation2 + $0x90] sm:$0xff] %v2594
        %2627 = vst [vmem:[#allocation2 + $0x98] sm:$0xff] %v2595
        %2628 = vst [vmem:[#allocation2 + $0xa0] sm:$0xff] %v2596
        %2629 = vst [vmem:[#allocation2 + $0xa8] sm:$0xff] %v2597
        %2630 = vst [vmem:[#allocation2 + $0xb0] sm:$0xff] %v2598
        %2631 = vst [vmem:[#allocation2 + $0xb8] sm:$0xff] %v2599
        %2632 = vst [vmem:[#allocation2 + $0xc0] sm:$0xff] %v2600
        %2633 = vst [vmem:[#allocation2 + $0xc8] sm:$0xff] %v2601
        %2634 = vst [vmem:[#allocation2 + $0xd0] sm:$0xff] %v2602
        %2635 = vst [vmem:[#allocation2 + $0xd8] sm:$0xff] %v2603
        %2636 = vst [vmem:[#allocation2 + $0xe0] sm:$0xff] %v2604
        %2637 = vst [vmem:[#allocation2 + $0xe8] sm:$0xff] %v2605
        %2638 = vst [vmem:[#allocation2 + $0xf0] sm:$0xff] %v2606
        %2639 = vst [vmem:[#allocation2 + $0xf8] sm:$0xff] %v2607
        %s2640 = scalar_lea.vmem %s1, 24
        %v2641 = vld [vmem:[%s2640] sm:$0xf]
        %v2643 = vsel %vm321, %v317, 0
        %v2646 = vsel %vm321, %v318, 0
        %v2649 = vsel %vm418, %v2641, 0
        %2651 = vmatprep.subr.mxu0 0.0
        %2652 = vmatpush1.msra.mxu0 %v2649
        %2653 = vmatprep.subr.mxu0 0.0
        %2654 = vmatpush1.msra.mxu0 0.0
        %2655 = vmatprep.subr.mxu0 0.0
        %2656 = vmatpush1.msra.mxu0 0.0
        %2657 = vmatprep.subr.mxu0 0.0
        %2658 = vmatpush1.msra.mxu0 0.0
        %2659 = vmatprep.subr.mxu0 0.0
        %2660 = vmatpush1.msra.mxu0 0.0
        %2661 = vmatprep.subr.mxu0 0.0
        %2662 = vmatpush1.msra.mxu0 0.0
        %2663 = vmatprep.subr.mxu0 0.0
        %2664 = vmatpush1.msra.mxu0 0.0
        %2665 = vmatprep.subr.mxu0 0.0
        %2666 = vmatpush1.msra.mxu0 0.0
        %2667 = vmatprep.subr.mxu0 0.0
        %2668 = vmatpush1.msra.mxu0 0.0
        %2669 = vmatprep.subr.mxu0 0.0
        %2670 = vmatpush1.msra.mxu0 0.0
        %2671 = vmatprep.subr.mxu0 0.0
        %2672 = vmatpush1.msra.mxu0 0.0
        %2673 = vmatprep.subr.mxu0 0.0
        %2674 = vmatpush1.msra.mxu0 0.0
        %2675 = vmatprep.subr.mxu0 0.0
        %2676 = vmatpush1.msra.mxu0 0.0
        %2677 = vmatprep.subr.mxu0 0.0
        %2678 = vmatpush1.msra.mxu0 0.0
        %2679 = vmatprep.subr.mxu0 0.0
        %2680 = vmatpush1.msra.mxu0 0.0
        %2681 = vmatprep.subr.mxu0 0.0
        %2682 = vmatpush1.msra.mxu0 0.0
        %2683 = vmatprep.subr.mxu0 0.0
        %2684 = vmatpush1.msra.mxu0 0.0
        %2685 = vmatprep.subr.mxu0 0.0
        %2686 = vmatpush1.msra.mxu0 0.0
        %2687 = vmatprep.subr.mxu0 0.0
        %2688 = vmatpush1.msra.mxu0 0.0
        %2689 = vmatprep.subr.mxu0 0.0
        %2690 = vmatpush1.msra.mxu0 0.0
        %2691 = vmatprep.subr.mxu0 0.0
        %2692 = vmatpush1.msra.mxu0 0.0
        %2693 = vmatprep.subr.mxu0 0.0
        %2694 = vmatpush1.msra.mxu0 0.0
        %2695 = vmatprep.subr.mxu0 0.0
        %2696 = vmatpush1.msra.mxu0 0.0
        %2697 = vmatprep.subr.mxu0 0.0
        %2698 = vmatpush1.msra.mxu0 0.0
        %2699 = vmatprep.subr.mxu0 0.0
        %2700 = vmatpush1.msra.mxu0 0.0
        %2701 = vmatprep.subr.mxu0 0.0
        %2702 = vmatpush1.msra.mxu0 0.0
        %2703 = vmatprep.subr.mxu0 0.0
        %2704 = vmatpush1.msra.mxu0 0.0
        %2705 = vmatprep.subr.mxu0 0.0
        %2706 = vmatpush1.msra.mxu0 0.0
        %2707 = vmatprep.subr.mxu0 0.0
        %2708 = vmatpush1.msra.mxu0 0.0
        %2709 = vmatprep.subr.mxu0 0.0
        %2710 = vmatpush1.msra.mxu0 0.0
        %2711 = vmatprep.subr.mxu0 0.0
        %2712 = vmatpush1.msra.mxu0 0.0
        %2713 = vmatprep.subr.mxu0 0.0
        %2714 = vmatpush1.msra.mxu0 0.0
        %2715 = vmatprep.mubr.f32.mxu0 0.0
        %2716 = vmatmul.mubr.f32.gmra.mrb[0].mxu0 %v335
        %v2717 = vpop.f32.mrb[0].mxu0
        %v2718 = vadd.f32 0.0, %v2717
        %v2719 = vpop.f32.mrb[0].mxu0
        %2720 = vmatprep.mubr.f32.mxu0 0.0
        %2721 = vmatmul.mubr.f32.gmra.mrb[0].mxu0 %v338
        %v2722 = vpop.f32.mrb[0].mxu0
        %v2723 = vadd.f32 0.0, %v2722
        %v2724 = vpop.f32.mrb[0].mxu0
        %2725 = vmatprep.mubr.f32.mxu0 0.0
        %2726 = vmatmul.mubr.f32.gmra.mrb[0].mxu0 %v341
        %v2727 = vpop.f32.mrb[0].mxu0
        %v2728 = vadd.f32 0.0, %v2727
        %v2729 = vpop.f32.mrb[0].mxu0
        %2730 = vmatprep.mubr.f32.mxu0 0.0
        %2731 = vmatmul.mubr.f32.gmra.mrb[0].mxu0 %v344
        %v2732 = vpop.f32.mrb[0].mxu0
        %v2733 = vadd.f32 0.0, %v2732
        %v2734 = vpop.f32.mrb[0].mxu0
        %2735 = vmatprep.mubr.f32.mxu0 0.0
        %2736 = vmatmul.mubr.f32.gmra.mrb[0].mxu0 %v347
        %v2737 = vpop.f32.mrb[0].mxu0
        %v2738 = vadd.f32 0.0, %v2737
        %v2739 = vpop.f32.mrb[0].mxu0
        %2740 = vmatprep.mubr.f32.mxu0 0.0
        %2741 = vmatmul.mubr.f32.gmra.mrb[0].mxu0 %v350
        %v2742 = vpop.f32.mrb[0].mxu0
        %v2743 = vadd.f32 0.0, %v2742
        %v2744 = vpop.f32.mrb[0].mxu0
        %2745 = vmatprep.mubr.f32.mxu0 0.0
        %2746 = vmatmul.mubr.f32.gmra.mrb[0].mxu0 %v353
        %v2747 = vpop.f32.mrb[0].mxu0
        %v2748 = vadd.f32 0.0, %v2747
        %v2749 = vpop.f32.mrb[0].mxu0
        %2750 = vmatprep.mubr.f32.mxu0 0.0
        %2751 = vmatmul.mubr.f32.gmra.mrb[0].mxu0 %v356
        %v2752 = vpop.f32.mrb[0].mxu0
        %v2753 = vadd.f32 0.0, %v2752
        %v2754 = vpop.f32.mrb[0].mxu0
        %2755 = vmatprep.mubr.f32.mxu0 0.0
        %2756 = vmatmul.mubr.f32.gmra.mrb[0].mxu0 %v359
        %v2757 = vpop.f32.mrb[0].mxu0
        %v2758 = vadd.f32 0.0, %v2757
        %v2759 = vpop.f32.mrb[0].mxu0
        %2760 = vmatprep.mubr.f32.mxu0 0.0
        %2761 = vmatmul.mubr.f32.gmra.mrb[0].mxu0 %v362
        %v2762 = vpop.f32.mrb[0].mxu0
        %v2763 = vadd.f32 0.0, %v2762
        %v2764 = vpop.f32.mrb[0].mxu0
        %2765 = vmatprep.mubr.f32.mxu0 0.0
        %2766 = vmatmul.mubr.f32.gmra.mrb[0].mxu0 %v365
        %v2767 = vpop.f32.mrb[0].mxu0
        %v2768 = vadd.f32 0.0, %v2767
        %v2769 = vpop.f32.mrb[0].mxu0
        %2770 = vmatprep.mubr.f32.mxu0 0.0
        %2771 = vmatmul.mubr.f32.gmra.mrb[0].mxu0 %v368
        %v2772 = vpop.f32.mrb[0].mxu0
        %v2773 = vadd.f32 0.0, %v2772
        %v2774 = vpop.f32.mrb[0].mxu0
        %2775 = vmatprep.mubr.f32.mxu0 0.0
        %2776 = vmatmul.mubr.f32.gmra.mrb[0].mxu0 %v371
        %v2777 = vpop.f32.mrb[0].mxu0
        %v2778 = vadd.f32 0.0, %v2777
        %v2779 = vpop.f32.mrb[0].mxu0
        %2780 = vmatprep.mubr.f32.mxu0 0.0
        %2781 = vmatmul.mubr.f32.gmra.mrb[0].mxu0 %v374
        %v2782 = vpop.f32.mrb[0].mxu0
        %v2783 = vadd.f32 0.0, %v2782
        %v2784 = vpop.f32.mrb[0].mxu0
        %2785 = vmatprep.mubr.f32.mxu0 0.0
        %2786 = vmatmul.mubr.f32.gmra.mrb[0].mxu0 %v377
        %v2787 = vpop.f32.mrb[0].mxu0
        %v2788 = vadd.f32 0.0, %v2787
        %v2789 = vpop.f32.mrb[0].mxu0
        %2790 = vmatprep.mubr.f32.mxu0 0.0
        %2791 = vmatmul.mubr.f32.gmra.mrb[0].mxu0 %v380
        %v2792 = vpop.f32.mrb[0].mxu0
        %v2793 = vadd.f32 0.0, %v2792
        %v2794 = vpop.f32.mrb[0].mxu0
        %2795 = vmatprep.mubr.f32.mxu0 0.0
        %2796 = vmatmul.mubr.f32.gmra.mrb[0].mxu0 %v383
        %v2797 = vpop.f32.mrb[0].mxu0
        %v2798 = vadd.f32 0.0, %v2797
        %v2799 = vpop.f32.mrb[0].mxu0
        %2800 = vmatprep.mubr.f32.mxu0 0.0
        %2801 = vmatmul.mubr.f32.gmra.mrb[0].mxu0 %v386
        %v2802 = vpop.f32.mrb[0].mxu0
        %v2803 = vadd.f32 0.0, %v2802
        %v2804 = vpop.f32.mrb[0].mxu0
        %2805 = vmatprep.mubr.f32.mxu0 0.0
        %2806 = vmatmul.mubr.f32.gmra.mrb[0].mxu0 %v389
        %v2807 = vpop.f32.mrb[0].mxu0
        %v2808 = vadd.f32 0.0, %v2807
        %v2809 = vpop.f32.mrb[0].mxu0
        %2810 = vmatprep.mubr.f32.mxu0 0.0
        %2811 = vmatmul.mubr.f32.gmra.mrb[0].mxu0 %v392
        %v2812 = vpop.f32.mrb[0].mxu0
        %v2813 = vadd.f32 0.0, %v2812
        %v2814 = vpop.f32.mrb[0].mxu0
        %2815 = vmatprep.mubr.f32.mxu0 0.0
        %2816 = vmatmul.mubr.f32.gmra.mrb[0].mxu0 %v395
        %v2817 = vpop.f32.mrb[0].mxu0
        %v2818 = vadd.f32 0.0, %v2817
        %v2819 = vpop.f32.mrb[0].mxu0
        %2820 = vmatprep.mubr.f32.mxu0 0.0
        %2821 = vmatmul.mubr.f32.gmra.mrb[0].mxu0 %v398
        %v2822 = vpop.f32.mrb[0].mxu0
        %v2823 = vadd.f32 0.0, %v2822
        %v2824 = vpop.f32.mrb[0].mxu0
        %2825 = vmatprep.mubr.f32.mxu0 0.0
        %2826 = vmatmul.mubr.f32.gmra.mrb[0].mxu0 %v401
        %v2827 = vpop.f32.mrb[0].mxu0
        %v2828 = vadd.f32 0.0, %v2827
        %v2829 = vpop.f32.mrb[0].mxu0
        %2830 = vmatprep.mubr.f32.mxu0 0.0
        %2831 = vmatmul.mubr.f32.gmra.mrb[0].mxu0 %v404
        %v2832 = vpop.f32.mrb[0].mxu0
        %v2833 = vadd.f32 0.0, %v2832
        %v2834 = vpop.f32.mrb[0].mxu0
        %2835 = vmatprep.mubr.f32.mxu0 0.0
        %2836 = vmatmul.mubr.f32.gmra.mrb[0].mxu0 %v407
        %v2837 = vpop.f32.mrb[0].mxu0
        %v2838 = vadd.f32 0.0, %v2837
        %v2839 = vpop.f32.mrb[0].mxu0
        %2840 = vmatprep.mubr.f32.mxu0 0.0
        %2841 = vmatmul.mubr.f32.gmra.mrb[0].mxu0 %v410
        %v2842 = vpop.f32.mrb[0].mxu0
        %v2843 = vadd.f32 0.0, %v2842
        %v2844 = vpop.f32.mrb[0].mxu0
        %2845 = vmatprep.mubr.f32.mxu0 0.0
        %2846 = vmatmul.mubr.f32.gmra.mrb[0].mxu0 %v413
        %v2847 = vpop.f32.mrb[0].mxu0
        %v2848 = vadd.f32 0.0, %v2847
        %v2849 = vpop.f32.mrb[0].mxu0
        %2850 = vmatprep.mubr.f32.mxu0 0.0
        %2851 = vmatmul.mubr.f32.gmra.mrb[0].mxu0 %v416
        %v2852 = vpop.f32.mrb[0].mxu0
        %v2853 = vadd.f32 0.0, %v2852
        %v2854 = vpop.f32.mrb[0].mxu0
        %2855 = vmatprep.mubr.f32.mxu0 0.0
        %2856 = vmatmul.mubr.f32.gmra.mrb[0].mxu0 %v1640
        %v2857 = vpop.f32.mrb[0].mxu0
        %v2858 = vadd.f32 0.0, %v2857
        %v2859 = vpop.f32.mrb[0].mxu0
        %2860 = vmatprep.mubr.f32.mxu0 0.0
        %2861 = vmatmul.mubr.f32.gmra.mrb[0].mxu0 %v1643
        %v2862 = vpop.f32.mrb[0].mxu0
        %v2863 = vadd.f32 0.0, %v2862
        %v2864 = vpop.f32.mrb[0].mxu0
        %2865 = vmatprep.mubr.f32.mxu0 0.0
        %2866 = vmatmul.mubr.f32.gmra.mrb[0].mxu0 %v2643
        %v2867 = vpop.f32.mrb[0].mxu0
        %v2868 = vadd.f32 0.0, %v2867
        %v2869 = vpop.f32.mrb[0].mxu0
        %2870 = vmatprep.mubr.f32.mxu0 0.0
        %2871 = vmatmul.mubr.f32.gmra.mrb[0].mxu0 %v2646
        %v2872 = vpop.f32.mrb[0].mxu0
        %v2873 = vadd.f32 0.0, %v2872
        %v2874 = vpop.f32.mrb[0].mxu0
        %2875 = vdwg.mxu0
        %v2876 = vld [vmem:[#allocation2] sm:$0xff]
        %v2877 = vld [vmem:[#allocation2 + $0x8] sm:$0xff]
        %v2878 = vld [vmem:[#allocation2 + $0x10] sm:$0xff]
        %v2879 = vld [vmem:[#allocation2 + $0x18] sm:$0xff]
        %v2880 = vld [vmem:[#allocation2 + $0x20] sm:$0xff]
        %v2881 = vld [vmem:[#allocation2 + $0x28] sm:$0xff]
        %v2882 = vld [vmem:[#allocation2 + $0x30] sm:$0xff]
        %v2883 = vld [vmem:[#allocation2 + $0x38] sm:$0xff]
        %v2884 = vld [vmem:[#allocation2 + $0x40] sm:$0xff]
        %v2885 = vld [vmem:[#allocation2 + $0x48] sm:$0xff]
        %v2886 = vld [vmem:[#allocation2 + $0x50] sm:$0xff]
        %v2887 = vld [vmem:[#allocation2 + $0x58] sm:$0xff]
        %v2888 = vld [vmem:[#allocation2 + $0x60] sm:$0xff]
        %v2889 = vld [vmem:[#allocation2 + $0x68] sm:$0xff]
        %v2890 = vld [vmem:[#allocation2 + $0x70] sm:$0xff]
        %v2891 = vld [vmem:[#allocation2 + $0x78] sm:$0xff]
        %v2892 = vld [vmem:[#allocation2 + $0x80] sm:$0xff]
        %v2893 = vld [vmem:[#allocation2 + $0x88] sm:$0xff]
        %v2894 = vld [vmem:[#allocation2 + $0x90] sm:$0xff]
        %v2895 = vld [vmem:[#allocation2 + $0x98] sm:$0xff]
        %v2896 = vld [vmem:[#allocation2 + $0xa0] sm:$0xff]
        %v2897 = vld [vmem:[#allocation2 + $0xa8] sm:$0xff]
        %v2898 = vld [vmem:[#allocation2 + $0xb0] sm:$0xff]
        %v2899 = vld [vmem:[#allocation2 + $0xb8] sm:$0xff]
        %v2900 = vld [vmem:[#allocation2 + $0xc0] sm:$0xff]
        %v2901 = vld [vmem:[#allocation2 + $0xc8] sm:$0xff]
        %v2902 = vld [vmem:[#allocation2 + $0xd0] sm:$0xff]
        %v2903 = vld [vmem:[#allocation2 + $0xd8] sm:$0xff]
        %v2904 = vld [vmem:[#allocation2 + $0xe0] sm:$0xff]
        %v2905 = vld [vmem:[#allocation2 + $0xe8] sm:$0xff]
        %v2906 = vld [vmem:[#allocation2 + $0xf0] sm:$0xff]
        %v2907 = vld [vmem:[#allocation2 + $0xf8] sm:$0xff]
        %v2908 = vadd.f32 %v2876, %v2718
        %v2909 = vadd.f32 %v2877, %v2723
        %v2910 = vadd.f32 %v2878, %v2728
        %v2911 = vadd.f32 %v2879, %v2733
        %v2912 = vadd.f32 %v2880, %v2738
        %v2913 = vadd.f32 %v2881, %v2743
        %v2914 = vadd.f32 %v2882, %v2748
        %v2915 = vadd.f32 %v2883, %v2753
        %v2916 = vadd.f32 %v2884, %v2758
        %v2917 = vadd.f32 %v2885, %v2763
        %v2918 = vadd.f32 %v2886, %v2768
        %v2919 = vadd.f32 %v2887, %v2773
        %v2920 = vadd.f32 %v2888, %v2778
        %v2921 = vadd.f32 %v2889, %v2783
        %v2922 = vadd.f32 %v2890, %v2788
        %v2923 = vadd.f32 %v2891, %v2793
        %v2924 = vadd.f32 %v2892, %v2798
        %v2925 = vadd.f32 %v2893, %v2803
        %v2926 = vadd.f32 %v2894, %v2808
        %v2927 = vadd.f32 %v2895, %v2813
        %v2928 = vadd.f32 %v2896, %v2818
        %v2929 = vadd.f32 %v2897, %v2823
        %v2930 = vadd.f32 %v2898, %v2828
        %v2931 = vadd.f32 %v2899, %v2833
        %v2932 = vadd.f32 %v2900, %v2838
        %v2933 = vadd.f32 %v2901, %v2843
        %v2934 = vadd.f32 %v2902, %v2848
        %v2935 = vadd.f32 %v2903, %v2853
        %v2936 = vadd.f32 %v2904, %v2858
        %v2937 = vadd.f32 %v2905, %v2863
        %v2938 = vadd.f32 %v2906, %v2868
        %v2939 = vadd.f32 %v2907, %v2873
        %2940 = vst [vmem:[#allocation2] sm:$0xff] %v2908
        %2941 = vst [vmem:[#allocation2 + $0x8] sm:$0xff] %v2909
        %2942 = vst [vmem:[#allocation2 + $0x10] sm:$0xff] %v2910
        %2943 = vst [vmem:[#allocation2 + $0x18] sm:$0xff] %v2911
        %2944 = vst [vmem:[#allocation2 + $0x20] sm:$0xff] %v2912
        %2945 = vst [vmem:[#allocation2 + $0x28] sm:$0xff] %v2913
        %2946 = vst [vmem:[#allocation2 + $0x30] sm:$0xff] %v2914
        %2947 = vst [vmem:[#allocation2 + $0x38] sm:$0xff] %v2915
        %2948 = vst [vmem:[#allocation2 + $0x40] sm:$0xff] %v2916
        %2949 = vst [vmem:[#allocation2 + $0x48] sm:$0xff] %v2917
        %2950 = vst [vmem:[#allocation2 + $0x50] sm:$0xff] %v2918
        %2951 = vst [vmem:[#allocation2 + $0x58] sm:$0xff] %v2919
        %2952 = vst [vmem:[#allocation2 + $0x60] sm:$0xff] %v2920
        %2953 = vst [vmem:[#allocation2 + $0x68] sm:$0xff] %v2921
        %2954 = vst [vmem:[#allocation2 + $0x70] sm:$0xff] %v2922
        %2955 = vst [vmem:[#allocation2 + $0x78] sm:$0xff] %v2923
        %2956 = vst [vmem:[#allocation2 + $0x80] sm:$0xff] %v2924
        %2957 = vst [vmem:[#allocation2 + $0x88] sm:$0xff] %v2925
        %2958 = vst [vmem:[#allocation2 + $0x90] sm:$0xff] %v2926
        %2959 = vst [vmem:[#allocation2 + $0x98] sm:$0xff] %v2927
        %2960 = vst [vmem:[#allocation2 + $0xa0] sm:$0xff] %v2928
        %2961 = vst [vmem:[#allocation2 + $0xa8] sm:$0xff] %v2929
        %2962 = vst [vmem:[#allocation2 + $0xb0] sm:$0xff] %v2930
        %2963 = vst [vmem:[#allocation2 + $0xb8] sm:$0xff] %v2931
        %2964 = vst [vmem:[#allocation2 + $0xc0] sm:$0xff] %v2932
        %2965 = vst [vmem:[#allocation2 + $0xc8] sm:$0xff] %v2933
        %2966 = vst [vmem:[#allocation2 + $0xd0] sm:$0xff] %v2934
        %2967 = vst [vmem:[#allocation2 + $0xd8] sm:$0xff] %v2935
        %2968 = vst [vmem:[#allocation2 + $0xe0] sm:$0xff] %v2936
        %2969 = vst [vmem:[#allocation2 + $0xe8] sm:$0xff] %v2937
        %2970 = vst [vmem:[#allocation2 + $0xf0] sm:$0xff] %v2938
        %2971 = vst [vmem:[#allocation2 + $0xf8] sm:$0xff] %v2939
        %v2973 = vrot.slane %v317, 1
        %v2974 = vrot.slane %v318, 1
        %v2975 = vsel %vm695, %v2973, %v2974
        %v2976 = vrot.slane %v319, 1
        %v2977 = vsel %vm695, %v2974, %v2976
        %s2978 = scalar_lea.vmem %s1, 28
        %v2979 = vld [vmem:[%s2978] sm:$0xf]
        %v2980 = vsel %vm321, %v2975, 0
        %v2982 = vsel %vm321, %v2977, 0
        %v2985 = vsel %vm418, %v2979, 0
        %2987 = vmatprep.subr.mxu0 0.0
        %2988 = vmatpush1.msra.mxu0 %v2985
        %2989 = vmatprep.subr.mxu0 0.0
        %2990 = vmatpush1.msra.mxu0 0.0
        %2991 = vmatprep.subr.mxu0 0.0
        %2992 = vmatpush1.msra.mxu0 0.0
        %2993 = vmatprep.subr.mxu0 0.0
        %2994 = vmatpush1.msra.mxu0 0.0
        %2995 = vmatprep.subr.mxu0 0.0
        %2996 = vmatpush1.msra.mxu0 0.0
        %2997 = vmatprep.subr.mxu0 0.0
        %2998 = vmatpush1.msra.mxu0 0.0
        %2999 = vmatprep.subr.mxu0 0.0
        %3000 = vmatpush1.msra.mxu0 0.0
        %3001 = vmatprep.subr.mxu0 0.0
        %3002 = vmatpush1.msra.mxu0 0.0
        %3003 = vmatprep.subr.mxu0 0.0
        %3004 = vmatpush1.msra.mxu0 0.0
        %3005 = vmatprep.subr.mxu0 0.0
        %3006 = vmatpush1.msra.mxu0 0.0
        %3007 = vmatprep.subr.mxu0 0.0
        %3008 = vmatpush1.msra.mxu0 0.0
        %3009 = vmatprep.subr.mxu0 0.0
        %3010 = vmatpush1.msra.mxu0 0.0
        %3011 = vmatprep.subr.mxu0 0.0
        %3012 = vmatpush1.msra.mxu0 0.0
        %3013 = vmatprep.subr.mxu0 0.0
        %3014 = vmatpush1.msra.mxu0 0.0
        %3015 = vmatprep.subr.mxu0 0.0
        %3016 = vmatpush1.msra.mxu0 0.0
        %3017 = vmatprep.subr.mxu0 0.0
        %3018 = vmatpush1.msra.mxu0 0.0
        %3019 = vmatprep.subr.mxu0 0.0
        %3020 = vmatpush1.msra.mxu0 0.0
        %3021 = vmatprep.subr.mxu0 0.0
        %3022 = vmatpush1.msra.mxu0 0.0
        %3023 = vmatprep.subr.mxu0 0.0
        %3024 = vmatpush1.msra.mxu0 0.0
        %3025 = vmatprep.subr.mxu0 0.0
        %3026 = vmatpush1.msra.mxu0 0.0
        %3027 = vmatprep.subr.mxu0 0.0
        %3028 = vmatpush1.msra.mxu0 0.0
        %3029 = vmatprep.subr.mxu0 0.0
        %3030 = vmatpush1.msra.mxu0 0.0
        %3031 = vmatprep.subr.mxu0 0.0
        %3032 = vmatpush1.msra.mxu0 0.0
        %3033 = vmatprep.subr.mxu0 0.0
        %3034 = vmatpush1.msra.mxu0 0.0
        %3035 = vmatprep.subr.mxu0 0.0
        %3036 = vmatpush1.msra.mxu0 0.0
        %3037 = vmatprep.subr.mxu0 0.0
        %3038 = vmatpush1.msra.mxu0 0.0
        %3039 = vmatprep.subr.mxu0 0.0
        %3040 = vmatpush1.msra.mxu0 0.0
        %3041 = vmatprep.subr.mxu0 0.0
        %3042 = vmatpush1.msra.mxu0 0.0
        %3043 = vmatprep.subr.mxu0 0.0
        %3044 = vmatpush1.msra.mxu0 0.0
        %3045 = vmatprep.subr.mxu0 0.0
        %3046 = vmatpush1.msra.mxu0 0.0
        %3047 = vmatprep.subr.mxu0 0.0
        %3048 = vmatpush1.msra.mxu0 0.0
        %3049 = vmatprep.subr.mxu0 0.0
        %3050 = vmatpush1.msra.mxu0 0.0
        %3051 = vmatprep.mubr.f32.mxu0 0.0
        %3052 = vmatmul.mubr.f32.gmra.mrb[0].mxu0 %v786
        %v3053 = vpop.f32.mrb[0].mxu0
        %v3054 = vadd.f32 0.0, %v3053
        %v3055 = vpop.f32.mrb[0].mxu0
        %3056 = vmatprep.mubr.f32.mxu0 0.0
        %3057 = vmatmul.mubr.f32.gmra.mrb[0].mxu0 %v788
        %v3058 = vpop.f32.mrb[0].mxu0
        %v3059 = vadd.f32 0.0, %v3058
        %v3060 = vpop.f32.mrb[0].mxu0
        %3061 = vmatprep.mubr.f32.mxu0 0.0
        %3062 = vmatmul.mubr.f32.gmra.mrb[0].mxu0 %v790
        %v3063 = vpop.f32.mrb[0].mxu0
        %v3064 = vadd.f32 0.0, %v3063
        %v3065 = vpop.f32.mrb[0].mxu0
        %3066 = vmatprep.mubr.f32.mxu0 0.0
        %3067 = vmatmul.mubr.f32.gmra.mrb[0].mxu0 %v792
        %v3068 = vpop.f32.mrb[0].mxu0
        %v3069 = vadd.f32 0.0, %v3068
        %v3070 = vpop.f32.mrb[0].mxu0
        %3071 = vmatprep.mubr.f32.mxu0 0.0
        %3072 = vmatmul.mubr.f32.gmra.mrb[0].mxu0 %v794
        %v3073 = vpop.f32.mrb[0].mxu0
        %v3074 = vadd.f32 0.0, %v3073
        %v3075 = vpop.f32.mrb[0].mxu0
        %3076 = vmatprep.mubr.f32.mxu0 0.0
        %3077 = vmatmul.mubr.f32.gmra.mrb[0].mxu0 %v796
        %v3078 = vpop.f32.mrb[0].mxu0
        %v3079 = vadd.f32 0.0, %v3078
        %v3080 = vpop.f32.mrb[0].mxu0
        %3081 = vmatprep.mubr.f32.mxu0 0.0
        %3082 = vmatmul.mubr.f32.gmra.mrb[0].mxu0 %v798
        %v3083 = vpop.f32.mrb[0].mxu0
        %v3084 = vadd.f32 0.0, %v3083
        %v3085 = vpop.f32.mrb[0].mxu0
        %3086 = vmatprep.mubr.f32.mxu0 0.0
        %3087 = vmatmul.mubr.f32.gmra.mrb[0].mxu0 %v800
        %v3088 = vpop.f32.mrb[0].mxu0
        %v3089 = vadd.f32 0.0, %v3088
        %v3090 = vpop.f32.mrb[0].mxu0
        %3091 = vmatprep.mubr.f32.mxu0 0.0
        %3092 = vmatmul.mubr.f32.gmra.mrb[0].mxu0 %v802
        %v3093 = vpop.f32.mrb[0].mxu0
        %v3094 = vadd.f32 0.0, %v3093
        %v3095 = vpop.f32.mrb[0].mxu0
        %3096 = vmatprep.mubr.f32.mxu0 0.0
        %3097 = vmatmul.mubr.f32.gmra.mrb[0].mxu0 %v804
        %v3098 = vpop.f32.mrb[0].mxu0
        %v3099 = vadd.f32 0.0, %v3098
        %v3100 = vpop.f32.mrb[0].mxu0
        %3101 = vmatprep.mubr.f32.mxu0 0.0
        %3102 = vmatmul.mubr.f32.gmra.mrb[0].mxu0 %v806
        %v3103 = vpop.f32.mrb[0].mxu0
        %v3104 = vadd.f32 0.0, %v3103
        %v3105 = vpop.f32.mrb[0].mxu0
        %3106 = vmatprep.mubr.f32.mxu0 0.0
        %3107 = vmatmul.mubr.f32.gmra.mrb[0].mxu0 %v808
        %v3108 = vpop.f32.mrb[0].mxu0
        %v3109 = vadd.f32 0.0, %v3108
        %v3110 = vpop.f32.mrb[0].mxu0
        %3111 = vmatprep.mubr.f32.mxu0 0.0
        %3112 = vmatmul.mubr.f32.gmra.mrb[0].mxu0 %v810
        %v3113 = vpop.f32.mrb[0].mxu0
        %v3114 = vadd.f32 0.0, %v3113
        %v3115 = vpop.f32.mrb[0].mxu0
        %3116 = vmatprep.mubr.f32.mxu0 0.0
        %3117 = vmatmul.mubr.f32.gmra.mrb[0].mxu0 %v812
        %v3118 = vpop.f32.mrb[0].mxu0
        %v3119 = vadd.f32 0.0, %v3118
        %v3120 = vpop.f32.mrb[0].mxu0
        %3121 = vmatprep.mubr.f32.mxu0 0.0
        %3122 = vmatmul.mubr.f32.gmra.mrb[0].mxu0 %v814
        %v3123 = vpop.f32.mrb[0].mxu0
        %v3124 = vadd.f32 0.0, %v3123
        %v3125 = vpop.f32.mrb[0].mxu0
        %3126 = vmatprep.mubr.f32.mxu0 0.0
        %3127 = vmatmul.mubr.f32.gmra.mrb[0].mxu0 %v816
        %v3128 = vpop.f32.mrb[0].mxu0
        %v3129 = vadd.f32 0.0, %v3128
        %v3130 = vpop.f32.mrb[0].mxu0
        %3131 = vmatprep.mubr.f32.mxu0 0.0
        %3132 = vmatmul.mubr.f32.gmra.mrb[0].mxu0 %v818
        %v3133 = vpop.f32.mrb[0].mxu0
        %v3134 = vadd.f32 0.0, %v3133
        %v3135 = vpop.f32.mrb[0].mxu0
        %3136 = vmatprep.mubr.f32.mxu0 0.0
        %3137 = vmatmul.mubr.f32.gmra.mrb[0].mxu0 %v820
        %v3138 = vpop.f32.mrb[0].mxu0
        %v3139 = vadd.f32 0.0, %v3138
        %v3140 = vpop.f32.mrb[0].mxu0
        %3141 = vmatprep.mubr.f32.mxu0 0.0
        %3142 = vmatmul.mubr.f32.gmra.mrb[0].mxu0 %v822
        %v3143 = vpop.f32.mrb[0].mxu0
        %v3144 = vadd.f32 0.0, %v3143
        %v3145 = vpop.f32.mrb[0].mxu0
        %3146 = vmatprep.mubr.f32.mxu0 0.0
        %3147 = vmatmul.mubr.f32.gmra.mrb[0].mxu0 %v824
        %v3148 = vpop.f32.mrb[0].mxu0
        %v3149 = vadd.f32 0.0, %v3148
        %v3150 = vpop.f32.mrb[0].mxu0
        %3151 = vmatprep.mubr.f32.mxu0 0.0
        %3152 = vmatmul.mubr.f32.gmra.mrb[0].mxu0 %v826
        %v3153 = vpop.f32.mrb[0].mxu0
        %v3154 = vadd.f32 0.0, %v3153
        %v3155 = vpop.f32.mrb[0].mxu0
        %3156 = vmatprep.mubr.f32.mxu0 0.0
        %3157 = vmatmul.mubr.f32.gmra.mrb[0].mxu0 %v828
        %v3158 = vpop.f32.mrb[0].mxu0
        %v3159 = vadd.f32 0.0, %v3158
        %v3160 = vpop.f32.mrb[0].mxu0
        %3161 = vmatprep.mubr.f32.mxu0 0.0
        %3162 = vmatmul.mubr.f32.gmra.mrb[0].mxu0 %v830
        %v3163 = vpop.f32.mrb[0].mxu0
        %v3164 = vadd.f32 0.0, %v3163
        %v3165 = vpop.f32.mrb[0].mxu0
        %3166 = vmatprep.mubr.f32.mxu0 0.0
        %3167 = vmatmul.mubr.f32.gmra.mrb[0].mxu0 %v832
        %v3168 = vpop.f32.mrb[0].mxu0
        %v3169 = vadd.f32 0.0, %v3168
        %v3170 = vpop.f32.mrb[0].mxu0
        %3171 = vmatprep.mubr.f32.mxu0 0.0
        %3172 = vmatmul.mubr.f32.gmra.mrb[0].mxu0 %v834
        %v3173 = vpop.f32.mrb[0].mxu0
        %v3174 = vadd.f32 0.0, %v3173
        %v3175 = vpop.f32.mrb[0].mxu0
        %3176 = vmatprep.mubr.f32.mxu0 0.0
        %3177 = vmatmul.mubr.f32.gmra.mrb[0].mxu0 %v836
        %v3178 = vpop.f32.mrb[0].mxu0
        %v3179 = vadd.f32 0.0, %v3178
        %v3180 = vpop.f32.mrb[0].mxu0
        %3181 = vmatprep.mubr.f32.mxu0 0.0
        %3182 = vmatmul.mubr.f32.gmra.mrb[0].mxu0 %v838
        %v3183 = vpop.f32.mrb[0].mxu0
        %v3184 = vadd.f32 0.0, %v3183
        %v3185 = vpop.f32.mrb[0].mxu0
        %3186 = vmatprep.mubr.f32.mxu0 0.0
        %3187 = vmatmul.mubr.f32.gmra.mrb[0].mxu0 %v840
        %v3188 = vpop.f32.mrb[0].mxu0
        %v3189 = vadd.f32 0.0, %v3188
        %v3190 = vpop.f32.mrb[0].mxu0
        %3191 = vmatprep.mubr.f32.mxu0 0.0
        %3192 = vmatmul.mubr.f32.gmra.mrb[0].mxu0 %v1977
        %v3193 = vpop.f32.mrb[0].mxu0
        %v3194 = vadd.f32 0.0, %v3193
        %v3195 = vpop.f32.mrb[0].mxu0
        %3196 = vmatprep.mubr.f32.mxu0 0.0
        %3197 = vmatmul.mubr.f32.gmra.mrb[0].mxu0 %v1979
        %v3198 = vpop.f32.mrb[0].mxu0
        %v3199 = vadd.f32 0.0, %v3198
        %v3200 = vpop.f32.mrb[0].mxu0
        %3201 = vmatprep.mubr.f32.mxu0 0.0
        %3202 = vmatmul.mubr.f32.gmra.mrb[0].mxu0 %v2980
        %v3203 = vpop.f32.mrb[0].mxu0
        %v3204 = vadd.f32 0.0, %v3203
        %v3205 = vpop.f32.mrb[0].mxu0
        %3206 = vmatprep.mubr.f32.mxu0 0.0
        %3207 = vmatmul.mubr.f32.gmra.mrb[0].mxu0 %v2982
        %v3208 = vpop.f32.mrb[0].mxu0
        %v3209 = vadd.f32 0.0, %v3208
        %v3210 = vpop.f32.mrb[0].mxu0
        %3211 = vdwg.mxu0
        %v3212 = vld [vmem:[#allocation2] sm:$0xff]
        %v3213 = vld [vmem:[#allocation2 + $0x8] sm:$0xff]
        %v3214 = vld [vmem:[#allocation2 + $0x10] sm:$0xff]
        %v3215 = vld [vmem:[#allocation2 + $0x18] sm:$0xff]
        %v3216 = vld [vmem:[#allocation2 + $0x20] sm:$0xff]
        %v3217 = vld [vmem:[#allocation2 + $0x28] sm:$0xff]
        %v3218 = vld [vmem:[#allocation2 + $0x30] sm:$0xff]
        %v3219 = vld [vmem:[#allocation2 + $0x38] sm:$0xff]
        %v3220 = vld [vmem:[#allocation2 + $0x40] sm:$0xff]
        %v3221 = vld [vmem:[#allocation2 + $0x48] sm:$0xff]
        %v3222 = vld [vmem:[#allocation2 + $0x50] sm:$0xff]
        %v3223 = vld [vmem:[#allocation2 + $0x58] sm:$0xff]
        %v3224 = vld [vmem:[#allocation2 + $0x60] sm:$0xff]
        %v3225 = vld [vmem:[#allocation2 + $0x68] sm:$0xff]
        %v3226 = vld [vmem:[#allocation2 + $0x70] sm:$0xff]
        %v3227 = vld [vmem:[#allocation2 + $0x78] sm:$0xff]
        %v3228 = vld [vmem:[#allocation2 + $0x80] sm:$0xff]
        %v3229 = vld [vmem:[#allocation2 + $0x88] sm:$0xff]
        %v3230 = vld [vmem:[#allocation2 + $0x90] sm:$0xff]
        %v3231 = vld [vmem:[#allocation2 + $0x98] sm:$0xff]
        %v3232 = vld [vmem:[#allocation2 + $0xa0] sm:$0xff]
        %v3233 = vld [vmem:[#allocation2 + $0xa8] sm:$0xff]
        %v3234 = vld [vmem:[#allocation2 + $0xb0] sm:$0xff]
        %v3235 = vld [vmem:[#allocation2 + $0xb8] sm:$0xff]
        %v3236 = vld [vmem:[#allocation2 + $0xc0] sm:$0xff]
        %v3237 = vld [vmem:[#allocation2 + $0xc8] sm:$0xff]
        %v3238 = vld [vmem:[#allocation2 + $0xd0] sm:$0xff]
        %v3239 = vld [vmem:[#allocation2 + $0xd8] sm:$0xff]
        %v3240 = vld [vmem:[#allocation2 + $0xe0] sm:$0xff]
        %v3241 = vld [vmem:[#allocation2 + $0xe8] sm:$0xff]
        %v3242 = vld [vmem:[#allocation2 + $0xf0] sm:$0xff]
        %v3243 = vld [vmem:[#allocation2 + $0xf8] sm:$0xff]
        %v3244 = vadd.f32 %v3212, %v3054
        %v3245 = vadd.f32 %v3213, %v3059
        %v3246 = vadd.f32 %v3214, %v3064
        %v3247 = vadd.f32 %v3215, %v3069
        %v3248 = vadd.f32 %v3216, %v3074
        %v3249 = vadd.f32 %v3217, %v3079
        %v3250 = vadd.f32 %v3218, %v3084
        %v3251 = vadd.f32 %v3219, %v3089
        %v3252 = vadd.f32 %v3220, %v3094
        %v3253 = vadd.f32 %v3221, %v3099
        %v3254 = vadd.f32 %v3222, %v3104
        %v3255 = vadd.f32 %v3223, %v3109
        %v3256 = vadd.f32 %v3224, %v3114
        %v3257 = vadd.f32 %v3225, %v3119
        %v3258 = vadd.f32 %v3226, %v3124
        %v3259 = vadd.f32 %v3227, %v3129
        %v3260 = vadd.f32 %v3228, %v3134
        %v3261 = vadd.f32 %v3229, %v3139
        %v3262 = vadd.f32 %v3230, %v3144
        %v3263 = vadd.f32 %v3231, %v3149
        %v3264 = vadd.f32 %v3232, %v3154
        %v3265 = vadd.f32 %v3233, %v3159
        %v3266 = vadd.f32 %v3234, %v3164
        %v3267 = vadd.f32 %v3235, %v3169
        %v3268 = vadd.f32 %v3236, %v3174
        %v3269 = vadd.f32 %v3237, %v3179
        %v3270 = vadd.f32 %v3238, %v3184
        %v3271 = vadd.f32 %v3239, %v3189
        %v3272 = vadd.f32 %v3240, %v3194
        %v3273 = vadd.f32 %v3241, %v3199
        %v3274 = vadd.f32 %v3242, %v3204
        %v3275 = vadd.f32 %v3243, %v3209
        %3276 = vst [vmem:[#allocation2] sm:$0xff] %v3244
        %3277 = vst [vmem:[#allocation2 + $0x8] sm:$0xff] %v3245
        %3278 = vst [vmem:[#allocation2 + $0x10] sm:$0xff] %v3246
        %3279 = vst [vmem:[#allocation2 + $0x18] sm:$0xff] %v3247
        %3280 = vst [vmem:[#allocation2 + $0x20] sm:$0xff] %v3248
        %3281 = vst [vmem:[#allocation2 + $0x28] sm:$0xff] %v3249
        %3282 = vst [vmem:[#allocation2 + $0x30] sm:$0xff] %v3250
        %3283 = vst [vmem:[#allocation2 + $0x38] sm:$0xff] %v3251
        %3284 = vst [vmem:[#allocation2 + $0x40] sm:$0xff] %v3252
        %3285 = vst [vmem:[#allocation2 + $0x48] sm:$0xff] %v3253
        %3286 = vst [vmem:[#allocation2 + $0x50] sm:$0xff] %v3254
        %3287 = vst [vmem:[#allocation2 + $0x58] sm:$0xff] %v3255
        %3288 = vst [vmem:[#allocation2 + $0x60] sm:$0xff] %v3256
        %3289 = vst [vmem:[#allocation2 + $0x68] sm:$0xff] %v3257
        %3290 = vst [vmem:[#allocation2 + $0x70] sm:$0xff] %v3258
        %3291 = vst [vmem:[#allocation2 + $0x78] sm:$0xff] %v3259
        %3292 = vst [vmem:[#allocation2 + $0x80] sm:$0xff] %v3260
        %3293 = vst [vmem:[#allocation2 + $0x88] sm:$0xff] %v3261
        %3294 = vst [vmem:[#allocation2 + $0x90] sm:$0xff] %v3262
        %3295 = vst [vmem:[#allocation2 + $0x98] sm:$0xff] %v3263
        %3296 = vst [vmem:[#allocation2 + $0xa0] sm:$0xff] %v3264
        %3297 = vst [vmem:[#allocation2 + $0xa8] sm:$0xff] %v3265
        %3298 = vst [vmem:[#allocation2 + $0xb0] sm:$0xff] %v3266
        %3299 = vst [vmem:[#allocation2 + $0xb8] sm:$0xff] %v3267
        %3300 = vst [vmem:[#allocation2 + $0xc0] sm:$0xff] %v3268
        %3301 = vst [vmem:[#allocation2 + $0xc8] sm:$0xff] %v3269
        %3302 = vst [vmem:[#allocation2 + $0xd0] sm:$0xff] %v3270
        %3303 = vst [vmem:[#allocation2 + $0xd8] sm:$0xff] %v3271
        %3304 = vst [vmem:[#allocation2 + $0xe0] sm:$0xff] %v3272
        %3305 = vst [vmem:[#allocation2 + $0xe8] sm:$0xff] %v3273
        %3306 = vst [vmem:[#allocation2 + $0xf0] sm:$0xff] %v3274
        %3307 = vst [vmem:[#allocation2 + $0xf8] sm:$0xff] %v3275
        %v3308 = vrot.slane %v317, 2
        %v3309 = vrot.slane %v318, 2
        %v3310 = vsel %vm1166, %v3308, %v3309
        %v3311 = vrot.slane %v319, 2
        %v3312 = vsel %vm1166, %v3309, %v3311
        %s3313 = scalar_lea.vmem %s1, 32
        %v3314 = vld [vmem:[%s3313] sm:$0xf]
        %v3315 = vsel %vm321, %v3310, 0
        %v3317 = vsel %vm321, %v3312, 0
        %v3320 = vsel %vm418, %v3314, 0
        %3322 = vmatprep.subr.mxu0 0.0
        %3323 = vmatpush1.msra.mxu0 %v3320
        %3324 = vmatprep.subr.mxu0 0.0
        %3325 = vmatpush1.msra.mxu0 0.0
        %3326 = vmatprep.subr.mxu0 0.0
        %3327 = vmatpush1.msra.mxu0 0.0
        %3328 = vmatprep.subr.mxu0 0.0
        %3329 = vmatpush1.msra.mxu0 0.0
        %3330 = vmatprep.subr.mxu0 0.0
        %3331 = vmatpush1.msra.mxu0 0.0
        %3332 = vmatprep.subr.mxu0 0.0
        %3333 = vmatpush1.msra.mxu0 0.0
        %3334 = vmatprep.subr.mxu0 0.0
        %3335 = vmatpush1.msra.mxu0 0.0
        %3336 = vmatprep.subr.mxu0 0.0
        %3337 = vmatpush1.msra.mxu0 0.0
        %3338 = vmatprep.subr.mxu0 0.0
        %3339 = vmatpush1.msra.mxu0 0.0
        %3340 = vmatprep.subr.mxu0 0.0
        %3341 = vmatpush1.msra.mxu0 0.0
        %3342 = vmatprep.subr.mxu0 0.0
        %3343 = vmatpush1.msra.mxu0 0.0
        %3344 = vmatprep.subr.mxu0 0.0
        %3345 = vmatpush1.msra.mxu0 0.0
        %3346 = vmatprep.subr.mxu0 0.0
        %3347 = vmatpush1.msra.mxu0 0.0
        %3348 = vmatprep.subr.mxu0 0.0
        %3349 = vmatpush1.msra.mxu0 0.0
        %3350 = vmatprep.subr.mxu0 0.0
        %3351 = vmatpush1.msra.mxu0 0.0
        %3352 = vmatprep.subr.mxu0 0.0
        %3353 = vmatpush1.msra.mxu0 0.0
        %3354 = vmatprep.subr.mxu0 0.0
        %3355 = vmatpush1.msra.mxu0 0.0
        %3356 = vmatprep.subr.mxu0 0.0
        %3357 = vmatpush1.msra.mxu0 0.0
        %3358 = vmatprep.subr.mxu0 0.0
        %3359 = vmatpush1.msra.mxu0 0.0
        %3360 = vmatprep.subr.mxu0 0.0
        %3361 = vmatpush1.msra.mxu0 0.0
        %3362 = vmatprep.subr.mxu0 0.0
        %3363 = vmatpush1.msra.mxu0 0.0
        %3364 = vmatprep.subr.mxu0 0.0
        %3365 = vmatpush1.msra.mxu0 0.0
        %3366 = vmatprep.subr.mxu0 0.0
        %3367 = vmatpush1.msra.mxu0 0.0
        %3368 = vmatprep.subr.mxu0 0.0
        %3369 = vmatpush1.msra.mxu0 0.0
        %3370 = vmatprep.subr.mxu0 0.0
        %3371 = vmatpush1.msra.mxu0 0.0
        %3372 = vmatprep.subr.mxu0 0.0
        %3373 = vmatpush1.msra.mxu0 0.0
        %3374 = vmatprep.subr.mxu0 0.0
        %3375 = vmatpush1.msra.mxu0 0.0
        %3376 = vmatprep.subr.mxu0 0.0
        %3377 = vmatpush1.msra.mxu0 0.0
        %3378 = vmatprep.subr.mxu0 0.0
        %3379 = vmatpush1.msra.mxu0 0.0
        %3380 = vmatprep.subr.mxu0 0.0
        %3381 = vmatpush1.msra.mxu0 0.0
        %3382 = vmatprep.subr.mxu0 0.0
        %3383 = vmatpush1.msra.mxu0 0.0
        %3384 = vmatprep.subr.mxu0 0.0
        %3385 = vmatpush1.msra.mxu0 0.0
        %3386 = vmatprep.mubr.f32.mxu0 0.0
        %3387 = vmatmul.mubr.f32.gmra.mrb[0].mxu0 %v1257
        %v3388 = vpop.f32.mrb[0].mxu0
        %v3389 = vadd.f32 0.0, %v3388
        %v3390 = vpop.f32.mrb[0].mxu0
        %3391 = vmatprep.mubr.f32.mxu0 0.0
        %3392 = vmatmul.mubr.f32.gmra.mrb[0].mxu0 %v1259
        %v3393 = vpop.f32.mrb[0].mxu0
        %v3394 = vadd.f32 0.0, %v3393
        %v3395 = vpop.f32.mrb[0].mxu0
        %3396 = vmatprep.mubr.f32.mxu0 0.0
        %3397 = vmatmul.mubr.f32.gmra.mrb[0].mxu0 %v1261
        %v3398 = vpop.f32.mrb[0].mxu0
        %v3399 = vadd.f32 0.0, %v3398
        %v3400 = vpop.f32.mrb[0].mxu0
        %3401 = vmatprep.mubr.f32.mxu0 0.0
        %3402 = vmatmul.mubr.f32.gmra.mrb[0].mxu0 %v1263
        %v3403 = vpop.f32.mrb[0].mxu0
        %v3404 = vadd.f32 0.0, %v3403
        %v3405 = vpop.f32.mrb[0].mxu0
        %3406 = vmatprep.mubr.f32.mxu0 0.0
        %3407 = vmatmul.mubr.f32.gmra.mrb[0].mxu0 %v1265
        %v3408 = vpop.f32.mrb[0].mxu0
        %v3409 = vadd.f32 0.0, %v3408
        %v3410 = vpop.f32.mrb[0].mxu0
        %3411 = vmatprep.mubr.f32.mxu0 0.0
        %3412 = vmatmul.mubr.f32.gmra.mrb[0].mxu0 %v1267
        %v3413 = vpop.f32.mrb[0].mxu0
        %v3414 = vadd.f32 0.0, %v3413
        %v3415 = vpop.f32.mrb[0].mxu0
        %3416 = vmatprep.mubr.f32.mxu0 0.0
        %3417 = vmatmul.mubr.f32.gmra.mrb[0].mxu0 %v1269
        %v3418 = vpop.f32.mrb[0].mxu0
        %v3419 = vadd.f32 0.0, %v3418
        %v3420 = vpop.f32.mrb[0].mxu0
        %3421 = vmatprep.mubr.f32.mxu0 0.0
        %3422 = vmatmul.mubr.f32.gmra.mrb[0].mxu0 %v1271
        %v3423 = vpop.f32.mrb[0].mxu0
        %v3424 = vadd.f32 0.0, %v3423
        %v3425 = vpop.f32.mrb[0].mxu0
        %3426 = vmatprep.mubr.f32.mxu0 0.0
        %3427 = vmatmul.mubr.f32.gmra.mrb[0].mxu0 %v1273
        %v3428 = vpop.f32.mrb[0].mxu0
        %v3429 = vadd.f32 0.0, %v3428
        %v3430 = vpop.f32.mrb[0].mxu0
        %3431 = vmatprep.mubr.f32.mxu0 0.0
        %3432 = vmatmul.mubr.f32.gmra.mrb[0].mxu0 %v1275
        %v3433 = vpop.f32.mrb[0].mxu0
        %v3434 = vadd.f32 0.0, %v3433
        %v3435 = vpop.f32.mrb[0].mxu0
        %3436 = vmatprep.mubr.f32.mxu0 0.0
        %3437 = vmatmul.mubr.f32.gmra.mrb[0].mxu0 %v1277
        %v3438 = vpop.f32.mrb[0].mxu0
        %v3439 = vadd.f32 0.0, %v3438
        %v3440 = vpop.f32.mrb[0].mxu0
        %3441 = vmatprep.mubr.f32.mxu0 0.0
        %3442 = vmatmul.mubr.f32.gmra.mrb[0].mxu0 %v1279
        %v3443 = vpop.f32.mrb[0].mxu0
        %v3444 = vadd.f32 0.0, %v3443
        %v3445 = vpop.f32.mrb[0].mxu0
        %3446 = vmatprep.mubr.f32.mxu0 0.0
        %3447 = vmatmul.mubr.f32.gmra.mrb[0].mxu0 %v1281
        %v3448 = vpop.f32.mrb[0].mxu0
        %v3449 = vadd.f32 0.0, %v3448
        %v3450 = vpop.f32.mrb[0].mxu0
        %3451 = vmatprep.mubr.f32.mxu0 0.0
        %3452 = vmatmul.mubr.f32.gmra.mrb[0].mxu0 %v1283
        %v3453 = vpop.f32.mrb[0].mxu0
        %v3454 = vadd.f32 0.0, %v3453
        %v3455 = vpop.f32.mrb[0].mxu0
        %3456 = vmatprep.mubr.f32.mxu0 0.0
        %3457 = vmatmul.mubr.f32.gmra.mrb[0].mxu0 %v1285
        %v3458 = vpop.f32.mrb[0].mxu0
        %v3459 = vadd.f32 0.0, %v3458
        %v3460 = vpop.f32.mrb[0].mxu0
        %3461 = vmatprep.mubr.f32.mxu0 0.0
        %3462 = vmatmul.mubr.f32.gmra.mrb[0].mxu0 %v1287
        %v3463 = vpop.f32.mrb[0].mxu0
        %v3464 = vadd.f32 0.0, %v3463
        %v3465 = vpop.f32.mrb[0].mxu0
        %3466 = vmatprep.mubr.f32.mxu0 0.0
        %3467 = vmatmul.mubr.f32.gmra.mrb[0].mxu0 %v1289
        %v3468 = vpop.f32.mrb[0].mxu0
        %v3469 = vadd.f32 0.0, %v3468
        %v3470 = vpop.f32.mrb[0].mxu0
        %3471 = vmatprep.mubr.f32.mxu0 0.0
        %3472 = vmatmul.mubr.f32.gmra.mrb[0].mxu0 %v1291
        %v3473 = vpop.f32.mrb[0].mxu0
        %v3474 = vadd.f32 0.0, %v3473
        %v3475 = vpop.f32.mrb[0].mxu0
        %3476 = vmatprep.mubr.f32.mxu0 0.0
        %3477 = vmatmul.mubr.f32.gmra.mrb[0].mxu0 %v1293
        %v3478 = vpop.f32.mrb[0].mxu0
        %v3479 = vadd.f32 0.0, %v3478
        %v3480 = vpop.f32.mrb[0].mxu0
        %3481 = vmatprep.mubr.f32.mxu0 0.0
        %3482 = vmatmul.mubr.f32.gmra.mrb[0].mxu0 %v1295
        %v3483 = vpop.f32.mrb[0].mxu0
        %v3484 = vadd.f32 0.0, %v3483
        %v3485 = vpop.f32.mrb[0].mxu0
        %3486 = vmatprep.mubr.f32.mxu0 0.0
        %3487 = vmatmul.mubr.f32.gmra.mrb[0].mxu0 %v1297
        %v3488 = vpop.f32.mrb[0].mxu0
        %v3489 = vadd.f32 0.0, %v3488
        %v3490 = vpop.f32.mrb[0].mxu0
        %3491 = vmatprep.mubr.f32.mxu0 0.0
        %3492 = vmatmul.mubr.f32.gmra.mrb[0].mxu0 %v1299
        %v3493 = vpop.f32.mrb[0].mxu0
        %v3494 = vadd.f32 0.0, %v3493
        %v3495 = vpop.f32.mrb[0].mxu0
        %3496 = vmatprep.mubr.f32.mxu0 0.0
        %3497 = vmatmul.mubr.f32.gmra.mrb[0].mxu0 %v1301
        %v3498 = vpop.f32.mrb[0].mxu0
        %v3499 = vadd.f32 0.0, %v3498
        %v3500 = vpop.f32.mrb[0].mxu0
        %3501 = vmatprep.mubr.f32.mxu0 0.0
        %3502 = vmatmul.mubr.f32.gmra.mrb[0].mxu0 %v1303
        %v3503 = vpop.f32.mrb[0].mxu0
        %v3504 = vadd.f32 0.0, %v3503
        %v3505 = vpop.f32.mrb[0].mxu0
        %3506 = vmatprep.mubr.f32.mxu0 0.0
        %3507 = vmatmul.mubr.f32.gmra.mrb[0].mxu0 %v1305
        %v3508 = vpop.f32.mrb[0].mxu0
        %v3509 = vadd.f32 0.0, %v3508
        %v3510 = vpop.f32.mrb[0].mxu0
        %3511 = vmatprep.mubr.f32.mxu0 0.0
        %3512 = vmatmul.mubr.f32.gmra.mrb[0].mxu0 %v1307
        %v3513 = vpop.f32.mrb[0].mxu0
        %v3514 = vadd.f32 0.0, %v3513
        %v3515 = vpop.f32.mrb[0].mxu0
        %3516 = vmatprep.mubr.f32.mxu0 0.0
        %3517 = vmatmul.mubr.f32.gmra.mrb[0].mxu0 %v1309
        %v3518 = vpop.f32.mrb[0].mxu0
        %v3519 = vadd.f32 0.0, %v3518
        %v3520 = vpop.f32.mrb[0].mxu0
        %3521 = vmatprep.mubr.f32.mxu0 0.0
        %3522 = vmatmul.mubr.f32.gmra.mrb[0].mxu0 %v1311
        %v3523 = vpop.f32.mrb[0].mxu0
        %v3524 = vadd.f32 0.0, %v3523
        %v3525 = vpop.f32.mrb[0].mxu0
        %3526 = vmatprep.mubr.f32.mxu0 0.0
        %3527 = vmatmul.mubr.f32.gmra.mrb[0].mxu0 %v2312
        %v3528 = vpop.f32.mrb[0].mxu0
        %v3529 = vadd.f32 0.0, %v3528
        %v3530 = vpop.f32.mrb[0].mxu0
        %3531 = vmatprep.mubr.f32.mxu0 0.0
        %3532 = vmatmul.mubr.f32.gmra.mrb[0].mxu0 %v2314
        %v3533 = vpop.f32.mrb[0].mxu0
        %v3534 = vadd.f32 0.0, %v3533
        %v3535 = vpop.f32.mrb[0].mxu0
        %3536 = vmatprep.mubr.f32.mxu0 0.0
        %3537 = vmatmul.mubr.f32.gmra.mrb[0].mxu0 %v3315
        %v3538 = vpop.f32.mrb[0].mxu0
        %v3539 = vadd.f32 0.0, %v3538
        %v3540 = vpop.f32.mrb[0].mxu0
        %3541 = vmatprep.mubr.f32.mxu0 0.0
        %3542 = vmatmul.mubr.f32.gmra.mrb[0].mxu0 %v3317
        %v3543 = vpop.f32.mrb[0].mxu0
        %v3544 = vadd.f32 0.0, %v3543
        %v3545 = vpop.f32.mrb[0].mxu0
        %3546 = vdwg.mxu0
        %v3547 = vld [vmem:[#allocation2] sm:$0xff]
        %v3548 = vld [vmem:[#allocation2 + $0x8] sm:$0xff]
        %v3549 = vld [vmem:[#allocation2 + $0x10] sm:$0xff]
        %v3550 = vld [vmem:[#allocation2 + $0x18] sm:$0xff]
        %v3551 = vld [vmem:[#allocation2 + $0x20] sm:$0xff]
        %v3552 = vld [vmem:[#allocation2 + $0x28] sm:$0xff]
        %v3553 = vld [vmem:[#allocation2 + $0x30] sm:$0xff]
        %v3554 = vld [vmem:[#allocation2 + $0x38] sm:$0xff]
        %v3555 = vld [vmem:[#allocation2 + $0x40] sm:$0xff]
        %v3556 = vld [vmem:[#allocation2 + $0x48] sm:$0xff]
        %v3557 = vld [vmem:[#allocation2 + $0x50] sm:$0xff]
        %v3558 = vld [vmem:[#allocation2 + $0x58] sm:$0xff]
        %v3559 = vld [vmem:[#allocation2 + $0x60] sm:$0xff]
        %v3560 = vld [vmem:[#allocation2 + $0x68] sm:$0xff]
        %v3561 = vld [vmem:[#allocation2 + $0x70] sm:$0xff]
        %v3562 = vld [vmem:[#allocation2 + $0x78] sm:$0xff]
        %v3563 = vld [vmem:[#allocation2 + $0x80] sm:$0xff]
        %v3564 = vld [vmem:[#allocation2 + $0x88] sm:$0xff]
        %v3565 = vld [vmem:[#allocation2 + $0x90] sm:$0xff]
        %v3566 = vld [vmem:[#allocation2 + $0x98] sm:$0xff]
        %v3567 = vld [vmem:[#allocation2 + $0xa0] sm:$0xff]
        %v3568 = vld [vmem:[#allocation2 + $0xa8] sm:$0xff]
        %v3569 = vld [vmem:[#allocation2 + $0xb0] sm:$0xff]
        %v3570 = vld [vmem:[#allocation2 + $0xb8] sm:$0xff]
        %v3571 = vld [vmem:[#allocation2 + $0xc0] sm:$0xff]
        %v3572 = vld [vmem:[#allocation2 + $0xc8] sm:$0xff]
        %v3573 = vld [vmem:[#allocation2 + $0xd0] sm:$0xff]
        %v3574 = vld [vmem:[#allocation2 + $0xd8] sm:$0xff]
        %v3575 = vld [vmem:[#allocation2 + $0xe0] sm:$0xff]
        %v3576 = vld [vmem:[#allocation2 + $0xe8] sm:$0xff]
        %v3577 = vld [vmem:[#allocation2 + $0xf0] sm:$0xff]
        %v3578 = vld [vmem:[#allocation2 + $0xf8] sm:$0xff]
        %v3579 = vadd.f32 %v3547, %v3389
        %v3580 = vadd.f32 %v3548, %v3394
        %v3581 = vadd.f32 %v3549, %v3399
        %v3582 = vadd.f32 %v3550, %v3404
        %v3583 = vadd.f32 %v3551, %v3409
        %v3584 = vadd.f32 %v3552, %v3414
        %v3585 = vadd.f32 %v3553, %v3419
        %v3586 = vadd.f32 %v3554, %v3424
        %v3587 = vadd.f32 %v3555, %v3429
        %v3588 = vadd.f32 %v3556, %v3434
        %v3589 = vadd.f32 %v3557, %v3439
        %v3590 = vadd.f32 %v3558, %v3444
        %v3591 = vadd.f32 %v3559, %v3449
        %v3592 = vadd.f32 %v3560, %v3454
        %v3593 = vadd.f32 %v3561, %v3459
        %v3594 = vadd.f32 %v3562, %v3464
        %v3595 = vadd.f32 %v3563, %v3469
        %v3596 = vadd.f32 %v3564, %v3474
        %v3597 = vadd.f32 %v3565, %v3479
        %v3598 = vadd.f32 %v3566, %v3484
        %v3599 = vadd.f32 %v3567, %v3489
        %v3600 = vadd.f32 %v3568, %v3494
        %v3601 = vadd.f32 %v3569, %v3499
        %v3602 = vadd.f32 %v3570, %v3504
        %v3603 = vadd.f32 %v3571, %v3509
        %v3604 = vadd.f32 %v3572, %v3514
        %v3605 = vadd.f32 %v3573, %v3519
        %v3606 = vadd.f32 %v3574, %v3524
        %v3607 = vadd.f32 %v3575, %v3529
        %v3608 = vadd.f32 %v3576, %v3534
        %v3609 = vadd.f32 %v3577, %v3539
        %v3610 = vadd.f32 %v3578, %v3544
        %3611 = vst [vmem:[#allocation2] sm:$0xff] %v3579
        %3612 = vst [vmem:[#allocation2 + $0x8] sm:$0xff] %v3580
        %3613 = vst [vmem:[#allocation2 + $0x10] sm:$0xff] %v3581
        %3614 = vst [vmem:[#allocation2 + $0x18] sm:$0xff] %v3582
        %3615 = vst [vmem:[#allocation2 + $0x20] sm:$0xff] %v3583
        %3616 = vst [vmem:[#allocation2 + $0x28] sm:$0xff] %v3584
        %3617 = vst [vmem:[#allocation2 + $0x30] sm:$0xff] %v3585
        %3618 = vst [vmem:[#allocation2 + $0x38] sm:$0xff] %v3586
        %3619 = vst [vmem:[#allocation2 + $0x40] sm:$0xff] %v3587
        %3620 = vst [vmem:[#allocation2 + $0x48] sm:$0xff] %v3588
        %3621 = vst [vmem:[#allocation2 + $0x50] sm:$0xff] %v3589
        %3622 = vst [vmem:[#allocation2 + $0x58] sm:$0xff] %v3590
        %3623 = vst [vmem:[#allocation2 + $0x60] sm:$0xff] %v3591
        %3624 = vst [vmem:[#allocation2 + $0x68] sm:$0xff] %v3592
        %3625 = vst [vmem:[#allocation2 + $0x70] sm:$0xff] %v3593
        %3626 = vst [vmem:[#allocation2 + $0x78] sm:$0xff] %v3594
        %3627 = vst [vmem:[#allocation2 + $0x80] sm:$0xff] %v3595
        %3628 = vst [vmem:[#allocation2 + $0x88] sm:$0xff] %v3596
        %3629 = vst [vmem:[#allocation2 + $0x90] sm:$0xff] %v3597
        %3630 = vst [vmem:[#allocation2 + $0x98] sm:$0xff] %v3598
        %3631 = vst [vmem:[#allocation2 + $0xa0] sm:$0xff] %v3599
        %3632 = vst [vmem:[#allocation2 + $0xa8] sm:$0xff] %v3600
        %3633 = vst [vmem:[#allocation2 + $0xb0] sm:$0xff] %v3601
        %3634 = vst [vmem:[#allocation2 + $0xb8] sm:$0xff] %v3602
        %3635 = vst [vmem:[#allocation2 + $0xc0] sm:$0xff] %v3603
        %3636 = vst [vmem:[#allocation2 + $0xc8] sm:$0xff] %v3604
        %3637 = vst [vmem:[#allocation2 + $0xd0] sm:$0xff] %v3605
        %3638 = vst [vmem:[#allocation2 + $0xd8] sm:$0xff] %v3606
        %3639 = vst [vmem:[#allocation2 + $0xe0] sm:$0xff] %v3607
        %3640 = vst [vmem:[#allocation2 + $0xe8] sm:$0xff] %v3608
        %3641 = vst [vmem:[#allocation2 + $0xf0] sm:$0xff] %v3609
        %3642 = vst [vmem:[#allocation2 + $0xf8] sm:$0xff] %v3610
        %v3643 = vld [vmem:[#allocation2] sm:$0xff]
        %v3644 = vld [vmem:[#allocation2 + $0x8] sm:$0xff]
        %v3645 = vld [vmem:[#allocation2 + $0x10] sm:$0xff]
        %v3646 = vld [vmem:[#allocation2 + $0x18] sm:$0xff]
        %v3647 = vld [vmem:[#allocation2 + $0x20] sm:$0xff]
        %v3648 = vld [vmem:[#allocation2 + $0x28] sm:$0xff]
        %v3649 = vld [vmem:[#allocation2 + $0x30] sm:$0xff]
        %v3650 = vld [vmem:[#allocation2 + $0x38] sm:$0xff]
        %v3651 = vld [vmem:[#allocation2 + $0x40] sm:$0xff]
        %v3652 = vld [vmem:[#allocation2 + $0x48] sm:$0xff]
        %v3653 = vld [vmem:[#allocation2 + $0x50] sm:$0xff]
        %v3654 = vld [vmem:[#allocation2 + $0x58] sm:$0xff]
        %v3655 = vld [vmem:[#allocation2 + $0x60] sm:$0xff]
        %v3656 = vld [vmem:[#allocation2 + $0x68] sm:$0xff]
        %v3657 = vld [vmem:[#allocation2 + $0x70] sm:$0xff]
        %v3658 = vld [vmem:[#allocation2 + $0x78] sm:$0xff]
        %v3659 = vld [vmem:[#allocation2 + $0x80] sm:$0xff]
        %v3660 = vld [vmem:[#allocation2 + $0x88] sm:$0xff]
        %v3661 = vld [vmem:[#allocation2 + $0x90] sm:$0xff]
        %v3662 = vld [vmem:[#allocation2 + $0x98] sm:$0xff]
        %v3663 = vld [vmem:[#allocation2 + $0xa0] sm:$0xff]
        %v3664 = vld [vmem:[#allocation2 + $0xa8] sm:$0xff]
        %v3665 = vld [vmem:[#allocation2 + $0xb0] sm:$0xff]
        %v3666 = vld [vmem:[#allocation2 + $0xb8] sm:$0xff]
        %v3667 = vld [vmem:[#allocation2 + $0xc0] sm:$0xff]
        %v3668 = vld [vmem:[#allocation2 + $0xc8] sm:$0xff]
        %v3669 = vld [vmem:[#allocation2 + $0xd0] sm:$0xff]
        %v3670 = vld [vmem:[#allocation2 + $0xd8] sm:$0xff]
        %v3671 = vld [vmem:[#allocation2 + $0xe0] sm:$0xff]
        %v3672 = vld [vmem:[#allocation2 + $0xe8] sm:$0xff]
        %v3673 = vld [vmem:[#allocation2 + $0xf0] sm:$0xff]
        %v3674 = vld [vmem:[#allocation2 + $0xf8] sm:$0xff]
        %3675 = vst [vmem:[%s194] sm:$0xff] %v3643
        %3676 = vst [vmem:[%s194 + $0x8] sm:$0xff] %v3644
        %3677 = vst [vmem:[%s194 + $0x10] sm:$0xff] %v3645
        %3678 = vst [vmem:[%s194 + $0x18] sm:$0xff] %v3646
        %3679 = vst [vmem:[%s194 + $0x20] sm:$0xff] %v3647
        %3680 = vst [vmem:[%s194 + $0x28] sm:$0xff] %v3648
        %3681 = vst [vmem:[%s194 + $0x30] sm:$0xff] %v3649
        %3682 = vst [vmem:[%s194 + $0x38] sm:$0xff] %v3650
        %3683 = vst [vmem:[%s194 + $0x40] sm:$0xff] %v3651
        %3684 = vst [vmem:[%s194 + $0x48] sm:$0xff] %v3652
        %3685 = vst [vmem:[%s194 + $0x50] sm:$0xff] %v3653
        %3686 = vst [vmem:[%s194 + $0x58] sm:$0xff] %v3654
        %3687 = vst [vmem:[%s194 + $0x60] sm:$0xff] %v3655
        %3688 = vst [vmem:[%s194 + $0x68] sm:$0xff] %v3656
        %3689 = vst [vmem:[%s194 + $0x70] sm:$0xff] %v3657
        %3690 = vst [vmem:[%s194 + $0x78] sm:$0xff] %v3658
        %3691 = vst [vmem:[%s194 + $0x80] sm:$0xff] %v3659
        %3692 = vst [vmem:[%s194 + $0x88] sm:$0xff] %v3660
        %3693 = vst [vmem:[%s194 + $0x90] sm:$0xff] %v3661
        %3694 = vst [vmem:[%s194 + $0x98] sm:$0xff] %v3662
        %3695 = vst [vmem:[%s194 + $0xa0] sm:$0xff] %v3663
        %3696 = vst [vmem:[%s194 + $0xa8] sm:$0xff] %v3664
        %3697 = vst [vmem:[%s194 + $0xb0] sm:$0xff] %v3665
        %3698 = vst [vmem:[%s194 + $0xb8] sm:$0xff] %v3666
        %3699 = vst [vmem:[%s194 + $0xc0] sm:$0xff] %v3667
        %3700 = vst [vmem:[%s194 + $0xc8] sm:$0xff] %v3668
        %3701 = vst [vmem:[%s194 + $0xd0] sm:$0xff] %v3669
        %3702 = vst [vmem:[%s194 + $0xd8] sm:$0xff] %v3670
        %3703 = vst [vmem:[%s194 + $0xe0] sm:$0xff] %v3671
        %3704 = vst [vmem:[%s194 + $0xe8] sm:$0xff] %v3672
        %3705 = vst [vmem:[%s194 + $0xf0] sm:$0xff] %v3673
        %3706 = vst [vmem:[%s194 + $0xf8] sm:$0xff] %v3674
        %v3707 = vadd.f32 %v3643, %v3644
        %v3708 = vadd.f32 %v3707, %v3645
        %v3709 = vadd.f32 %v3708, %v3646
        %v3710 = vadd.f32 %v3709, %v3647
        %v3711 = vadd.f32 %v3710, %v3648
        %v3712 = vadd.f32 %v3711, %v3649
        %v3713 = vadd.f32 %v3712, %v3650
        %v3714 = vadd.f32 %v3713, %v3651
        %v3715 = vadd.f32 %v3714, %v3652
        %v3716 = vadd.f32 %v3715, %v3653
        %v3717 = vadd.f32 %v3716, %v3654
        %v3718 = vadd.f32 %v3717, %v3655
        %v3719 = vadd.f32 %v3718, %v3656
        %v3720 = vadd.f32 %v3719, %v3657
        %v3721 = vadd.f32 %v3720, %v3658
        %v3722 = vadd.f32 %v3721, %v3659
        %v3723 = vadd.f32 %v3722, %v3660
        %v3724 = vadd.f32 %v3723, %v3661
        %v3725 = vadd.f32 %v3724, %v3662
        %v3726 = vadd.f32 %v3725, %v3663
        %v3727 = vadd.f32 %v3726, %v3664
        %v3728 = vadd.f32 %v3727, %v3665
        %v3729 = vadd.f32 %v3728, %v3666
        %v3730 = vadd.f32 %v3729, %v3667
        %v3731 = vadd.f32 %v3730, %v3668
        %v3732 = vadd.f32 %v3731, %v3669
        %v3733 = vadd.f32 %v3732, %v3670
        %v3734 = vadd.f32 %v3733, %v3671
        %v3735 = vadd.f32 %v3734, %v3672
        %v3736 = vadd.f32 %v3735, %v3673
        %v3737 = vadd.f32 %v3736, %v3674
        %v3738 = vrot.slane %v3737, 4
        %v3739 = vadd.f32 %v3737, %v3738
        %v3740 = vrot.slane %v3739, 2
        %v3741 = vadd.f32 %v3739, %v3740
        %v3742 = vrot.slane %v3741, 1
        %v3743 = vadd.f32 %v3741, %v3742
        %3744 = vst [vmem:[%s200] sm:$0x1] %v3743
        %v3745 = vmul.f32 %v3643, %v3643
        %v3746 = vmul.f32 %v3644, %v3644
        %v3747 = vmul.f32 %v3645, %v3645
        %v3748 = vmul.f32 %v3646, %v3646
        %v3749 = vmul.f32 %v3647, %v3647
        %v3750 = vmul.f32 %v3648, %v3648
        %v3751 = vmul.f32 %v3649, %v3649
        %v3752 = vmul.f32 %v3650, %v3650
        %v3753 = vmul.f32 %v3651, %v3651
        %v3754 = vmul.f32 %v3652, %v3652
        %v3755 = vmul.f32 %v3653, %v3653
        %v3756 = vmul.f32 %v3654, %v3654
        %v3757 = vmul.f32 %v3655, %v3655
        %v3758 = vmul.f32 %v3656, %v3656
        %v3759 = vmul.f32 %v3657, %v3657
        %v3760 = vmul.f32 %v3658, %v3658
        %v3761 = vmul.f32 %v3659, %v3659
        %v3762 = vmul.f32 %v3660, %v3660
        %v3763 = vmul.f32 %v3661, %v3661
        %v3764 = vmul.f32 %v3662, %v3662
        %v3765 = vmul.f32 %v3663, %v3663
        %v3766 = vmul.f32 %v3664, %v3664
        %v3767 = vmul.f32 %v3665, %v3665
        %v3768 = vmul.f32 %v3666, %v3666
        %v3769 = vmul.f32 %v3667, %v3667
        %v3770 = vmul.f32 %v3668, %v3668
        %v3771 = vmul.f32 %v3669, %v3669
        %v3772 = vmul.f32 %v3670, %v3670
        %v3773 = vmul.f32 %v3671, %v3671
        %v3774 = vmul.f32 %v3672, %v3672
        %v3775 = vmul.f32 %v3673, %v3673
        %v3776 = vmul.f32 %v3674, %v3674
        %v3777 = vadd.f32 %v3745, %v3746
        %v3778 = vadd.f32 %v3777, %v3747
        %v3779 = vadd.f32 %v3778, %v3748
        %v3780 = vadd.f32 %v3779, %v3749
        %v3781 = vadd.f32 %v3780, %v3750
        %v3782 = vadd.f32 %v3781, %v3751
        %v3783 = vadd.f32 %v3782, %v3752
        %v3784 = vadd.f32 %v3783, %v3753
        %v3785 = vadd.f32 %v3784, %v3754
        %v3786 = vadd.f32 %v3785, %v3755
        %v3787 = vadd.f32 %v3786, %v3756
        %v3788 = vadd.f32 %v3787, %v3757
        %v3789 = vadd.f32 %v3788, %v3758
        %v3790 = vadd.f32 %v3789, %v3759
        %v3791 = vadd.f32 %v3790, %v3760
        %v3792 = vadd.f32 %v3791, %v3761
        %v3793 = vadd.f32 %v3792, %v3762
        %v3794 = vadd.f32 %v3793, %v3763
        %v3795 = vadd.f32 %v3794, %v3764
        %v3796 = vadd.f32 %v3795, %v3765
        %v3797 = vadd.f32 %v3796, %v3766
        %v3798 = vadd.f32 %v3797, %v3767
        %v3799 = vadd.f32 %v3798, %v3768
        %v3800 = vadd.f32 %v3799, %v3769
        %v3801 = vadd.f32 %v3800, %v3770
        %v3802 = vadd.f32 %v3801, %v3771
        %v3803 = vadd.f32 %v3802, %v3772
        %v3804 = vadd.f32 %v3803, %v3773
        %v3805 = vadd.f32 %v3804, %v3774
        %v3806 = vadd.f32 %v3805, %v3775
        %v3807 = vadd.f32 %v3806, %v3776
        %v3808 = vrot.slane %v3807, 4
        %v3809 = vadd.f32 %v3807, %v3808
        %v3810 = vrot.slane %v3809, 2
        %v3811 = vadd.f32 %v3809, %v3810
        %v3812 = vrot.slane %v3811, 1
        %v3813 = vadd.f32 %v3811, %v3812
        %3814 = vst [vmem:[%s206] sm:$0x1] %v3813
        %s3815 = sand.u32 %s77, 1
        %s3816 = scalar_lea.sflag [#allocation4], %s3815
        %s3817 = sand.u32 %s77, 1
        %s3818 = smul.addr %s3817, 256
        %s3819 = scalar_lea.vmem [#allocation3], %s3818
        %s3820 = sand.u32 %s22, 1
        %s3821 = scalar_lea.sflag [#allocation6], %s3820
        %s3822 = sand.u32 %s103, 1
        %s3823 = scalar_lea.vmem [#allocation5], %s3822
        %s3824 = sand.u32 %s22, 1
        %s3825 = scalar_lea.sflag [#allocation6], %s3824
        %s3826 = sand.u32 %s129, 1
        %s3827 = scalar_lea.vmem [#allocation7], %s3826
        // Predicated region
        $region29: #{tpu_custom_call.1} parent=27 // pred_check
          %p3828 = pneg %p87
        $region30: #{tpu_custom_call.1} parent=27 // pred_check_branch
          %3830 = sbr.rel (%p3828) target = $region32
        $region31: #{tpu_custom_call.1} parent=27 // pred_region
          %s3832 = ssub.s32 4096, 4096
          %3833 = vsyncadd %s3816, %s3832
          %s3834 = smul.addr %s22, 32
          %s3835 = smul.addr %s3834, 128
          %s3836 = scalar_lea.hbm %s2, %s3835
          %s3837 = sshll.u32 %s3819, 4
          %s3838 = int_to_ptr.vmem [resolvable:$true] %s3837
          %3843 = dma.vmem_to_hbm [thread:$0]  %s3838, 4096, %s3836, %s3816, 128, 128, 8
        $region32: #{tpu_custom_call.1} parent=27 // pred_fallthru
          _
        // Predicated region
        $region33: #{tpu_custom_call.1} parent=27 // pred_check
          %p3844 = pneg %p113
        $region34: #{tpu_custom_call.1} parent=27 // pred_check_branch
          %3846 = sbr.rel (%p3844) target = $region36
        $region35: #{tpu_custom_call.1} parent=27 // pred_region
          %s3848 = ssub.s32 16, 16
          %3849 = vsyncadd %s3821, %s3848
          %s3850 = smul.addr %s22, 16
          %s3851 = scalar_lea.hbm %s3, %s3850
          %s3853 = sshll.u32 %s3823, 4
          %s3854 = int_to_ptr.vmem [resolvable:$true] %s3853
          %3856 = dma.vmem_to_hbm [thread:$0]  %s3854, 16, %s3851, %s3821
        $region36: #{tpu_custom_call.1} parent=27 // pred_fallthru
          _
        // Predicated region
        $region37: #{tpu_custom_call.1} parent=27 // pred_check
          %p3857 = pneg %p139
        $region38: #{tpu_custom_call.1} parent=27 // pred_check_branch
          %3859 = sbr.rel (%p3857) target = $region40
        $region39: #{tpu_custom_call.1} parent=27 // pred_region
          %s3861 = ssub.s32 16, 16
          %3862 = vsyncadd %s3825, %s3861
          %s3863 = smul.addr %s22, 16
          %s3864 = scalar_lea.hbm %s4, %s3863
          %s3866 = sshll.u32 %s3827, 4
          %s3867 = int_to_ptr.vmem [resolvable:$true] %s3866
          %3869 = dma.vmem_to_hbm [thread:$0]  %s3867, 16, %s3864, %s3825
        $region40: #{tpu_custom_call.1} parent=27 // pred_fallthru
          _
      $region28: #{tpu_custom_call.1} parent=5 // pred_fallthru
        _
      %p3870 = scmp.le.s32.totalorder 2, %s17
      // Predicated region
      $region41: #{tpu_custom_call.1} parent=5 // pred_check
        %p3871 = pneg %p3870
      $region42: #{tpu_custom_call.1} parent=5 // pred_check_branch
        %3873 = sbr.rel (%p3871) target = $region44
      $region43: #{tpu_custom_call.1} parent=5 // pred_region
        %s3874 = ssub.s32 %s17, 2
        // Predicated region
        $region45: #{tpu_custom_call.1} parent=43 // pred_check
          %p3875 = pneg %p93
        $region46: #{tpu_custom_call.1} parent=43 // pred_check_branch
          %3877 = sbr.rel (%p3875) target = $region48
        $region47: #{tpu_custom_call.1} parent=43 // pred_region
          %s3878 = sand.u32 %s78, 1
          %s3879 = scalar_lea.sflag [#allocation4], %s3878
          %s3880 = sand.u32 %s78, 1
          %s3881 = smul.addr %s3880, 256
          %s3882 = scalar_lea.vmem [#allocation3], %s3881
          %3883 = dma.done %s3879, 4096
        $region48: #{tpu_custom_call.1} parent=43 // pred_fallthru
          _
        // Predicated region
        $region49: #{tpu_custom_call.1} parent=43 // pred_check
          %p3884 = pneg %p119
        $region50: #{tpu_custom_call.1} parent=43 // pred_check_branch
          %3886 = sbr.rel (%p3884) target = $region52
        $region51: #{tpu_custom_call.1} parent=43 // pred_region
          %s3887 = sand.u32 %s23, 1
          %s3888 = scalar_lea.sflag [#allocation6], %s3887
          %s3889 = sand.u32 %s104, 1
          %s3890 = scalar_lea.vmem [#allocation5], %s3889
          %3891 = dma.done %s3888, 16
        $region52: #{tpu_custom_call.1} parent=43 // pred_fallthru
          _
        // Predicated region
        $region53: #{tpu_custom_call.1} parent=43 // pred_check
          %p3892 = pneg %p145
        $region54: #{tpu_custom_call.1} parent=43 // pred_check_branch
          %3894 = sbr.rel (%p3892) target = $region56
        $region55: #{tpu_custom_call.1} parent=43 // pred_region
          %s3895 = sand.u32 %s23, 1
          %s3896 = scalar_lea.sflag [#allocation6], %s3895
          %s3897 = sand.u32 %s130, 1
          %s3898 = scalar_lea.vmem [#allocation7], %s3897
          %3899 = dma.done %s3896, 16
        $region56: #{tpu_custom_call.1} parent=43 // pred_fallthru
          _
      $region44: #{tpu_custom_call.1} parent=5 // pred_fallthru
        _
    $region6: #{tpu_custom_call.1} parent=1 // loop_footer
      %s21 = sadd.s32 1, %s17
    $region7: #{tpu_custom_call.1} parent=1 // loop_footer_branch
      %16 = sbr.rel target = $region3
    $region8: #{tpu_custom_call.1} parent=1 // loop_exit
      _
    %3900 = vsyncpa [#allocation4], 1
    %s3901 = scalar_lea.sflag [#allocation4], 1
    %3902 = vsyncpa %s3901, 1
    %3903 = vsyncpa [#allocation6], 1
    %s3904 = scalar_lea.sflag [#allocation6], 1
    %3905 = vsyncpa %s3904, 1

</llo_original>
